<compile_context>
chip_gen: v6e
topology: v6e:2x2x1
jax: 0.10.0
libtpu: 0.0.40
codegen_flags: <defaults>
</compile_context>

<pallas_src>
import math

import jax
import jax.numpy as jnp
from jax.experimental import pallas as pl
from jax.experimental.pallas import tpu as pltpu

# ----------------------------- model config ---------------------------------
D_MODEL = 32
N_HEADS = 4
FF_HIDDEN = 64
N_LAYERS = 2
BATCH = 2
SEQ = 8
D_K = D_MODEL // N_HEADS
LN_EPS = 1e-5
LEAKY_SLOPE = 0.01  # nn.LeakyReLU default


# ----------------------------- kernel ----------------------------------------
def _layernorm(x, gamma, beta):
    # x: (T, D); gamma/beta: (1, D).  Biased variance, like torch.nn.LayerNorm.
    mean = jnp.mean(x, axis=-1, keepdims=True)
    var = jnp.mean(jnp.square(x - mean), axis=-1, keepdims=True)
    inv = jax.lax.rsqrt(var + LN_EPS)
    return (x - mean) * inv * gamma + beta


def encoder_kernel(
    x_ref,
    wqkv_ref, bqkv_ref, wo_ref, bo_ref,
    g1_ref, be1_ref,
    w1_ref, bf1_ref, w2_ref, bf2_ref,
    g2_ref, be2_ref,
    o_ref,
):
    scale = 1.0 / math.sqrt(D_K)
    x = x_ref[...]                     # (SEQ, D): tokens of one batch element

    for layer in range(N_LAYERS):      # static unroll over layers
        # ---- fused QKV projection: ONE matmul + ONE broadcast bias add ----
        # columns of wqkv are ordered (proj, head, d_k), matching torch's
        # view(B, S, H, d_k) head split.
        qkv = (jnp.dot(x, wqkv_ref[layer], preferred_element_type=jnp.float32)
               + bqkv_ref[layer])      # (S, 3*D)

        # head-major stack (3H, S, d_k) built from aligned static lane slices
        # (reads only — no masked partial stores, no VMEM scratch).
        qkvh = jnp.stack(
            [qkv[:, j * D_K:(j + 1) * D_K] for j in range(3 * N_HEADS)])
        q = qkvh[:N_HEADS]             # (H, S, d_k)
        k = qkvh[N_HEADS:2 * N_HEADS]  # (H, S, d_k)
        v = qkvh[2 * N_HEADS:]         # (H, S, d_k)

        # ---- all heads at once: batched einsums over the head dim ----
        s = jnp.einsum("hqd,hkd->hqk", q, k,
                       preferred_element_type=jnp.float32) * scale   # (H,S,S)
        m = jnp.max(s, axis=-1, keepdims=True)
        e = jnp.exp(s - m)
        denom = jnp.sum(e, axis=-1, keepdims=True)
        attn = e * pl.reciprocal(denom, approx=True)
        ctx = jnp.einsum("hqk,hkd->hqd", attn, v,
                         preferred_element_type=jnp.float32)          # (H,S,d_k)

        # ---- output projection with the head-concat folded into Wo ----
        # concat_h(ctx_h) @ Wo == sum_h ctx_h @ Wo[h*d_k:(h+1)*d_k, :]
        wo = wo_ref[layer]
        attn_out = bo_ref[layer]       # (1, D), broadcasts over tokens
        for h in range(N_HEADS):
            attn_out = attn_out + jnp.dot(
                ctx[h], wo[h * D_K:(h + 1) * D_K, :],
                preferred_element_type=jnp.float32)

        # residual + layernorm 1  (dropout == identity in eval mode)
        x = _layernorm(x + attn_out, g1_ref[layer], be1_ref[layer])

        # ---- feed-forward ----
        h1 = (jnp.dot(x, w1_ref[layer], preferred_element_type=jnp.float32)
              + bf1_ref[layer])
        h1 = jnp.where(h1 >= 0, h1, LEAKY_SLOPE * h1)  # LeakyReLU
        ff = (jnp.dot(h1, w2_ref[layer], preferred_element_type=jnp.float32)
              + bf2_ref[layer])

        # residual + layernorm 2  (dropout == identity in eval mode)
        x = _layernorm(x + ff, g2_ref[layer], be2_ref[layer])

    o_ref[...] = x


# ----------------------------- wrapper ---------------------------------------
def transformer_encoder_pallas(x, layer_params):
    B, S, D = x.shape
    L = len(layer_params)
    assert (B, S, D, L) == (BATCH, SEQ, D_MODEL, N_LAYERS)

    # Fused QKV weight/bias + per-layer stacks along a leading layer axis.
    wqkv = jnp.stack([jnp.concatenate([p["wq"], p["wk"], p["wv"]], axis=1)
                      for p in layer_params])            # (L, D, 3D)
    bqkv = jnp.stack([jnp.concatenate([p["bq"], p["bk"], p["bv"]], axis=1)
                      for p in layer_params])            # (L, 1, 3D)

    def stack(name):
        return jnp.stack([p[name] for p in layer_params])

    stacked = [wqkv, bqkv,
               stack("wo"), stack("bo"),
               stack("ln1_g"), stack("ln1_b"),
               stack("w1"), stack("bf1"), stack("w2"), stack("bf2"),
               stack("ln2_g"), stack("ln2_b")]

    # Flat token layout; grid over batch gives v7x's two TensorCores work.
    x2d = x.reshape(B * S, D)

    def weight_spec(shape):
        nd = len(shape)
        return pl.BlockSpec(shape, lambda b, _nd=nd: (0,) * _nd)

    x_spec = pl.BlockSpec((SEQ, D), lambda b: (b, 0))
    out_spec = pl.BlockSpec((SEQ, D), lambda b: (b, 0))

    # Advisory cost hint for XLA scheduling around the custom call.
    flops = L * B * (2 * S * D * 3 * D                   # fused QKV projection
                     + 4 * N_HEADS * S * S * D_K         # scores + context
                     + 2 * S * D * D                     # output projection
                     + 4 * S * D * FF_HIDDEN)            # FFN matmuls
    transcendentals = L * B * (N_HEADS * S * S           # exp
                               + N_HEADS * S             # reciprocal
                               + 2 * S)                  # rsqrt (2 LayerNorms)
    bytes_accessed = 4 * (2 * B * S * D + sum(int(w.size) for w in stacked))

    out2d = pl.pallas_call(
        encoder_kernel,
        out_shape=jax.ShapeDtypeStruct((B * S, D), jnp.float32),
        grid_spec=pltpu.PrefetchScalarGridSpec(
            num_scalar_prefetch=0,
            grid=(B,),
            in_specs=[x_spec] + [weight_spec(w.shape) for w in stacked],
            out_specs=out_spec,
        ),
        compiler_params=pltpu.CompilerParams(
            dimension_semantics=("parallel",)),
        cost_estimate=pl.CostEstimate(
            flops=flops, transcendentals=transcendentals,
            bytes_accessed=bytes_accessed),
    )(x2d, *stacked)
    return out2d.reshape(B, S, D)


# -------------------------- plain-JAX reference -------------------------------
def _ref_layernorm(x, g, b):
    mean = jnp.mean(x, axis=-1, keepdims=True)
    var = jnp.mean(jnp.square(x - mean), axis=-1, keepdims=True)
    return (x - mean) / jnp.sqrt(var + LN_EPS) * g + b


def transformer_block_ref(x, p):
    B, S, D = x.shape
    q = x @ p["wq"] + p["bq"]
    k = x @ p["wk"] + p["bk"]
    v = x @ p["wv"] + p["bv"]
    q = q.reshape(B, S, N_HEADS, D_K).transpose(0, 2, 1, 3)
    k = k.reshape(B, S, N_HEADS, D_K).transpose(0, 2, 1, 3)
    v = v.reshape(B, S, N_HEADS, D_K).transpose(0, 2, 1, 3)
    scores = jnp.einsum("bhqd,bhkd->bhqk", q, k) / math.sqrt(D_K)
    attn = jax.nn.softmax(scores, axis=-1)
    ctx = jnp.einsum("bhqk,bhkd->bhqd", attn, v)
    ctx = ctx.transpose(0, 2, 1, 3).reshape(B, S, D)
    attn_out = ctx @ p["wo"] + p["bo"]
    x1 = _ref_layernorm(x + attn_out, p["ln1_g"], p["ln1_b"])
    h = x1 @ p["w1"] + p["bf1"]
    h = jnp.where(h >= 0, h, LEAKY_SLOPE * h)
    ff = h @ p["w2"] + p["bf2"]
    return _ref_layernorm(x1 + ff, p["ln2_g"], p["ln2_b"])


def transformer_encoder_ref(x, layer_params):
    for p in layer_params:
        x = transformer_block_ref(x, p)
    return x


# ----------------------------- param init ------------------------------------
def init_layer_params(key):
    ks = jax.random.split(key, 12)
    f32 = jnp.float32

    def lin(k, din, dout, scale=0.05):
        return jax.random.normal(k, (din, dout), f32) * scale

    return {
        "wq": lin(ks[0], D_MODEL, D_MODEL), "bq": jnp.zeros((1, D_MODEL), f32),
        "wk": lin(ks[1], D_MODEL, D_MODEL), "bk": jnp.zeros((1, D_MODEL), f32),
        "wv": lin(ks[2], D_MODEL, D_MODEL), "bv": jnp.zeros((1, D_MODEL), f32),
        "wo": lin(ks[3], D_MODEL, D_MODEL), "bo": jnp.zeros((1, D_MODEL), f32),
        "ln1_g": jnp.ones((1, D_MODEL), f32), "ln1_b": jnp.zeros((1, D_MODEL), f32),
        "w1": lin(ks[4], D_MODEL, FF_HIDDEN),
        "bf1": jax.random.normal(ks[5], (1, FF_HIDDEN), f32) * 0.01,
        "w2": lin(ks[6], FF_HIDDEN, D_MODEL),
        "bf2": jax.random.normal(ks[7], (1, D_MODEL), f32) * 0.01,
        "ln2_g": jnp.ones((1, D_MODEL), f32), "ln2_b": jnp.zeros((1, D_MODEL), f32),
    }


# ----------------------------- main -------------------------------------------
if __name__ == "__main__":
    key = jax.random.PRNGKey(0)
    kx, *kls = jax.random.split(key, N_LAYERS + 1)

    x = jax.random.normal(kx, (BATCH, SEQ, D_MODEL), jnp.float32)
    layer_params = [init_layer_params(k) for k in kls]

    out = jax.block_until_ready(transformer_encoder_pallas(x, layer_params))

    # sanity check against pure-JAX reference (approx reciprocal in the softmax
    # denominator trades a few ULPs, hence the 1e-3 tolerance).
    ref = jax.block_until_ready(transformer_encoder_ref(x, layer_params))
    assert out.shape == (BATCH, SEQ, D_MODEL)
    assert jnp.allclose(out, ref, atol=1e-3, rtol=1e-3), "mismatch vs reference"

    print("KERNEL_OK")
</pallas_src>

<mosaic_0001>
module attributes {stable_mosaic.version = 11 : i64} {
  func.func @encoder_kernel(%arg0: i32, %arg1: memref<8x32xf32, #tpu.memory_space<vmem>>, %arg2: memref<2x32x96xf32, #tpu.memory_space<vmem>>, %arg3: memref<2x1x96xf32, #tpu.memory_space<vmem>>, %arg4: memref<2x32x32xf32, #tpu.memory_space<vmem>>, %arg5: memref<2x1x32xf32, #tpu.memory_space<vmem>>, %arg6: memref<2x1x32xf32, #tpu.memory_space<vmem>>, %arg7: memref<2x1x32xf32, #tpu.memory_space<vmem>>, %arg8: memref<2x32x64xf32, #tpu.memory_space<vmem>>, %arg9: memref<2x1x64xf32, #tpu.memory_space<vmem>>, %arg10: memref<2x64x32xf32, #tpu.memory_space<vmem>>, %arg11: memref<2x1x32xf32, #tpu.memory_space<vmem>>, %arg12: memref<2x1x32xf32, #tpu.memory_space<vmem>>, %arg13: memref<2x1x32xf32, #tpu.memory_space<vmem>>, %arg14: memref<8x32xf32, #tpu.memory_space<vmem>>) attributes {dimension_semantics = [#tpu.dimension_semantics<parallel>], iteration_bounds = array<i64: 2>, scalar_prefetch = 0 : i64, scratch_operands = 0 : i64, tpu.core_type = #tpu.core_type<tc>, window_params = [{transform_indices = @transform_0, window_bounds = array<i64: 8, 32>}, {pipeline_mode = #tpu.pipeline_mode<synchronous>, transform_indices = @transform_1, window_bounds = array<i64: 2, 32, 96>}, {pipeline_mode = #tpu.pipeline_mode<synchronous>, transform_indices = @transform_2, window_bounds = array<i64: 2, 1, 96>}, {pipeline_mode = #tpu.pipeline_mode<synchronous>, transform_indices = @transform_3, window_bounds = array<i64: 2, 32, 32>}, {pipeline_mode = #tpu.pipeline_mode<synchronous>, transform_indices = @transform_4, window_bounds = array<i64: 2, 1, 32>}, {pipeline_mode = #tpu.pipeline_mode<synchronous>, transform_indices = @transform_5, window_bounds = array<i64: 2, 1, 32>}, {pipeline_mode = #tpu.pipeline_mode<synchronous>, transform_indices = @transform_6, window_bounds = array<i64: 2, 1, 32>}, {pipeline_mode = #tpu.pipeline_mode<synchronous>, transform_indices = @transform_7, window_bounds = array<i64: 2, 32, 64>}, {pipeline_mode = #tpu.pipeline_mode<synchronous>, transform_indices = @transform_8, window_bounds = array<i64: 2, 1, 64>}, {pipeline_mode = #tpu.pipeline_mode<synchronous>, transform_indices = @transform_9, window_bounds = array<i64: 2, 64, 32>}, {pipeline_mode = #tpu.pipeline_mode<synchronous>, transform_indices = @transform_10, window_bounds = array<i64: 2, 1, 32>}, {pipeline_mode = #tpu.pipeline_mode<synchronous>, transform_indices = @transform_11, window_bounds = array<i64: 2, 1, 32>}, {pipeline_mode = #tpu.pipeline_mode<synchronous>, transform_indices = @transform_12, window_bounds = array<i64: 2, 1, 32>}, {transform_indices = @transform_13, window_bounds = array<i64: 8, 32>}]} {
    %c0 = arith.constant 0 : index
    %c0_0 = arith.constant 0 : index
    %0 = vector.load %arg1[%c0, %c0_0] : memref<8x32xf32, #tpu.memory_space<vmem>>, vector<8x32xf32>
    %c0_1 = arith.constant 0 : index
    %c0_2 = arith.constant 0 : index
    %c0_3 = arith.constant 0 : index
    %1 = vector.load %arg2[%c0_1, %c0_2, %c0_3] : memref<2x32x96xf32, #tpu.memory_space<vmem>>, vector<1x32x96xf32>
    %2 = vector.shape_cast %1 : vector<1x32x96xf32> to vector<32x96xf32>
    %cst = arith.constant dense<0.000000e+00> : vector<8x96xf32>
    %3 = tpu.matmul %0, %2, %cst {dimension_numbers = #tpu.dot_dimension_numbers<[1], [0], [0], [1], [0, 0, 1, 1], [], []>} : vector<8x32xf32>, vector<32x96xf32>, vector<8x96xf32> -> vector<8x96xf32>
    %c0_4 = arith.constant 0 : index
    %c0_5 = arith.constant 0 : index
    %c0_6 = arith.constant 0 : index
    %4 = vector.load %arg3[%c0_4, %c0_5, %c0_6] : memref<2x1x96xf32, #tpu.memory_space<vmem>>, vector<1x1x96xf32>
    %5 = vector.shape_cast %4 : vector<1x1x96xf32> to vector<1x96xf32>
    %6 = vector.broadcast %5 : vector<1x96xf32> to vector<8x96xf32>
    %7 = arith.addf %3, %6 : vector<8x96xf32>
    %8 = vector.extract_strided_slice %7 {offsets = [0, 0], sizes = [8, 8], strides = [1, 1]} : vector<8x96xf32> to vector<8x8xf32>
    %9 = vector.extract_strided_slice %7 {offsets = [0, 8], sizes = [8, 8], strides = [1, 1]} : vector<8x96xf32> to vector<8x8xf32>
    %10 = vector.extract_strided_slice %7 {offsets = [0, 16], sizes = [8, 8], strides = [1, 1]} : vector<8x96xf32> to vector<8x8xf32>
    %11 = vector.extract_strided_slice %7 {offsets = [0, 24], sizes = [8, 8], strides = [1, 1]} : vector<8x96xf32> to vector<8x8xf32>
    %12 = vector.extract_strided_slice %7 {offsets = [0, 32], sizes = [8, 8], strides = [1, 1]} : vector<8x96xf32> to vector<8x8xf32>
    %13 = vector.extract_strided_slice %7 {offsets = [0, 40], sizes = [8, 8], strides = [1, 1]} : vector<8x96xf32> to vector<8x8xf32>
    %14 = vector.extract_strided_slice %7 {offsets = [0, 48], sizes = [8, 8], strides = [1, 1]} : vector<8x96xf32> to vector<8x8xf32>
    %15 = vector.extract_strided_slice %7 {offsets = [0, 56], sizes = [8, 8], strides = [1, 1]} : vector<8x96xf32> to vector<8x8xf32>
    %16 = vector.extract_strided_slice %7 {offsets = [0, 64], sizes = [8, 8], strides = [1, 1]} : vector<8x96xf32> to vector<8x8xf32>
    %17 = vector.extract_strided_slice %7 {offsets = [0, 72], sizes = [8, 8], strides = [1, 1]} : vector<8x96xf32> to vector<8x8xf32>
    %18 = vector.extract_strided_slice %7 {offsets = [0, 80], sizes = [8, 8], strides = [1, 1]} : vector<8x96xf32> to vector<8x8xf32>
    %19 = vector.extract_strided_slice %7 {offsets = [0, 88], sizes = [8, 8], strides = [1, 1]} : vector<8x96xf32> to vector<8x8xf32>
    %20 = vector.shape_cast %8 : vector<8x8xf32> to vector<1x8x8xf32>
    %21 = vector.shape_cast %9 : vector<8x8xf32> to vector<1x8x8xf32>
    %22 = vector.shape_cast %10 : vector<8x8xf32> to vector<1x8x8xf32>
    %23 = vector.shape_cast %11 : vector<8x8xf32> to vector<1x8x8xf32>
    %24 = vector.shape_cast %12 : vector<8x8xf32> to vector<1x8x8xf32>
    %25 = vector.shape_cast %13 : vector<8x8xf32> to vector<1x8x8xf32>
    %26 = vector.shape_cast %14 : vector<8x8xf32> to vector<1x8x8xf32>
    %27 = vector.shape_cast %15 : vector<8x8xf32> to vector<1x8x8xf32>
    %28 = vector.shape_cast %16 : vector<8x8xf32> to vector<1x8x8xf32>
    %29 = vector.shape_cast %17 : vector<8x8xf32> to vector<1x8x8xf32>
    %30 = vector.shape_cast %18 : vector<8x8xf32> to vector<1x8x8xf32>
    %31 = vector.shape_cast %19 : vector<8x8xf32> to vector<1x8x8xf32>
    %32 = tpu.concatenate %20, %21, %22, %23, %24, %25, %26, %27, %28, %29, %30, %31 in 0 : vector<1x8x8xf32>, vector<1x8x8xf32>, vector<1x8x8xf32>, vector<1x8x8xf32>, vector<1x8x8xf32>, vector<1x8x8xf32>, vector<1x8x8xf32>, vector<1x8x8xf32>, vector<1x8x8xf32>, vector<1x8x8xf32>, vector<1x8x8xf32>, vector<1x8x8xf32> -> vector<12x8x8xf32>
    %33 = vector.extract_strided_slice %32 {offsets = [0, 0, 0], sizes = [4, 8, 8], strides = [1, 1, 1]} : vector<12x8x8xf32> to vector<4x8x8xf32>
    %34 = vector.extract_strided_slice %32 {offsets = [4, 0, 0], sizes = [4, 8, 8], strides = [1, 1, 1]} : vector<12x8x8xf32> to vector<4x8x8xf32>
    %35 = vector.extract_strided_slice %32 {offsets = [8, 0, 0], sizes = [4, 8, 8], strides = [1, 1, 1]} : vector<12x8x8xf32> to vector<4x8x8xf32>
    "tpu.trace_start"() <{level = 10 : i32, message = "hqd,hkd->hqk"}> : () -> ()
    %cst_7 = arith.constant dense<0.000000e+00> : vector<4x8x8xf32>
    %36 = tpu.matmul %33, %34, %cst_7 {dimension_numbers = #tpu.dot_dimension_numbers<[2], [2], [1], [1], [0, 0, 0, 1, 1, 1], [0], [0]>} : vector<4x8x8xf32>, vector<4x8x8xf32>, vector<4x8x8xf32> -> vector<4x8x8xf32>
    "tpu.trace_stop"() : () -> ()
    %cst_8 = arith.constant 0.353553385 : f32
    %37 = vector.broadcast %cst_8 : f32 to vector<4x8x8xf32>
    %38 = arith.mulf %36, %37 : vector<4x8x8xf32>
    %cst_9 = arith.constant dense<0xFF800000> : vector<4x8xf32>
    %39 = vector.multi_reduction <maximumf>, %38, %cst_9 [2] : vector<4x8x8xf32> to vector<4x8xf32>
    %40 = vector.shape_cast %39 : vector<4x8xf32> to vector<4x8x1xf32>
    %41 = vector.broadcast %40 : vector<4x8x1xf32> to vector<4x8x8xf32>
    %42 = arith.subf %38, %41 : vector<4x8x8xf32>
    %43 = math.exp %42 : vector<4x8x8xf32>
    %cst_10 = arith.constant dense<0.000000e+00> : vector<4x8xf32>
    %44 = vector.multi_reduction <add>, %43, %cst_10 [2] : vector<4x8x8xf32> to vector<4x8xf32>
    %45 = vector.shape_cast %44 : vector<4x8xf32> to vector<4x8x1xf32>
    %46 = tpu.reciprocal %45 {approx = true} : vector<4x8x1xf32> -> vector<4x8x1xf32>
    %47 = vector.broadcast %46 : vector<4x8x1xf32> to vector<4x8x8xf32>
    %48 = arith.mulf %43, %47 : vector<4x8x8xf32>
    "tpu.trace_start"() <{level = 10 : i32, message = "hqk,hkd->hqd"}> : () -> ()
    %cst_11 = arith.constant dense<0.000000e+00> : vector<4x8x8xf32>
    %49 = tpu.matmul %48, %35, %cst_11 {dimension_numbers = #tpu.dot_dimension_numbers<[2], [1], [1], [2], [0, 0, 0, 1, 1, 2], [0], [0]>} : vector<4x8x8xf32>, vector<4x8x8xf32>, vector<4x8x8xf32> -> vector<4x8x8xf32>
    "tpu.trace_stop"() : () -> ()
    %c0_12 = arith.constant 0 : index
    %c0_13 = arith.constant 0 : index
    %c0_14 = arith.constant 0 : index
    %50 = vector.load %arg4[%c0_12, %c0_13, %c0_14] : memref<2x32x32xf32, #tpu.memory_space<vmem>>, vector<1x32x32xf32>
    %51 = vector.shape_cast %50 : vector<1x32x32xf32> to vector<32x32xf32>
    %c0_15 = arith.constant 0 : index
    %c0_16 = arith.constant 0 : index
    %c0_17 = arith.constant 0 : index
    %52 = vector.load %arg5[%c0_15, %c0_16, %c0_17] : memref<2x1x32xf32, #tpu.memory_space<vmem>>, vector<1x1x32xf32>
    %53 = vector.shape_cast %52 : vector<1x1x32xf32> to vector<1x32xf32>
    %54 = vector.extract_strided_slice %49 {offsets = [0, 0, 0], sizes = [1, 8, 8], strides = [1, 1, 1]} : vector<4x8x8xf32> to vector<1x8x8xf32>
    %55 = vector.shape_cast %54 : vector<1x8x8xf32> to vector<8x8xf32>
    %56 = vector.extract_strided_slice %51 {offsets = [0, 0], sizes = [8, 32], strides = [1, 1]} : vector<32x32xf32> to vector<8x32xf32>
    %cst_18 = arith.constant dense<0.000000e+00> : vector<8x32xf32>
    %57 = tpu.matmul %55, %56, %cst_18 {dimension_numbers = #tpu.dot_dimension_numbers<[1], [0], [0], [1], [0, 0, 1, 1], [], []>} : vector<8x8xf32>, vector<8x32xf32>, vector<8x32xf32> -> vector<8x32xf32>
    %58 = vector.broadcast %53 : vector<1x32xf32> to vector<8x32xf32>
    %59 = arith.addf %58, %57 : vector<8x32xf32>
    %60 = vector.extract_strided_slice %49 {offsets = [1, 0, 0], sizes = [1, 8, 8], strides = [1, 1, 1]} : vector<4x8x8xf32> to vector<1x8x8xf32>
    %61 = vector.shape_cast %60 : vector<1x8x8xf32> to vector<8x8xf32>
    %62 = vector.extract_strided_slice %51 {offsets = [8, 0], sizes = [8, 32], strides = [1, 1]} : vector<32x32xf32> to vector<8x32xf32>
    %cst_19 = arith.constant dense<0.000000e+00> : vector<8x32xf32>
    %63 = tpu.matmul %61, %62, %cst_19 {dimension_numbers = #tpu.dot_dimension_numbers<[1], [0], [0], [1], [0, 0, 1, 1], [], []>} : vector<8x8xf32>, vector<8x32xf32>, vector<8x32xf32> -> vector<8x32xf32>
    %64 = arith.addf %59, %63 : vector<8x32xf32>
    %65 = vector.extract_strided_slice %49 {offsets = [2, 0, 0], sizes = [1, 8, 8], strides = [1, 1, 1]} : vector<4x8x8xf32> to vector<1x8x8xf32>
    %66 = vector.shape_cast %65 : vector<1x8x8xf32> to vector<8x8xf32>
    %67 = vector.extract_strided_slice %51 {offsets = [16, 0], sizes = [8, 32], strides = [1, 1]} : vector<32x32xf32> to vector<8x32xf32>
    %cst_20 = arith.constant dense<0.000000e+00> : vector<8x32xf32>
    %68 = tpu.matmul %66, %67, %cst_20 {dimension_numbers = #tpu.dot_dimension_numbers<[1], [0], [0], [1], [0, 0, 1, 1], [], []>} : vector<8x8xf32>, vector<8x32xf32>, vector<8x32xf32> -> vector<8x32xf32>
    %69 = arith.addf %64, %68 : vector<8x32xf32>
    %70 = vector.extract_strided_slice %49 {offsets = [3, 0, 0], sizes = [1, 8, 8], strides = [1, 1, 1]} : vector<4x8x8xf32> to vector<1x8x8xf32>
    %71 = vector.shape_cast %70 : vector<1x8x8xf32> to vector<8x8xf32>
    %72 = vector.extract_strided_slice %51 {offsets = [24, 0], sizes = [8, 32], strides = [1, 1]} : vector<32x32xf32> to vector<8x32xf32>
    %cst_21 = arith.constant dense<0.000000e+00> : vector<8x32xf32>
    %73 = tpu.matmul %71, %72, %cst_21 {dimension_numbers = #tpu.dot_dimension_numbers<[1], [0], [0], [1], [0, 0, 1, 1], [], []>} : vector<8x8xf32>, vector<8x32xf32>, vector<8x32xf32> -> vector<8x32xf32>
    %74 = arith.addf %69, %73 : vector<8x32xf32>
    %75 = arith.addf %0, %74 : vector<8x32xf32>
    %c0_22 = arith.constant 0 : index
    %c0_23 = arith.constant 0 : index
    %c0_24 = arith.constant 0 : index
    %76 = vector.load %arg6[%c0_22, %c0_23, %c0_24] : memref<2x1x32xf32, #tpu.memory_space<vmem>>, vector<1x1x32xf32>
    %77 = vector.shape_cast %76 : vector<1x1x32xf32> to vector<1x32xf32>
    %c0_25 = arith.constant 0 : index
    %c0_26 = arith.constant 0 : index
    %c0_27 = arith.constant 0 : index
    %78 = vector.load %arg7[%c0_25, %c0_26, %c0_27] : memref<2x1x32xf32, #tpu.memory_space<vmem>>, vector<1x1x32xf32>
    %79 = vector.shape_cast %78 : vector<1x1x32xf32> to vector<1x32xf32>
    %cst_28 = arith.constant dense<0.000000e+00> : vector<8xf32>
    %80 = vector.multi_reduction <add>, %75, %cst_28 [1] : vector<8x32xf32> to vector<8xf32>
    %81 = vector.shape_cast %80 : vector<8xf32> to vector<8x1xf32>
    %cst_29 = arith.constant 3.200000e+01 : f32
    %82 = vector.broadcast %cst_29 : f32 to vector<8x1xf32>
    %83 = arith.divf %81, %82 : vector<8x1xf32>
    %84 = vector.broadcast %83 : vector<8x1xf32> to vector<8x32xf32>
    %85 = arith.subf %75, %84 : vector<8x32xf32>
    %86 = arith.mulf %85, %85 : vector<8x32xf32>
    %cst_30 = arith.constant dense<0.000000e+00> : vector<8xf32>
    %87 = vector.multi_reduction <add>, %86, %cst_30 [1] : vector<8x32xf32> to vector<8xf32>
    %88 = vector.shape_cast %87 : vector<8xf32> to vector<8x1xf32>
    %cst_31 = arith.constant 3.200000e+01 : f32
    %89 = vector.broadcast %cst_31 : f32 to vector<8x1xf32>
    %90 = arith.divf %88, %89 : vector<8x1xf32>
    %cst_32 = arith.constant 9.99999974E-6 : f32
    %91 = vector.broadcast %cst_32 : f32 to vector<8x1xf32>
    %92 = arith.addf %90, %91 : vector<8x1xf32>
    %93 = math.rsqrt %92 : vector<8x1xf32>
    %94 = vector.broadcast %83 : vector<8x1xf32> to vector<8x32xf32>
    %95 = arith.subf %75, %94 : vector<8x32xf32>
    %96 = vector.broadcast %93 : vector<8x1xf32> to vector<8x32xf32>
    %97 = arith.mulf %95, %96 : vector<8x32xf32>
    %98 = vector.broadcast %77 : vector<1x32xf32> to vector<8x32xf32>
    %99 = arith.mulf %97, %98 : vector<8x32xf32>
    %100 = vector.broadcast %79 : vector<1x32xf32> to vector<8x32xf32>
    %101 = arith.addf %99, %100 : vector<8x32xf32>
    %c0_33 = arith.constant 0 : index
    %c0_34 = arith.constant 0 : index
    %c0_35 = arith.constant 0 : index
    %102 = vector.load %arg8[%c0_33, %c0_34, %c0_35] : memref<2x32x64xf32, #tpu.memory_space<vmem>>, vector<1x32x64xf32>
    %103 = vector.shape_cast %102 : vector<1x32x64xf32> to vector<32x64xf32>
    %cst_36 = arith.constant dense<0.000000e+00> : vector<8x64xf32>
    %104 = tpu.matmul %101, %103, %cst_36 {dimension_numbers = #tpu.dot_dimension_numbers<[1], [0], [0], [1], [0, 0, 1, 1], [], []>} : vector<8x32xf32>, vector<32x64xf32>, vector<8x64xf32> -> vector<8x64xf32>
    %c0_37 = arith.constant 0 : index
    %c0_38 = arith.constant 0 : index
    %c0_39 = arith.constant 0 : index
    %105 = vector.load %arg9[%c0_37, %c0_38, %c0_39] : memref<2x1x64xf32, #tpu.memory_space<vmem>>, vector<1x1x64xf32>
    %106 = vector.shape_cast %105 : vector<1x1x64xf32> to vector<1x64xf32>
    %107 = vector.broadcast %106 : vector<1x64xf32> to vector<8x64xf32>
    %108 = arith.addf %104, %107 : vector<8x64xf32>
    %cst_40 = arith.constant 0.000000e+00 : f32
    %109 = vector.broadcast %cst_40 : f32 to vector<8x64xf32>
    %110 = arith.cmpf oge, %108, %109 : vector<8x64xf32>
    %cst_41 = arith.constant 0.00999999977 : f32
    %111 = vector.broadcast %cst_41 : f32 to vector<8x64xf32>
    %112 = arith.mulf %111, %108 : vector<8x64xf32>
    %113 = arith.select %110, %108, %112 : vector<8x64xi1>, vector<8x64xf32>
    %c0_42 = arith.constant 0 : index
    %c0_43 = arith.constant 0 : index
    %c0_44 = arith.constant 0 : index
    %114 = vector.load %arg10[%c0_42, %c0_43, %c0_44] : memref<2x64x32xf32, #tpu.memory_space<vmem>>, vector<1x64x32xf32>
    %115 = vector.shape_cast %114 : vector<1x64x32xf32> to vector<64x32xf32>
    %cst_45 = arith.constant dense<0.000000e+00> : vector<8x32xf32>
    %116 = tpu.matmul %113, %115, %cst_45 {dimension_numbers = #tpu.dot_dimension_numbers<[1], [0], [0], [1], [0, 0, 1, 1], [], []>} : vector<8x64xf32>, vector<64x32xf32>, vector<8x32xf32> -> vector<8x32xf32>
    %c0_46 = arith.constant 0 : index
    %c0_47 = arith.constant 0 : index
    %c0_48 = arith.constant 0 : index
    %117 = vector.load %arg11[%c0_46, %c0_47, %c0_48] : memref<2x1x32xf32, #tpu.memory_space<vmem>>, vector<1x1x32xf32>
    %118 = vector.shape_cast %117 : vector<1x1x32xf32> to vector<1x32xf32>
    %119 = vector.broadcast %118 : vector<1x32xf32> to vector<8x32xf32>
    %120 = arith.addf %116, %119 : vector<8x32xf32>
    %121 = arith.addf %101, %120 : vector<8x32xf32>
    %c0_49 = arith.constant 0 : index
    %c0_50 = arith.constant 0 : index
    %c0_51 = arith.constant 0 : index
    %122 = vector.load %arg12[%c0_49, %c0_50, %c0_51] : memref<2x1x32xf32, #tpu.memory_space<vmem>>, vector<1x1x32xf32>
    %123 = vector.shape_cast %122 : vector<1x1x32xf32> to vector<1x32xf32>
    %c0_52 = arith.constant 0 : index
    %c0_53 = arith.constant 0 : index
    %c0_54 = arith.constant 0 : index
    %124 = vector.load %arg13[%c0_52, %c0_53, %c0_54] : memref<2x1x32xf32, #tpu.memory_space<vmem>>, vector<1x1x32xf32>
    %125 = vector.shape_cast %124 : vector<1x1x32xf32> to vector<1x32xf32>
    %cst_55 = arith.constant dense<0.000000e+00> : vector<8xf32>
    %126 = vector.multi_reduction <add>, %121, %cst_55 [1] : vector<8x32xf32> to vector<8xf32>
    %127 = vector.shape_cast %126 : vector<8xf32> to vector<8x1xf32>
    %cst_56 = arith.constant 3.200000e+01 : f32
    %128 = vector.broadcast %cst_56 : f32 to vector<8x1xf32>
    %129 = arith.divf %127, %128 : vector<8x1xf32>
    %130 = vector.broadcast %129 : vector<8x1xf32> to vector<8x32xf32>
    %131 = arith.subf %121, %130 : vector<8x32xf32>
    %132 = arith.mulf %131, %131 : vector<8x32xf32>
    %cst_57 = arith.constant dense<0.000000e+00> : vector<8xf32>
    %133 = vector.multi_reduction <add>, %132, %cst_57 [1] : vector<8x32xf32> to vector<8xf32>
    %134 = vector.shape_cast %133 : vector<8xf32> to vector<8x1xf32>
    %cst_58 = arith.constant 3.200000e+01 : f32
    %135 = vector.broadcast %cst_58 : f32 to vector<8x1xf32>
    %136 = arith.divf %134, %135 : vector<8x1xf32>
    %cst_59 = arith.constant 9.99999974E-6 : f32
    %137 = vector.broadcast %cst_59 : f32 to vector<8x1xf32>
    %138 = arith.addf %136, %137 : vector<8x1xf32>
    %139 = math.rsqrt %138 : vector<8x1xf32>
    %140 = vector.broadcast %129 : vector<8x1xf32> to vector<8x32xf32>
    %141 = arith.subf %121, %140 : vector<8x32xf32>
    %142 = vector.broadcast %139 : vector<8x1xf32> to vector<8x32xf32>
    %143 = arith.mulf %141, %142 : vector<8x32xf32>
    %144 = vector.broadcast %123 : vector<1x32xf32> to vector<8x32xf32>
    %145 = arith.mulf %143, %144 : vector<8x32xf32>
    %146 = vector.broadcast %125 : vector<1x32xf32> to vector<8x32xf32>
    %147 = arith.addf %145, %146 : vector<8x32xf32>
    %c1 = arith.constant 1 : index
    %c0_60 = arith.constant 0 : index
    %c0_61 = arith.constant 0 : index
    %148 = vector.load %arg2[%c1, %c0_60, %c0_61] : memref<2x32x96xf32, #tpu.memory_space<vmem>>, vector<1x32x96xf32>
    %149 = vector.shape_cast %148 : vector<1x32x96xf32> to vector<32x96xf32>
    %cst_62 = arith.constant dense<0.000000e+00> : vector<8x96xf32>
    %150 = tpu.matmul %147, %149, %cst_62 {dimension_numbers = #tpu.dot_dimension_numbers<[1], [0], [0], [1], [0, 0, 1, 1], [], []>} : vector<8x32xf32>, vector<32x96xf32>, vector<8x96xf32> -> vector<8x96xf32>
    %c1_63 = arith.constant 1 : index
    %c0_64 = arith.constant 0 : index
    %c0_65 = arith.constant 0 : index
    %151 = vector.load %arg3[%c1_63, %c0_64, %c0_65] : memref<2x1x96xf32, #tpu.memory_space<vmem>>, vector<1x1x96xf32>
    %152 = vector.shape_cast %151 : vector<1x1x96xf32> to vector<1x96xf32>
    %153 = vector.broadcast %152 : vector<1x96xf32> to vector<8x96xf32>
    %154 = arith.addf %150, %153 : vector<8x96xf32>
    %155 = vector.extract_strided_slice %154 {offsets = [0, 0], sizes = [8, 8], strides = [1, 1]} : vector<8x96xf32> to vector<8x8xf32>
    %156 = vector.extract_strided_slice %154 {offsets = [0, 8], sizes = [8, 8], strides = [1, 1]} : vector<8x96xf32> to vector<8x8xf32>
    %157 = vector.extract_strided_slice %154 {offsets = [0, 16], sizes = [8, 8], strides = [1, 1]} : vector<8x96xf32> to vector<8x8xf32>
    %158 = vector.extract_strided_slice %154 {offsets = [0, 24], sizes = [8, 8], strides = [1, 1]} : vector<8x96xf32> to vector<8x8xf32>
    %159 = vector.extract_strided_slice %154 {offsets = [0, 32], sizes = [8, 8], strides = [1, 1]} : vector<8x96xf32> to vector<8x8xf32>
    %160 = vector.extract_strided_slice %154 {offsets = [0, 40], sizes = [8, 8], strides = [1, 1]} : vector<8x96xf32> to vector<8x8xf32>
    %161 = vector.extract_strided_slice %154 {offsets = [0, 48], sizes = [8, 8], strides = [1, 1]} : vector<8x96xf32> to vector<8x8xf32>
    %162 = vector.extract_strided_slice %154 {offsets = [0, 56], sizes = [8, 8], strides = [1, 1]} : vector<8x96xf32> to vector<8x8xf32>
    %163 = vector.extract_strided_slice %154 {offsets = [0, 64], sizes = [8, 8], strides = [1, 1]} : vector<8x96xf32> to vector<8x8xf32>
    %164 = vector.extract_strided_slice %154 {offsets = [0, 72], sizes = [8, 8], strides = [1, 1]} : vector<8x96xf32> to vector<8x8xf32>
    %165 = vector.extract_strided_slice %154 {offsets = [0, 80], sizes = [8, 8], strides = [1, 1]} : vector<8x96xf32> to vector<8x8xf32>
    %166 = vector.extract_strided_slice %154 {offsets = [0, 88], sizes = [8, 8], strides = [1, 1]} : vector<8x96xf32> to vector<8x8xf32>
    %167 = vector.shape_cast %155 : vector<8x8xf32> to vector<1x8x8xf32>
    %168 = vector.shape_cast %156 : vector<8x8xf32> to vector<1x8x8xf32>
    %169 = vector.shape_cast %157 : vector<8x8xf32> to vector<1x8x8xf32>
    %170 = vector.shape_cast %158 : vector<8x8xf32> to vector<1x8x8xf32>
    %171 = vector.shape_cast %159 : vector<8x8xf32> to vector<1x8x8xf32>
    %172 = vector.shape_cast %160 : vector<8x8xf32> to vector<1x8x8xf32>
    %173 = vector.shape_cast %161 : vector<8x8xf32> to vector<1x8x8xf32>
    %174 = vector.shape_cast %162 : vector<8x8xf32> to vector<1x8x8xf32>
    %175 = vector.shape_cast %163 : vector<8x8xf32> to vector<1x8x8xf32>
    %176 = vector.shape_cast %164 : vector<8x8xf32> to vector<1x8x8xf32>
    %177 = vector.shape_cast %165 : vector<8x8xf32> to vector<1x8x8xf32>
    %178 = vector.shape_cast %166 : vector<8x8xf32> to vector<1x8x8xf32>
    %179 = tpu.concatenate %167, %168, %169, %170, %171, %172, %173, %174, %175, %176, %177, %178 in 0 : vector<1x8x8xf32>, vector<1x8x8xf32>, vector<1x8x8xf32>, vector<1x8x8xf32>, vector<1x8x8xf32>, vector<1x8x8xf32>, vector<1x8x8xf32>, vector<1x8x8xf32>, vector<1x8x8xf32>, vector<1x8x8xf32>, vector<1x8x8xf32>, vector<1x8x8xf32> -> vector<12x8x8xf32>
    %180 = vector.extract_strided_slice %179 {offsets = [0, 0, 0], sizes = [4, 8, 8], strides = [1, 1, 1]} : vector<12x8x8xf32> to vector<4x8x8xf32>
    %181 = vector.extract_strided_slice %179 {offsets = [4, 0, 0], sizes = [4, 8, 8], strides = [1, 1, 1]} : vector<12x8x8xf32> to vector<4x8x8xf32>
    %182 = vector.extract_strided_slice %179 {offsets = [8, 0, 0], sizes = [4, 8, 8], strides = [1, 1, 1]} : vector<12x8x8xf32> to vector<4x8x8xf32>
    "tpu.trace_start"() <{level = 10 : i32, message = "hqd,hkd->hqk"}> : () -> ()
    %cst_66 = arith.constant dense<0.000000e+00> : vector<4x8x8xf32>
    %183 = tpu.matmul %180, %181, %cst_66 {dimension_numbers = #tpu.dot_dimension_numbers<[2], [2], [1], [1], [0, 0, 0, 1, 1, 1], [0], [0]>} : vector<4x8x8xf32>, vector<4x8x8xf32>, vector<4x8x8xf32> -> vector<4x8x8xf32>
    "tpu.trace_stop"() : () -> ()
    %cst_67 = arith.constant 0.353553385 : f32
    %184 = vector.broadcast %cst_67 : f32 to vector<4x8x8xf32>
    %185 = arith.mulf %183, %184 : vector<4x8x8xf32>
    %cst_68 = arith.constant dense<0xFF800000> : vector<4x8xf32>
    %186 = vector.multi_reduction <maximumf>, %185, %cst_68 [2] : vector<4x8x8xf32> to vector<4x8xf32>
    %187 = vector.shape_cast %186 : vector<4x8xf32> to vector<4x8x1xf32>
    %188 = vector.broadcast %187 : vector<4x8x1xf32> to vector<4x8x8xf32>
    %189 = arith.subf %185, %188 : vector<4x8x8xf32>
    %190 = math.exp %189 : vector<4x8x8xf32>
    %cst_69 = arith.constant dense<0.000000e+00> : vector<4x8xf32>
    %191 = vector.multi_reduction <add>, %190, %cst_69 [2] : vector<4x8x8xf32> to vector<4x8xf32>
    %192 = vector.shape_cast %191 : vector<4x8xf32> to vector<4x8x1xf32>
    %193 = tpu.reciprocal %192 {approx = true} : vector<4x8x1xf32> -> vector<4x8x1xf32>
    %194 = vector.broadcast %193 : vector<4x8x1xf32> to vector<4x8x8xf32>
    %195 = arith.mulf %190, %194 : vector<4x8x8xf32>
    "tpu.trace_start"() <{level = 10 : i32, message = "hqk,hkd->hqd"}> : () -> ()
    %cst_70 = arith.constant dense<0.000000e+00> : vector<4x8x8xf32>
    %196 = tpu.matmul %195, %182, %cst_70 {dimension_numbers = #tpu.dot_dimension_numbers<[2], [1], [1], [2], [0, 0, 0, 1, 1, 2], [0], [0]>} : vector<4x8x8xf32>, vector<4x8x8xf32>, vector<4x8x8xf32> -> vector<4x8x8xf32>
    "tpu.trace_stop"() : () -> ()
    %c1_71 = arith.constant 1 : index
    %c0_72 = arith.constant 0 : index
    %c0_73 = arith.constant 0 : index
    %197 = vector.load %arg4[%c1_71, %c0_72, %c0_73] : memref<2x32x32xf32, #tpu.memory_space<vmem>>, vector<1x32x32xf32>
    %198 = vector.shape_cast %197 : vector<1x32x32xf32> to vector<32x32xf32>
    %c1_74 = arith.constant 1 : index
    %c0_75 = arith.constant 0 : index
    %c0_76 = arith.constant 0 : index
    %199 = vector.load %arg5[%c1_74, %c0_75, %c0_76] : memref<2x1x32xf32, #tpu.memory_space<vmem>>, vector<1x1x32xf32>
    %200 = vector.shape_cast %199 : vector<1x1x32xf32> to vector<1x32xf32>
    %201 = vector.extract_strided_slice %196 {offsets = [0, 0, 0], sizes = [1, 8, 8], strides = [1, 1, 1]} : vector<4x8x8xf32> to vector<1x8x8xf32>
    %202 = vector.shape_cast %201 : vector<1x8x8xf32> to vector<8x8xf32>
    %203 = vector.extract_strided_slice %198 {offsets = [0, 0], sizes = [8, 32], strides = [1, 1]} : vector<32x32xf32> to vector<8x32xf32>
    %cst_77 = arith.constant dense<0.000000e+00> : vector<8x32xf32>
    %204 = tpu.matmul %202, %203, %cst_77 {dimension_numbers = #tpu.dot_dimension_numbers<[1], [0], [0], [1], [0, 0, 1, 1], [], []>} : vector<8x8xf32>, vector<8x32xf32>, vector<8x32xf32> -> vector<8x32xf32>
    %205 = vector.broadcast %200 : vector<1x32xf32> to vector<8x32xf32>
    %206 = arith.addf %205, %204 : vector<8x32xf32>
    %207 = vector.extract_strided_slice %196 {offsets = [1, 0, 0], sizes = [1, 8, 8], strides = [1, 1, 1]} : vector<4x8x8xf32> to vector<1x8x8xf32>
    %208 = vector.shape_cast %207 : vector<1x8x8xf32> to vector<8x8xf32>
    %209 = vector.extract_strided_slice %198 {offsets = [8, 0], sizes = [8, 32], strides = [1, 1]} : vector<32x32xf32> to vector<8x32xf32>
    %cst_78 = arith.constant dense<0.000000e+00> : vector<8x32xf32>
    %210 = tpu.matmul %208, %209, %cst_78 {dimension_numbers = #tpu.dot_dimension_numbers<[1], [0], [0], [1], [0, 0, 1, 1], [], []>} : vector<8x8xf32>, vector<8x32xf32>, vector<8x32xf32> -> vector<8x32xf32>
    %211 = arith.addf %206, %210 : vector<8x32xf32>
    %212 = vector.extract_strided_slice %196 {offsets = [2, 0, 0], sizes = [1, 8, 8], strides = [1, 1, 1]} : vector<4x8x8xf32> to vector<1x8x8xf32>
    %213 = vector.shape_cast %212 : vector<1x8x8xf32> to vector<8x8xf32>
    %214 = vector.extract_strided_slice %198 {offsets = [16, 0], sizes = [8, 32], strides = [1, 1]} : vector<32x32xf32> to vector<8x32xf32>
    %cst_79 = arith.constant dense<0.000000e+00> : vector<8x32xf32>
    %215 = tpu.matmul %213, %214, %cst_79 {dimension_numbers = #tpu.dot_dimension_numbers<[1], [0], [0], [1], [0, 0, 1, 1], [], []>} : vector<8x8xf32>, vector<8x32xf32>, vector<8x32xf32> -> vector<8x32xf32>
    %216 = arith.addf %211, %215 : vector<8x32xf32>
    %217 = vector.extract_strided_slice %196 {offsets = [3, 0, 0], sizes = [1, 8, 8], strides = [1, 1, 1]} : vector<4x8x8xf32> to vector<1x8x8xf32>
    %218 = vector.shape_cast %217 : vector<1x8x8xf32> to vector<8x8xf32>
    %219 = vector.extract_strided_slice %198 {offsets = [24, 0], sizes = [8, 32], strides = [1, 1]} : vector<32x32xf32> to vector<8x32xf32>
    %cst_80 = arith.constant dense<0.000000e+00> : vector<8x32xf32>
    %220 = tpu.matmul %218, %219, %cst_80 {dimension_numbers = #tpu.dot_dimension_numbers<[1], [0], [0], [1], [0, 0, 1, 1], [], []>} : vector<8x8xf32>, vector<8x32xf32>, vector<8x32xf32> -> vector<8x32xf32>
    %221 = arith.addf %216, %220 : vector<8x32xf32>
    %222 = arith.addf %147, %221 : vector<8x32xf32>
    %c1_81 = arith.constant 1 : index
    %c0_82 = arith.constant 0 : index
    %c0_83 = arith.constant 0 : index
    %223 = vector.load %arg6[%c1_81, %c0_82, %c0_83] : memref<2x1x32xf32, #tpu.memory_space<vmem>>, vector<1x1x32xf32>
    %224 = vector.shape_cast %223 : vector<1x1x32xf32> to vector<1x32xf32>
    %c1_84 = arith.constant 1 : index
    %c0_85 = arith.constant 0 : index
    %c0_86 = arith.constant 0 : index
    %225 = vector.load %arg7[%c1_84, %c0_85, %c0_86] : memref<2x1x32xf32, #tpu.memory_space<vmem>>, vector<1x1x32xf32>
    %226 = vector.shape_cast %225 : vector<1x1x32xf32> to vector<1x32xf32>
    %cst_87 = arith.constant dense<0.000000e+00> : vector<8xf32>
    %227 = vector.multi_reduction <add>, %222, %cst_87 [1] : vector<8x32xf32> to vector<8xf32>
    %228 = vector.shape_cast %227 : vector<8xf32> to vector<8x1xf32>
    %cst_88 = arith.constant 3.200000e+01 : f32
    %229 = vector.broadcast %cst_88 : f32 to vector<8x1xf32>
    %230 = arith.divf %228, %229 : vector<8x1xf32>
    %231 = vector.broadcast %230 : vector<8x1xf32> to vector<8x32xf32>
    %232 = arith.subf %222, %231 : vector<8x32xf32>
    %233 = arith.mulf %232, %232 : vector<8x32xf32>
    %cst_89 = arith.constant dense<0.000000e+00> : vector<8xf32>
    %234 = vector.multi_reduction <add>, %233, %cst_89 [1] : vector<8x32xf32> to vector<8xf32>
    %235 = vector.shape_cast %234 : vector<8xf32> to vector<8x1xf32>
    %cst_90 = arith.constant 3.200000e+01 : f32
    %236 = vector.broadcast %cst_90 : f32 to vector<8x1xf32>
    %237 = arith.divf %235, %236 : vector<8x1xf32>
    %cst_91 = arith.constant 9.99999974E-6 : f32
    %238 = vector.broadcast %cst_91 : f32 to vector<8x1xf32>
    %239 = arith.addf %237, %238 : vector<8x1xf32>
    %240 = math.rsqrt %239 : vector<8x1xf32>
    %241 = vector.broadcast %230 : vector<8x1xf32> to vector<8x32xf32>
    %242 = arith.subf %222, %241 : vector<8x32xf32>
    %243 = vector.broadcast %240 : vector<8x1xf32> to vector<8x32xf32>
    %244 = arith.mulf %242, %243 : vector<8x32xf32>
    %245 = vector.broadcast %224 : vector<1x32xf32> to vector<8x32xf32>
    %246 = arith.mulf %244, %245 : vector<8x32xf32>
    %247 = vector.broadcast %226 : vector<1x32xf32> to vector<8x32xf32>
    %248 = arith.addf %246, %247 : vector<8x32xf32>
    %c1_92 = arith.constant 1 : index
    %c0_93 = arith.constant 0 : index
    %c0_94 = arith.constant 0 : index
    %249 = vector.load %arg8[%c1_92, %c0_93, %c0_94] : memref<2x32x64xf32, #tpu.memory_space<vmem>>, vector<1x32x64xf32>
    %250 = vector.shape_cast %249 : vector<1x32x64xf32> to vector<32x64xf32>
    %cst_95 = arith.constant dense<0.000000e+00> : vector<8x64xf32>
    %251 = tpu.matmul %248, %250, %cst_95 {dimension_numbers = #tpu.dot_dimension_numbers<[1], [0], [0], [1], [0, 0, 1, 1], [], []>} : vector<8x32xf32>, vector<32x64xf32>, vector<8x64xf32> -> vector<8x64xf32>
    %c1_96 = arith.constant 1 : index
    %c0_97 = arith.constant 0 : index
    %c0_98 = arith.constant 0 : index
    %252 = vector.load %arg9[%c1_96, %c0_97, %c0_98] : memref<2x1x64xf32, #tpu.memory_space<vmem>>, vector<1x1x64xf32>
    %253 = vector.shape_cast %252 : vector<1x1x64xf32> to vector<1x64xf32>
    %254 = vector.broadcast %253 : vector<1x64xf32> to vector<8x64xf32>
    %255 = arith.addf %251, %254 : vector<8x64xf32>
    %cst_99 = arith.constant 0.000000e+00 : f32
    %256 = vector.broadcast %cst_99 : f32 to vector<8x64xf32>
    %257 = arith.cmpf oge, %255, %256 : vector<8x64xf32>
    %cst_100 = arith.constant 0.00999999977 : f32
    %258 = vector.broadcast %cst_100 : f32 to vector<8x64xf32>
    %259 = arith.mulf %258, %255 : vector<8x64xf32>
    %260 = arith.select %257, %255, %259 : vector<8x64xi1>, vector<8x64xf32>
    %c1_101 = arith.constant 1 : index
    %c0_102 = arith.constant 0 : index
    %c0_103 = arith.constant 0 : index
    %261 = vector.load %arg10[%c1_101, %c0_102, %c0_103] : memref<2x64x32xf32, #tpu.memory_space<vmem>>, vector<1x64x32xf32>
    %262 = vector.shape_cast %261 : vector<1x64x32xf32> to vector<64x32xf32>
    %cst_104 = arith.constant dense<0.000000e+00> : vector<8x32xf32>
    %263 = tpu.matmul %260, %262, %cst_104 {dimension_numbers = #tpu.dot_dimension_numbers<[1], [0], [0], [1], [0, 0, 1, 1], [], []>} : vector<8x64xf32>, vector<64x32xf32>, vector<8x32xf32> -> vector<8x32xf32>
    %c1_105 = arith.constant 1 : index
    %c0_106 = arith.constant 0 : index
    %c0_107 = arith.constant 0 : index
    %264 = vector.load %arg11[%c1_105, %c0_106, %c0_107] : memref<2x1x32xf32, #tpu.memory_space<vmem>>, vector<1x1x32xf32>
    %265 = vector.shape_cast %264 : vector<1x1x32xf32> to vector<1x32xf32>
    %266 = vector.broadcast %265 : vector<1x32xf32> to vector<8x32xf32>
    %267 = arith.addf %263, %266 : vector<8x32xf32>
    %268 = arith.addf %248, %267 : vector<8x32xf32>
    %c1_108 = arith.constant 1 : index
    %c0_109 = arith.constant 0 : index
    %c0_110 = arith.constant 0 : index
    %269 = vector.load %arg12[%c1_108, %c0_109, %c0_110] : memref<2x1x32xf32, #tpu.memory_space<vmem>>, vector<1x1x32xf32>
    %270 = vector.shape_cast %269 : vector<1x1x32xf32> to vector<1x32xf32>
    %c1_111 = arith.constant 1 : index
    %c0_112 = arith.constant 0 : index
    %c0_113 = arith.constant 0 : index
    %271 = vector.load %arg13[%c1_111, %c0_112, %c0_113] : memref<2x1x32xf32, #tpu.memory_space<vmem>>, vector<1x1x32xf32>
    %272 = vector.shape_cast %271 : vector<1x1x32xf32> to vector<1x32xf32>
    %cst_114 = arith.constant dense<0.000000e+00> : vector<8xf32>
    %273 = vector.multi_reduction <add>, %268, %cst_114 [1] : vector<8x32xf32> to vector<8xf32>
    %274 = vector.shape_cast %273 : vector<8xf32> to vector<8x1xf32>
    %cst_115 = arith.constant 3.200000e+01 : f32
    %275 = vector.broadcast %cst_115 : f32 to vector<8x1xf32>
    %276 = arith.divf %274, %275 : vector<8x1xf32>
    %277 = vector.broadcast %276 : vector<8x1xf32> to vector<8x32xf32>
    %278 = arith.subf %268, %277 : vector<8x32xf32>
    %279 = arith.mulf %278, %278 : vector<8x32xf32>
    %cst_116 = arith.constant dense<0.000000e+00> : vector<8xf32>
    %280 = vector.multi_reduction <add>, %279, %cst_116 [1] : vector<8x32xf32> to vector<8xf32>
    %281 = vector.shape_cast %280 : vector<8xf32> to vector<8x1xf32>
    %cst_117 = arith.constant 3.200000e+01 : f32
    %282 = vector.broadcast %cst_117 : f32 to vector<8x1xf32>
    %283 = arith.divf %281, %282 : vector<8x1xf32>
    %cst_118 = arith.constant 9.99999974E-6 : f32
    %284 = vector.broadcast %cst_118 : f32 to vector<8x1xf32>
    %285 = arith.addf %283, %284 : vector<8x1xf32>
    %286 = math.rsqrt %285 : vector<8x1xf32>
    %287 = vector.broadcast %276 : vector<8x1xf32> to vector<8x32xf32>
    %288 = arith.subf %268, %287 : vector<8x32xf32>
    %289 = vector.broadcast %286 : vector<8x1xf32> to vector<8x32xf32>
    %290 = arith.mulf %288, %289 : vector<8x32xf32>
    %291 = vector.broadcast %270 : vector<1x32xf32> to vector<8x32xf32>
    %292 = arith.mulf %290, %291 : vector<8x32xf32>
    %293 = vector.broadcast %272 : vector<1x32xf32> to vector<8x32xf32>
    %294 = arith.addf %292, %293 : vector<8x32xf32>
    %c0_119 = arith.constant 0 : index
    %c0_120 = arith.constant 0 : index
    %295 = vector.load %arg14[%c0_119, %c0_120] : memref<8x32xf32, #tpu.memory_space<vmem>>, vector<8x32xf32>
    tpu.vector_store %arg14[%c0_119, %c0_120], %294 {strides = array<i32>} : memref<8x32xf32, #tpu.memory_space<vmem>>, vector<8x32xf32>,
    return
  }
  func.func @transform_0(%arg0: i32) -> (i32, i32) {
    %c0_i32 = arith.constant 0 : i32
    %c0_i32_0 = arith.constant 0 : i32
    return %arg0, %c0_i32 : i32, i32
  }
  func.func @transform_1(%arg0: i32) -> (i32, i32, i32) {
    %c0_i32 = arith.constant 0 : i32
    %c0_i32_0 = arith.constant 0 : i32
    %c0_i32_1 = arith.constant 0 : i32
    %c0_i32_2 = arith.constant 0 : i32
    return %c0_i32, %c0_i32_0, %c0_i32_1 : i32, i32, i32
  }
  func.func @transform_2(%arg0: i32) -> (i32, i32, i32) {
    %c0_i32 = arith.constant 0 : i32
    %c0_i32_0 = arith.constant 0 : i32
    %c0_i32_1 = arith.constant 0 : i32
    %c0_i32_2 = arith.constant 0 : i32
    return %c0_i32, %c0_i32_0, %c0_i32_1 : i32, i32, i32
  }
  func.func @transform_3(%arg0: i32) -> (i32, i32, i32) {
    %c0_i32 = arith.constant 0 : i32
    %c0_i32_0 = arith.constant 0 : i32
    %c0_i32_1 = arith.constant 0 : i32
    %c0_i32_2 = arith.constant 0 : i32
    return %c0_i32, %c0_i32_0, %c0_i32_1 : i32, i32, i32
  }
  func.func @transform_4(%arg0: i32) -> (i32, i32, i32) {
    %c0_i32 = arith.constant 0 : i32
    %c0_i32_0 = arith.constant 0 : i32
    %c0_i32_1 = arith.constant 0 : i32
    %c0_i32_2 = arith.constant 0 : i32
    return %c0_i32, %c0_i32_0, %c0_i32_1 : i32, i32, i32
  }
  func.func @transform_5(%arg0: i32) -> (i32, i32, i32) {
    %c0_i32 = arith.constant 0 : i32
    %c0_i32_0 = arith.constant 0 : i32
    %c0_i32_1 = arith.constant 0 : i32
    %c0_i32_2 = arith.constant 0 : i32
    return %c0_i32, %c0_i32_0, %c0_i32_1 : i32, i32, i32
  }
  func.func @transform_6(%arg0: i32) -> (i32, i32, i32) {
    %c0_i32 = arith.constant 0 : i32
    %c0_i32_0 = arith.constant 0 : i32
    %c0_i32_1 = arith.constant 0 : i32
    %c0_i32_2 = arith.constant 0 : i32
    return %c0_i32, %c0_i32_0, %c0_i32_1 : i32, i32, i32
  }
  func.func @transform_7(%arg0: i32) -> (i32, i32, i32) {
    %c0_i32 = arith.constant 0 : i32
    %c0_i32_0 = arith.constant 0 : i32
    %c0_i32_1 = arith.constant 0 : i32
    %c0_i32_2 = arith.constant 0 : i32
    return %c0_i32, %c0_i32_0, %c0_i32_1 : i32, i32, i32
  }
  func.func @transform_8(%arg0: i32) -> (i32, i32, i32) {
    %c0_i32 = arith.constant 0 : i32
    %c0_i32_0 = arith.constant 0 : i32
    %c0_i32_1 = arith.constant 0 : i32
    %c0_i32_2 = arith.constant 0 : i32
    return %c0_i32, %c0_i32_0, %c0_i32_1 : i32, i32, i32
  }
  func.func @transform_9(%arg0: i32) -> (i32, i32, i32) {
    %c0_i32 = arith.constant 0 : i32
    %c0_i32_0 = arith.constant 0 : i32
    %c0_i32_1 = arith.constant 0 : i32
    %c0_i32_2 = arith.constant 0 : i32
    return %c0_i32, %c0_i32_0, %c0_i32_1 : i32, i32, i32
  }
  func.func @transform_10(%arg0: i32) -> (i32, i32, i32) {
    %c0_i32 = arith.constant 0 : i32
    %c0_i32_0 = arith.constant 0 : i32
    %c0_i32_1 = arith.constant 0 : i32
    %c0_i32_2 = arith.constant 0 : i32
    return %c0_i32, %c0_i32_0, %c0_i32_1 : i32, i32, i32
  }
  func.func @transform_11(%arg0: i32) -> (i32, i32, i32) {
    %c0_i32 = arith.constant 0 : i32
    %c0_i32_0 = arith.constant 0 : i32
    %c0_i32_1 = arith.constant 0 : i32
    %c0_i32_2 = arith.constant 0 : i32
    return %c0_i32, %c0_i32_0, %c0_i32_1 : i32, i32, i32
  }
  func.func @transform_12(%arg0: i32) -> (i32, i32, i32) {
    %c0_i32 = arith.constant 0 : i32
    %c0_i32_0 = arith.constant 0 : i32
    %c0_i32_1 = arith.constant 0 : i32
    %c0_i32_2 = arith.constant 0 : i32
    return %c0_i32, %c0_i32_0, %c0_i32_1 : i32, i32, i32
  }
  func.func @transform_13(%arg0: i32) -> (i32, i32) {
    %c0_i32 = arith.constant 0 : i32
    %c0_i32_0 = arith.constant 0 : i32
    return %arg0, %c0_i32 : i32, i32
  }
}

</mosaic_0001>

<llo_original>
// kernel: tpu_custom_call.1
$region0: #{tpu_custom_call.1}
  #allocation0 [shape = 'u32[]', space=smem, size = 0x4, offset = 0x4, fixed_abs, tag = 'smem constant byte address 0x4 - core index']
  #allocation1 [shape = 'u32[144,128]{1,0:T(1,128)}', space=vmem, size = 0x12000, scoped, tag = 'internal scratch']
  %s0 = inlined_call_operand.hbm [shape: f32[16,32], index: 0, kind: input, shape index: {}]
  %s1 = inlined_call_operand.vmem [shape: f32[2,32,96], index: 1, kind: input, shape index: {}]
  %s2 = inlined_call_operand.vmem [shape: f32[2,1,96], index: 2, kind: input, shape index: {}]
  %s3 = inlined_call_operand.vmem [shape: f32[2,32,32], index: 3, kind: input, shape index: {}]
  %s4 = inlined_call_operand.vmem [shape: f32[2,1,32], index: 4, kind: input, shape index: {}]
  %s5 = inlined_call_operand.vmem [shape: f32[2,1,32], index: 5, kind: input, shape index: {}]
  %s6 = inlined_call_operand.vmem [shape: f32[2,1,32], index: 6, kind: input, shape index: {}]
  %s7 = inlined_call_operand.vmem [shape: f32[2,32,64], index: 7, kind: input, shape index: {}]
  %s8 = inlined_call_operand.vmem [shape: f32[2,1,64], index: 8, kind: input, shape index: {}]
  %s9 = inlined_call_operand.vmem [shape: f32[2,64,32], index: 9, kind: input, shape index: {}]
  %s10 = inlined_call_operand.vmem [shape: f32[2,1,32], index: 10, kind: input, shape index: {}]
  %s11 = inlined_call_operand.vmem [shape: f32[2,1,32], index: 11, kind: input, shape index: {}]
  %s12 = inlined_call_operand.vmem [shape: f32[2,1,32], index: 12, kind: input, shape index: {}]
  %s13 = inlined_call_operand.hbm [shape: f32[16,32], index: 13, kind: output, shape index: {}]
  %s14 = sld [smem:[#allocation0]]
  $region89: #{tpu_custom_call.1} parent=0
    _
  %s16 = ssub.s32 1, %s14
  %s17 = scalar_select 0, %s16, %s14
  $region1: #{tpu_custom_call.1} parent=0
    #allocation2 [shape = 'u8[8192]{0}', space=vmem, size = 0x2000, scoped, tag = 'input window, operand 0']
    #allocation3 [shape = 's32[2]{0}', space=sflag, size = 0x8, scoped, tag = 'scoped memory for tpu_custom_call.1']
    #allocation4 [shape = 's32[2]{0}', space=sflag, size = 0x8, scoped, tag = 'scoped memory for tpu_custom_call.1']
    #allocation5 [shape = 'u8[8192]{0}', space=vmem, size = 0x2000, scoped, tag = 'output window, operand 0']
    %18 = vsyncpa [#allocation3], 0
    %s19 = scalar_lea.sflag [#allocation3], 1
    %20 = vsyncpa %s19, 0
    %21 = vsyncpa [#allocation4], 0
    %s22 = scalar_lea.sflag [#allocation4], 1
    %23 = vsyncpa %s22, 0
    loop: start=0, step=1, limit=4
    $region2: #{tpu_custom_call.1} parent=1 // loop_pre_header
      _
    $region3: #{tpu_custom_call.1} parent=1 // loop_header
      %s25 = sphi 0, %s29
      %p26 = scmp.ge.s32.totalorder %s25, 4
      %s35 = sphi 0, %s37
      %s38 = sphi 0, %s35
      %s39 = sphi 0, %s38
      %s55 = sphi 0, %s39
      %s59 = sphi 0, %s59
      %s61 = sphi 0, %s59
      %s62 = sphi 0, %s61
      %s76 = sphi 0, %s62
      %s80 = sphi 0, %s80
      %s82 = sphi 0, %s80
      %s83 = sphi 0, %s82
      %s97 = sphi 0, %s83
      %s101 = sphi 0, %s101
      %s103 = sphi 0, %s101
      %s104 = sphi 0, %s103
      %s118 = sphi 0, %s104
      %s122 = sphi 0, %s122
      %s124 = sphi 0, %s122
      %s125 = sphi 0, %s124
      %s139 = sphi 0, %s125
      %s143 = sphi 0, %s143
      %s145 = sphi 0, %s143
      %s146 = sphi 0, %s145
      %s160 = sphi 0, %s146
      %s164 = sphi 0, %s164
      %s166 = sphi 0, %s164
      %s167 = sphi 0, %s166
      %s181 = sphi 0, %s167
      %s185 = sphi 0, %s185
      %s187 = sphi 0, %s185
      %s188 = sphi 0, %s187
      %s202 = sphi 0, %s188
      %s206 = sphi 0, %s206
      %s208 = sphi 0, %s206
      %s209 = sphi 0, %s208
      %s223 = sphi 0, %s209
      %s227 = sphi 0, %s227
      %s229 = sphi 0, %s227
      %s230 = sphi 0, %s229
      %s244 = sphi 0, %s230
      %s248 = sphi 0, %s248
      %s250 = sphi 0, %s248
      %s251 = sphi 0, %s250
      %s265 = sphi 0, %s251
      %s269 = sphi 0, %s269
      %s271 = sphi 0, %s269
      %s272 = sphi 0, %s271
      %s286 = sphi 0, %s272
      %s290 = sphi 0, %s290
      %s292 = sphi 0, %s290
      %s293 = sphi 0, %s292
      %s307 = sphi 0, %s293
      %s313 = sphi 0, %s315
      %s316 = sphi 0, %s313
      %s317 = sphi 0, %s316
      %s333 = sphi 0, %s317
    $region4: #{tpu_custom_call.1} parent=1 // loop_header_branch
      %28 = sbr.rel (%p26) target = $region8
    $region5: #{tpu_custom_call.1} parent=1 // loop_body
      %s30 = ssub.s32 %s25, 1
      %s31 = ssub.s32 %s25, 2
      %s32 = sadd.s32 %s25, 1
      %s33 = ssub.s32 %s25, %s32
      %p34 = scmp.eq.s32.totalorder %s33, 0
      %s36 = sadd.s32 %s35, 1
      %s37 = scalar_select %p34, %s35, %s36
      %p40 = pneg %p34
      %p41 = scmp.eq.s32.totalorder %s25, 1
      %p42 = por %p40, %p41
      %p43 = scmp.ne.s32.totalorder %s35, %s38
      %p44 = scmp.eq.s32.totalorder %s25, 0
      %p45 = por %p43, %p44
      %p46 = scmp.ne.s32.totalorder %s35, %s38
      %p47 = scmp.eq.s32.totalorder %s30, 1
      %p48 = por %p46, %p47
      %p49 = scmp.ne.s32.totalorder %s38, %s39
      %p50 = scmp.eq.s32.totalorder %s30, 0
      %p51 = por %p49, %p50
      %p52 = scmp.ne.s32.totalorder %s38, %s39
      %p53 = scmp.eq.s32.totalorder %s31, 1
      %p54 = por %p52, %p53
      %p56 = scmp.ne.s32.totalorder %s39, %s55
      %p57 = scmp.eq.s32.totalorder %s31, 0
      %p58 = por %p56, %p57
      %s60 = sadd.s32 %s59, 1
      %p63 = scmp.eq.s32.totalorder %s25, 1
      %p64 = scmp.ne.s32.totalorder %s59, %s61
      %p65 = scmp.eq.s32.totalorder %s25, 0
      %p66 = por %p64, %p65
      %p67 = scmp.ne.s32.totalorder %s59, %s61
      %p68 = scmp.eq.s32.totalorder %s30, 1
      %p69 = por %p67, %p68
      %p70 = scmp.ne.s32.totalorder %s61, %s62
      %p71 = scmp.eq.s32.totalorder %s30, 0
      %p72 = por %p70, %p71
      %p73 = scmp.ne.s32.totalorder %s61, %s62
      %p74 = scmp.eq.s32.totalorder %s31, 1
      %p75 = por %p73, %p74
      %p77 = scmp.ne.s32.totalorder %s62, %s76
      %p78 = scmp.eq.s32.totalorder %s31, 0
      %p79 = por %p77, %p78
      %s81 = sadd.s32 %s80, 1
      %p84 = scmp.eq.s32.totalorder %s25, 1
      %p85 = scmp.ne.s32.totalorder %s80, %s82
      %p86 = scmp.eq.s32.totalorder %s25, 0
      %p87 = por %p85, %p86
      %p88 = scmp.ne.s32.totalorder %s80, %s82
      %p89 = scmp.eq.s32.totalorder %s30, 1
      %p90 = por %p88, %p89
      %p91 = scmp.ne.s32.totalorder %s82, %s83
      %p92 = scmp.eq.s32.totalorder %s30, 0
      %p93 = por %p91, %p92
      %p94 = scmp.ne.s32.totalorder %s82, %s83
      %p95 = scmp.eq.s32.totalorder %s31, 1
      %p96 = por %p94, %p95
      %p98 = scmp.ne.s32.totalorder %s83, %s97
      %p99 = scmp.eq.s32.totalorder %s31, 0
      %p100 = por %p98, %p99
      %s102 = sadd.s32 %s101, 1
      %p105 = scmp.eq.s32.totalorder %s25, 1
      %p106 = scmp.ne.s32.totalorder %s101, %s103
      %p107 = scmp.eq.s32.totalorder %s25, 0
      %p108 = por %p106, %p107
      %p109 = scmp.ne.s32.totalorder %s101, %s103
      %p110 = scmp.eq.s32.totalorder %s30, 1
      %p111 = por %p109, %p110
      %p112 = scmp.ne.s32.totalorder %s103, %s104
      %p113 = scmp.eq.s32.totalorder %s30, 0
      %p114 = por %p112, %p113
      %p115 = scmp.ne.s32.totalorder %s103, %s104
      %p116 = scmp.eq.s32.totalorder %s31, 1
      %p117 = por %p115, %p116
      %p119 = scmp.ne.s32.totalorder %s104, %s118
      %p120 = scmp.eq.s32.totalorder %s31, 0
      %p121 = por %p119, %p120
      %s123 = sadd.s32 %s122, 1
      %p126 = scmp.eq.s32.totalorder %s25, 1
      %p127 = scmp.ne.s32.totalorder %s122, %s124
      %p128 = scmp.eq.s32.totalorder %s25, 0
      %p129 = por %p127, %p128
      %p130 = scmp.ne.s32.totalorder %s122, %s124
      %p131 = scmp.eq.s32.totalorder %s30, 1
      %p132 = por %p130, %p131
      %p133 = scmp.ne.s32.totalorder %s124, %s125
      %p134 = scmp.eq.s32.totalorder %s30, 0
      %p135 = por %p133, %p134
      %p136 = scmp.ne.s32.totalorder %s124, %s125
      %p137 = scmp.eq.s32.totalorder %s31, 1
      %p138 = por %p136, %p137
      %p140 = scmp.ne.s32.totalorder %s125, %s139
      %p141 = scmp.eq.s32.totalorder %s31, 0
      %p142 = por %p140, %p141
      %s144 = sadd.s32 %s143, 1
      %p147 = scmp.eq.s32.totalorder %s25, 1
      %p148 = scmp.ne.s32.totalorder %s143, %s145
      %p149 = scmp.eq.s32.totalorder %s25, 0
      %p150 = por %p148, %p149
      %p151 = scmp.ne.s32.totalorder %s143, %s145
      %p152 = scmp.eq.s32.totalorder %s30, 1
      %p153 = por %p151, %p152
      %p154 = scmp.ne.s32.totalorder %s145, %s146
      %p155 = scmp.eq.s32.totalorder %s30, 0
      %p156 = por %p154, %p155
      %p157 = scmp.ne.s32.totalorder %s145, %s146
      %p158 = scmp.eq.s32.totalorder %s31, 1
      %p159 = por %p157, %p158
      %p161 = scmp.ne.s32.totalorder %s146, %s160
      %p162 = scmp.eq.s32.totalorder %s31, 0
      %p163 = por %p161, %p162
      %s165 = sadd.s32 %s164, 1
      %p168 = scmp.eq.s32.totalorder %s25, 1
      %p169 = scmp.ne.s32.totalorder %s164, %s166
      %p170 = scmp.eq.s32.totalorder %s25, 0
      %p171 = por %p169, %p170
      %p172 = scmp.ne.s32.totalorder %s164, %s166
      %p173 = scmp.eq.s32.totalorder %s30, 1
      %p174 = por %p172, %p173
      %p175 = scmp.ne.s32.totalorder %s166, %s167
      %p176 = scmp.eq.s32.totalorder %s30, 0
      %p177 = por %p175, %p176
      %p178 = scmp.ne.s32.totalorder %s166, %s167
      %p179 = scmp.eq.s32.totalorder %s31, 1
      %p180 = por %p178, %p179
      %p182 = scmp.ne.s32.totalorder %s167, %s181
      %p183 = scmp.eq.s32.totalorder %s31, 0
      %p184 = por %p182, %p183
      %s186 = sadd.s32 %s185, 1
      %p189 = scmp.eq.s32.totalorder %s25, 1
      %p190 = scmp.ne.s32.totalorder %s185, %s187
      %p191 = scmp.eq.s32.totalorder %s25, 0
      %p192 = por %p190, %p191
      %p193 = scmp.ne.s32.totalorder %s185, %s187
      %p194 = scmp.eq.s32.totalorder %s30, 1
      %p195 = por %p193, %p194
      %p196 = scmp.ne.s32.totalorder %s187, %s188
      %p197 = scmp.eq.s32.totalorder %s30, 0
      %p198 = por %p196, %p197
      %p199 = scmp.ne.s32.totalorder %s187, %s188
      %p200 = scmp.eq.s32.totalorder %s31, 1
      %p201 = por %p199, %p200
      %p203 = scmp.ne.s32.totalorder %s188, %s202
      %p204 = scmp.eq.s32.totalorder %s31, 0
      %p205 = por %p203, %p204
      %s207 = sadd.s32 %s206, 1
      %p210 = scmp.eq.s32.totalorder %s25, 1
      %p211 = scmp.ne.s32.totalorder %s206, %s208
      %p212 = scmp.eq.s32.totalorder %s25, 0
      %p213 = por %p211, %p212
      %p214 = scmp.ne.s32.totalorder %s206, %s208
      %p215 = scmp.eq.s32.totalorder %s30, 1
      %p216 = por %p214, %p215
      %p217 = scmp.ne.s32.totalorder %s208, %s209
      %p218 = scmp.eq.s32.totalorder %s30, 0
      %p219 = por %p217, %p218
      %p220 = scmp.ne.s32.totalorder %s208, %s209
      %p221 = scmp.eq.s32.totalorder %s31, 1
      %p222 = por %p220, %p221
      %p224 = scmp.ne.s32.totalorder %s209, %s223
      %p225 = scmp.eq.s32.totalorder %s31, 0
      %p226 = por %p224, %p225
      %s228 = sadd.s32 %s227, 1
      %p231 = scmp.eq.s32.totalorder %s25, 1
      %p232 = scmp.ne.s32.totalorder %s227, %s229
      %p233 = scmp.eq.s32.totalorder %s25, 0
      %p234 = por %p232, %p233
      %p235 = scmp.ne.s32.totalorder %s227, %s229
      %p236 = scmp.eq.s32.totalorder %s30, 1
      %p237 = por %p235, %p236
      %p238 = scmp.ne.s32.totalorder %s229, %s230
      %p239 = scmp.eq.s32.totalorder %s30, 0
      %p240 = por %p238, %p239
      %p241 = scmp.ne.s32.totalorder %s229, %s230
      %p242 = scmp.eq.s32.totalorder %s31, 1
      %p243 = por %p241, %p242
      %p245 = scmp.ne.s32.totalorder %s230, %s244
      %p246 = scmp.eq.s32.totalorder %s31, 0
      %p247 = por %p245, %p246
      %s249 = sadd.s32 %s248, 1
      %p252 = scmp.eq.s32.totalorder %s25, 1
      %p253 = scmp.ne.s32.totalorder %s248, %s250
      %p254 = scmp.eq.s32.totalorder %s25, 0
      %p255 = por %p253, %p254
      %p256 = scmp.ne.s32.totalorder %s248, %s250
      %p257 = scmp.eq.s32.totalorder %s30, 1
      %p258 = por %p256, %p257
      %p259 = scmp.ne.s32.totalorder %s250, %s251
      %p260 = scmp.eq.s32.totalorder %s30, 0
      %p261 = por %p259, %p260
      %p262 = scmp.ne.s32.totalorder %s250, %s251
      %p263 = scmp.eq.s32.totalorder %s31, 1
      %p264 = por %p262, %p263
      %p266 = scmp.ne.s32.totalorder %s251, %s265
      %p267 = scmp.eq.s32.totalorder %s31, 0
      %p268 = por %p266, %p267
      %s270 = sadd.s32 %s269, 1
      %p273 = scmp.eq.s32.totalorder %s25, 1
      %p274 = scmp.ne.s32.totalorder %s269, %s271
      %p275 = scmp.eq.s32.totalorder %s25, 0
      %p276 = por %p274, %p275
      %p277 = scmp.ne.s32.totalorder %s269, %s271
      %p278 = scmp.eq.s32.totalorder %s30, 1
      %p279 = por %p277, %p278
      %p280 = scmp.ne.s32.totalorder %s271, %s272
      %p281 = scmp.eq.s32.totalorder %s30, 0
      %p282 = por %p280, %p281
      %p283 = scmp.ne.s32.totalorder %s271, %s272
      %p284 = scmp.eq.s32.totalorder %s31, 1
      %p285 = por %p283, %p284
      %p287 = scmp.ne.s32.totalorder %s272, %s286
      %p288 = scmp.eq.s32.totalorder %s31, 0
      %p289 = por %p287, %p288
      %s291 = sadd.s32 %s290, 1
      %p294 = scmp.eq.s32.totalorder %s25, 1
      %p295 = scmp.ne.s32.totalorder %s290, %s292
      %p296 = scmp.eq.s32.totalorder %s25, 0
      %p297 = por %p295, %p296
      %p298 = scmp.ne.s32.totalorder %s290, %s292
      %p299 = scmp.eq.s32.totalorder %s30, 1
      %p300 = por %p298, %p299
      %p301 = scmp.ne.s32.totalorder %s292, %s293
      %p302 = scmp.eq.s32.totalorder %s30, 0
      %p303 = por %p301, %p302
      %p304 = scmp.ne.s32.totalorder %s292, %s293
      %p305 = scmp.eq.s32.totalorder %s31, 1
      %p306 = por %p304, %p305
      %p308 = scmp.ne.s32.totalorder %s293, %s307
      %p309 = scmp.eq.s32.totalorder %s31, 0
      %p310 = por %p308, %p309
      %s311 = ssub.s32 %s25, %s32
      %p312 = scmp.eq.s32.totalorder %s311, 0
      %s314 = sadd.s32 %s313, 1
      %s315 = scalar_select %p312, %s313, %s314
      %p318 = pneg %p312
      %p319 = scmp.eq.s32.totalorder %s25, 1
      %p320 = por %p318, %p319
      %p321 = scmp.ne.s32.totalorder %s313, %s316
      %p322 = scmp.eq.s32.totalorder %s25, 0
      %p323 = por %p321, %p322
      %p324 = scmp.ne.s32.totalorder %s313, %s316
      %p325 = scmp.eq.s32.totalorder %s30, 1
      %p326 = por %p324, %p325
      %p327 = scmp.ne.s32.totalorder %s316, %s317
      %p328 = scmp.eq.s32.totalorder %s30, 0
      %p329 = por %p327, %p328
      %p330 = scmp.ne.s32.totalorder %s316, %s317
      %p331 = scmp.eq.s32.totalorder %s31, 1
      %p332 = por %p330, %p331
      %p334 = scmp.ne.s32.totalorder %s317, %s333
      %p335 = scmp.eq.s32.totalorder %s31, 0
      %p336 = por %p334, %p335
      %p337 = scmp.le.s32.totalorder 1, %s25
      %p338 = scmp.lt.s32.totalorder %s25, 3
      %p339 = pnand %p337, %p338
      %p340 = pneg %p339
      // Predicated region
      $region9: #{tpu_custom_call.1} parent=5 // pred_check
        _
      $region10: #{tpu_custom_call.1} parent=5 // pred_check_branch
        %342 = sbr.rel (%p339) target = $region12
      $region11: #{tpu_custom_call.1} parent=5 // pred_region
        %s343 = ssub.s32 %s25, 1
        // Predicated region
        $region13: #{tpu_custom_call.1} parent=11 // pred_check
          %p344 = pneg %p72
        $region14: #{tpu_custom_call.1} parent=11 // pred_check_branch
          %346 = sbr.rel (%p344) target = $region16
        $region15: #{tpu_custom_call.1} parent=11 // pred_region
          _
        $region16: #{tpu_custom_call.1} parent=11 // pred_fallthru
          _
        // Predicated region
        $region17: #{tpu_custom_call.1} parent=11 // pred_check
          %p347 = pneg %p93
        $region18: #{tpu_custom_call.1} parent=11 // pred_check_branch
          %349 = sbr.rel (%p347) target = $region20
        $region19: #{tpu_custom_call.1} parent=11 // pred_region
          _
        $region20: #{tpu_custom_call.1} parent=11 // pred_fallthru
          _
        // Predicated region
        $region21: #{tpu_custom_call.1} parent=11 // pred_check
          %p350 = pneg %p114
        $region22: #{tpu_custom_call.1} parent=11 // pred_check_branch
          %352 = sbr.rel (%p350) target = $region24
        $region23: #{tpu_custom_call.1} parent=11 // pred_region
          _
        $region24: #{tpu_custom_call.1} parent=11 // pred_fallthru
          _
        // Predicated region
        $region25: #{tpu_custom_call.1} parent=11 // pred_check
          %p353 = pneg %p135
        $region26: #{tpu_custom_call.1} parent=11 // pred_check_branch
          %355 = sbr.rel (%p353) target = $region28
        $region27: #{tpu_custom_call.1} parent=11 // pred_region
          _
        $region28: #{tpu_custom_call.1} parent=11 // pred_fallthru
          _
        // Predicated region
        $region29: #{tpu_custom_call.1} parent=11 // pred_check
          %p356 = pneg %p156
        $region30: #{tpu_custom_call.1} parent=11 // pred_check_branch
          %358 = sbr.rel (%p356) target = $region32
        $region31: #{tpu_custom_call.1} parent=11 // pred_region
          _
        $region32: #{tpu_custom_call.1} parent=11 // pred_fallthru
          _
        // Predicated region
        $region33: #{tpu_custom_call.1} parent=11 // pred_check
          %p359 = pneg %p177
        $region34: #{tpu_custom_call.1} parent=11 // pred_check_branch
          %361 = sbr.rel (%p359) target = $region36
        $region35: #{tpu_custom_call.1} parent=11 // pred_region
          _
        $region36: #{tpu_custom_call.1} parent=11 // pred_fallthru
          _
        // Predicated region
        $region37: #{tpu_custom_call.1} parent=11 // pred_check
          %p362 = pneg %p198
        $region38: #{tpu_custom_call.1} parent=11 // pred_check_branch
          %364 = sbr.rel (%p362) target = $region40
        $region39: #{tpu_custom_call.1} parent=11 // pred_region
          _
        $region40: #{tpu_custom_call.1} parent=11 // pred_fallthru
          _
        // Predicated region
        $region41: #{tpu_custom_call.1} parent=11 // pred_check
          %p365 = pneg %p219
        $region42: #{tpu_custom_call.1} parent=11 // pred_check_branch
          %367 = sbr.rel (%p365) target = $region44
        $region43: #{tpu_custom_call.1} parent=11 // pred_region
          _
        $region44: #{tpu_custom_call.1} parent=11 // pred_fallthru
          _
        // Predicated region
        $region45: #{tpu_custom_call.1} parent=11 // pred_check
          %p368 = pneg %p240
        $region46: #{tpu_custom_call.1} parent=11 // pred_check_branch
          %370 = sbr.rel (%p368) target = $region48
        $region47: #{tpu_custom_call.1} parent=11 // pred_region
          _
        $region48: #{tpu_custom_call.1} parent=11 // pred_fallthru
          _
        // Predicated region
        $region49: #{tpu_custom_call.1} parent=11 // pred_check
          %p371 = pneg %p261
        $region50: #{tpu_custom_call.1} parent=11 // pred_check_branch
          %373 = sbr.rel (%p371) target = $region52
        $region51: #{tpu_custom_call.1} parent=11 // pred_region
          _
        $region52: #{tpu_custom_call.1} parent=11 // pred_fallthru
          _
        // Predicated region
        $region53: #{tpu_custom_call.1} parent=11 // pred_check
          %p374 = pneg %p282
        $region54: #{tpu_custom_call.1} parent=11 // pred_check_branch
          %376 = sbr.rel (%p374) target = $region56
        $region55: #{tpu_custom_call.1} parent=11 // pred_region
          _
        $region56: #{tpu_custom_call.1} parent=11 // pred_fallthru
          _
        // Predicated region
        $region57: #{tpu_custom_call.1} parent=11 // pred_check
          %p377 = pneg %p303
        $region58: #{tpu_custom_call.1} parent=11 // pred_check_branch
          %379 = sbr.rel (%p377) target = $region60
        $region59: #{tpu_custom_call.1} parent=11 // pred_region
          _
        $region60: #{tpu_custom_call.1} parent=11 // pred_fallthru
          _
      $region12: #{tpu_custom_call.1} parent=5 // pred_fallthru
        _
      %p380 = scmp.lt.s32.totalorder %s25, 2
      // Predicated region
      $region61: #{tpu_custom_call.1} parent=5 // pred_check
        %p381 = pneg %p380
      $region62: #{tpu_custom_call.1} parent=5 // pred_check_branch
        %383 = sbr.rel (%p381) target = $region64
      $region63: #{tpu_custom_call.1} parent=5 // pred_region
        // Predicated region
        $region65: #{tpu_custom_call.1} parent=63 // pred_check
          %p384 = pneg %p45
        $region66: #{tpu_custom_call.1} parent=63 // pred_check_branch
          %386 = sbr.rel (%p384) target = $region68
        $region67: #{tpu_custom_call.1} parent=63 // pred_region
          %s387 = sand.u32 %s35, 1
          %s388 = scalar_lea.sflag [#allocation3], %s387
          %s389 = sand.u32 %s35, 1
          %s390 = smul.addr %s389, 8
          %s391 = scalar_lea.vmem [#allocation2], %s390
          %s393 = ssub.s32 128, 128
          %394 = vsyncadd %s388, %s393
          %s395 = smul.addr %s25, 128
          %s396 = scalar_lea.hbm %s0, %s395
          %s398 = sshll.u32 %s391, 4
          %s399 = int_to_ptr.vmem [resolvable:$true] %s398
          %401 = dma.hbm_to_vmem [thread:$0]  %s396, 128, %s399, %s388
        $region68: #{tpu_custom_call.1} parent=63 // pred_fallthru
          _
      $region64: #{tpu_custom_call.1} parent=5 // pred_fallthru
        _
      %p402 = scmp.le.s32.totalorder 1, %s25
      %p403 = scmp.lt.s32.totalorder %s25, 3
      %p404 = pnand %p402, %p403
      %p405 = pneg %p404
      // Predicated region
      $region69: #{tpu_custom_call.1} parent=5 // pred_check
        _
      $region70: #{tpu_custom_call.1} parent=5 // pred_check_branch
        %407 = sbr.rel (%p404) target = $region72
      $region71: #{tpu_custom_call.1} parent=5 // pred_region
        %s408 = ssub.s32 %s25, 1
        %s409 = sand.u32 %s38, 1
        %s410 = scalar_lea.sflag [#allocation3], %s409
        %s411 = sand.u32 %s38, 1
        %s412 = smul.addr %s411, 8
        %s413 = scalar_lea.vmem [#allocation2], %s412
        // Predicated region
        $region73: #{tpu_custom_call.1} parent=71 // pred_check
          %p414 = pneg %p51
        $region74: #{tpu_custom_call.1} parent=71 // pred_check_branch
          %416 = sbr.rel (%p414) target = $region76
        $region75: #{tpu_custom_call.1} parent=71 // pred_region
          %417 = dma.done %s410, 128
        $region76: #{tpu_custom_call.1} parent=71 // pred_fallthru
          _
        %s418 = sand.u32 %s38, 1
        %s419 = scalar_lea.sflag [#allocation3], %s418
        %s420 = sand.u32 %s38, 1
        %s421 = smul.addr %s420, 8
        %s422 = scalar_lea.vmem [#allocation2], %s421
        %p423 = pneg %p51
        %p424 = pneg %p48
        %p425 = pneg %p72
        %p426 = pneg %p69
        %p427 = pneg %p93
        %p428 = pneg %p90
        %p429 = pneg %p114
        %p430 = pneg %p111
        %p431 = pneg %p135
        %p432 = pneg %p132
        %p433 = pneg %p156
        %p434 = pneg %p153
        %p435 = pneg %p177
        %p436 = pneg %p174
        %p437 = pneg %p198
        %p438 = pneg %p195
        %p439 = pneg %p219
        %p440 = pneg %p216
        %p441 = pneg %p240
        %p442 = pneg %p237
        %p443 = pneg %p261
        %p444 = pneg %p258
        %p445 = pneg %p282
        %p446 = pneg %p279
        %p447 = pneg %p303
        %p448 = pneg %p300
        %p449 = pneg %p329
        %p450 = pneg %p326
        %s451 = sand.u32 %s316, 1
        %s452 = scalar_lea.sflag [#allocation4], %s451
        %s453 = sand.u32 %s316, 1
        %s454 = smul.addr %s453, 8
        %s455 = scalar_lea.vmem [#allocation5], %s454
        %v456 = vld [vmem:[%s413] sm:$0xff]
        %v457 = vld [vmem:[%s1] sm:$0xff]
        %v458 = vld [vmem:[%s1 + $0x8] sm:$0xff]
        %v459 = vld [vmem:[%s1 + $0x10] sm:$0xff]
        %v460 = vld [vmem:[%s1 + $0x18] sm:$0xff]
        %v461 = vld [vmem:[%s2] sm:$0x1]
        %v463 = vlaneseq
        %v464 = vshrl.u32 %v463, 7
        %v465 = vsub.s32 0, %v464
        %v466 = vrot.slane %v461, %v465
        %vm468 = vcmask 261120
        %v470 = vsel %vm468, %v456, 0
        %472 = vmatprep.subr.mxu0 0.0
        %473 = vmatpush1.msra.mxu0 0.0
        %474 = vmatprep.subr.mxu0 0.0
        %475 = vmatpush1.msra.mxu0 0.0
        %476 = vmatprep.subr.mxu0 0.0
        %477 = vmatpush1.msra.mxu0 0.0
        %478 = vmatprep.subr.mxu0 0.0
        %479 = vmatpush1.msra.mxu0 0.0
        %480 = vmatprep.subr.mxu0 0.0
        %481 = vmatpush1.msra.mxu0 0.0
        %482 = vmatprep.subr.mxu0 0.0
        %483 = vmatpush1.msra.mxu0 0.0
        %484 = vmatprep.subr.mxu0 0.0
        %485 = vmatpush1.msra.mxu0 0.0
        %486 = vmatprep.subr.mxu0 0.0
        %487 = vmatpush1.msra.mxu0 0.0
        %488 = vmatprep.subr.mxu0 0.0
        %489 = vmatpush1.msra.mxu0 0.0
        %490 = vmatprep.subr.mxu0 0.0
        %491 = vmatpush1.msra.mxu0 0.0
        %492 = vmatprep.subr.mxu0 0.0
        %493 = vmatpush1.msra.mxu0 0.0
        %494 = vmatprep.subr.mxu0 0.0
        %495 = vmatpush1.msra.mxu0 0.0
        %496 = vmatprep.subr.mxu0 0.0
        %497 = vmatpush1.msra.mxu0 %v460
        %498 = vmatprep.subr.mxu0 0.0
        %499 = vmatpush1.msra.mxu0 %v459
        %500 = vmatprep.subr.mxu0 0.0
        %501 = vmatpush1.msra.mxu0 %v458
        %502 = vmatprep.subr.mxu0 0.0
        %503 = vmatpush1.msra.mxu0 %v457
        %504 = vmatprep.subr.mxu0 0.0
        %505 = vmatpush2.msra.mxu0 0.0
        %506 = vmatprep.subr.mxu0 0.0
        %507 = vmatpush2.msra.mxu0 0.0
        %508 = vmatprep.subr.mxu0 0.0
        %509 = vmatpush2.msra.mxu0 0.0
        %510 = vmatprep.subr.mxu0 0.0
        %511 = vmatpush2.msra.mxu0 0.0
        %512 = vmatprep.subr.mxu0 0.0
        %513 = vmatpush2.msra.mxu0 0.0
        %514 = vmatprep.subr.mxu0 0.0
        %515 = vmatpush2.msra.mxu0 0.0
        %516 = vmatprep.subr.mxu0 0.0
        %517 = vmatpush2.msra.mxu0 0.0
        %518 = vmatprep.subr.mxu0 0.0
        %519 = vmatpush2.msra.mxu0 0.0
        %520 = vmatprep.subr.mxu0 0.0
        %521 = vmatpush2.msra.mxu0 0.0
        %522 = vmatprep.subr.mxu0 0.0
        %523 = vmatpush2.msra.mxu0 0.0
        %524 = vmatprep.subr.mxu0 0.0
        %525 = vmatpush2.msra.mxu0 0.0
        %526 = vmatprep.subr.mxu0 0.0
        %527 = vmatpush2.msra.mxu0 0.0
        %528 = vmatprep.subr.mxu0 0.0
        %529 = vmatpush2.msra.mxu0 0.0
        %530 = vmatprep.subr.mxu0 0.0
        %531 = vmatpush2.msra.mxu0 0.0
        %532 = vmatprep.subr.mxu0 0.0
        %533 = vmatpush2.msra.mxu0 0.0
        %534 = vmatprep.subr.mxu0 0.0
        %535 = vmatpush2.msra.mxu0 0.0
        %536 = vmatprep.mubr.f32.mxu0 0.0
        %537 = vmatmul.mubr.f32.gmra.mxu0 %v470
        %v538 = vpop.f32.mrf.mxu0
        %v539 = vadd.f32 %v466, %v538
        %v540 = vpop.f32.mrf.mxu0
        %541 = vdwg.mxu0
        %543 = vrot.lane.b32.xlu0 %v539, 120
        %v544 = vpop.permute.xlu0 %543
        %545 = vrot.lane.b32.xlu0 %v539, 112
        %v546 = vpop.permute.xlu0 %545
        %547 = vrot.lane.b32.xlu0 %v539, 104
        %v548 = vpop.permute.xlu0 %547
        %549 = vrot.lane.b32.xlu0 %v539, 96
        %v550 = vpop.permute.xlu0 %549
        %551 = vrot.lane.b32.xlu0 %v539, 88
        %v552 = vpop.permute.xlu0 %551
        %553 = vrot.lane.b32.xlu0 %v539, 80
        %v554 = vpop.permute.xlu0 %553
        %555 = vrot.lane.b32.xlu0 %v539, 72
        %v556 = vpop.permute.xlu0 %555
        %557 = vrot.lane.b32.xlu0 %v539, 64
        %v558 = vpop.permute.xlu0 %557
        %560 = vrot.lane.b32.xlu0 %v539, 56
        %v561 = vpop.permute.xlu0 %560
        %563 = vrot.lane.b32.xlu0 %v539, 48
        %v564 = vpop.permute.xlu0 %563
        %566 = vrot.lane.b32.xlu0 %v539, 40
        %v567 = vpop.permute.xlu0 %566
        %vm569 = vcmask 64512
        %v570 = vsel %vm569, %v539, 0
        %v572 = vsel %vm569, %v550, 0
        %574 = vmatprep.subr.mxu0 0.0
        %575 = vmatpush1.xpose.msra.mxu0 0.0
        %576 = vmatprep.subr.mxu0 0.0
        %577 = vmatpush1.xpose.msra.mxu0 0.0
        %578 = vmatprep.subr.mxu0 0.0
        %579 = vmatpush1.xpose.msra.mxu0 0.0
        %580 = vmatprep.subr.mxu0 0.0
        %581 = vmatpush1.xpose.msra.mxu0 0.0
        %582 = vmatprep.subr.mxu0 0.0
        %583 = vmatpush1.xpose.msra.mxu0 0.0
        %584 = vmatprep.subr.mxu0 0.0
        %585 = vmatpush1.xpose.msra.mxu0 0.0
        %586 = vmatprep.subr.mxu0 0.0
        %587 = vmatpush1.xpose.msra.mxu0 0.0
        %588 = vmatprep.subr.mxu0 0.0
        %589 = vmatpush1.xpose.msra.mxu0 0.0
        %590 = vmatprep.subr.mxu0 0.0
        %591 = vmatpush1.xpose.msra.mxu0 0.0
        %592 = vmatprep.subr.mxu0 0.0
        %593 = vmatpush1.xpose.msra.mxu0 0.0
        %594 = vmatprep.subr.mxu0 0.0
        %595 = vmatpush1.xpose.msra.mxu0 0.0
        %596 = vmatprep.subr.mxu0 0.0
        %597 = vmatpush1.xpose.msra.mxu0 0.0
        %598 = vmatprep.subr.mxu0 0.0
        %599 = vmatpush1.xpose.msra.mxu0 0.0
        %600 = vmatprep.subr.mxu0 0.0
        %601 = vmatpush1.xpose.msra.mxu0 0.0
        %602 = vmatprep.subr.mxu0 0.0
        %603 = vmatpush1.xpose.msra.mxu0 0.0
        %604 = vmatprep.subr.mxu0 0.0
        %605 = vmatpush1.xpose.msra.mxu0 %v572
        %606 = vmatprep.subr.mxu0 0.0
        %607 = vmatpush2.xpose.msra.mxu0 0.0
        %608 = vmatprep.subr.mxu0 0.0
        %609 = vmatpush2.xpose.msra.mxu0 0.0
        %610 = vmatprep.subr.mxu0 0.0
        %611 = vmatpush2.xpose.msra.mxu0 0.0
        %612 = vmatprep.subr.mxu0 0.0
        %613 = vmatpush2.xpose.msra.mxu0 0.0
        %614 = vmatprep.subr.mxu0 0.0
        %615 = vmatpush2.xpose.msra.mxu0 0.0
        %616 = vmatprep.subr.mxu0 0.0
        %617 = vmatpush2.xpose.msra.mxu0 0.0
        %618 = vmatprep.subr.mxu0 0.0
        %619 = vmatpush2.xpose.msra.mxu0 0.0
        %620 = vmatprep.subr.mxu0 0.0
        %621 = vmatpush2.xpose.msra.mxu0 0.0
        %622 = vmatprep.subr.mxu0 0.0
        %623 = vmatpush2.xpose.msra.mxu0 0.0
        %624 = vmatprep.subr.mxu0 0.0
        %625 = vmatpush2.xpose.msra.mxu0 0.0
        %626 = vmatprep.subr.mxu0 0.0
        %627 = vmatpush2.xpose.msra.mxu0 0.0
        %628 = vmatprep.subr.mxu0 0.0
        %629 = vmatpush2.xpose.msra.mxu0 0.0
        %630 = vmatprep.subr.mxu0 0.0
        %631 = vmatpush2.xpose.msra.mxu0 0.0
        %632 = vmatprep.subr.mxu0 0.0
        %633 = vmatpush2.xpose.msra.mxu0 0.0
        %634 = vmatprep.subr.mxu0 0.0
        %635 = vmatpush2.xpose.msra.mxu0 0.0
        %636 = vmatprep.subr.mxu0 0.0
        %637 = vmatpush2.xpose.msra.mxu0 0.0
        %638 = vmatprep.mubr.f32.mxu0 0.0
        %639 = vmatmul.mubr.f32.gmra.mxu0 %v570
        %v640 = vpop.f32.mrf.mxu0
        %v641 = vadd.f32 0.0, %v640
        %v642 = vpop.f32.mrf.mxu0
        %643 = vdwg.mxu0
        %v644 = vsel %vm569, %v544, 0
        %v646 = vsel %vm569, %v552, 0
        %648 = vmatprep.subr.mxu0 0.0
        %649 = vmatpush1.xpose.msra.mxu0 0.0
        %650 = vmatprep.subr.mxu0 0.0
        %651 = vmatpush1.xpose.msra.mxu0 0.0
        %652 = vmatprep.subr.mxu0 0.0
        %653 = vmatpush1.xpose.msra.mxu0 0.0
        %654 = vmatprep.subr.mxu0 0.0
        %655 = vmatpush1.xpose.msra.mxu0 0.0
        %656 = vmatprep.subr.mxu0 0.0
        %657 = vmatpush1.xpose.msra.mxu0 0.0
        %658 = vmatprep.subr.mxu0 0.0
        %659 = vmatpush1.xpose.msra.mxu0 0.0
        %660 = vmatprep.subr.mxu0 0.0
        %661 = vmatpush1.xpose.msra.mxu0 0.0
        %662 = vmatprep.subr.mxu0 0.0
        %663 = vmatpush1.xpose.msra.mxu0 0.0
        %664 = vmatprep.subr.mxu0 0.0
        %665 = vmatpush1.xpose.msra.mxu0 0.0
        %666 = vmatprep.subr.mxu0 0.0
        %667 = vmatpush1.xpose.msra.mxu0 0.0
        %668 = vmatprep.subr.mxu0 0.0
        %669 = vmatpush1.xpose.msra.mxu0 0.0
        %670 = vmatprep.subr.mxu0 0.0
        %671 = vmatpush1.xpose.msra.mxu0 0.0
        %672 = vmatprep.subr.mxu0 0.0
        %673 = vmatpush1.xpose.msra.mxu0 0.0
        %674 = vmatprep.subr.mxu0 0.0
        %675 = vmatpush1.xpose.msra.mxu0 0.0
        %676 = vmatprep.subr.mxu0 0.0
        %677 = vmatpush1.xpose.msra.mxu0 0.0
        %678 = vmatprep.subr.mxu0 0.0
        %679 = vmatpush1.xpose.msra.mxu0 %v646
        %680 = vmatprep.subr.mxu0 0.0
        %681 = vmatpush2.xpose.msra.mxu0 0.0
        %682 = vmatprep.subr.mxu0 0.0
        %683 = vmatpush2.xpose.msra.mxu0 0.0
        %684 = vmatprep.subr.mxu0 0.0
        %685 = vmatpush2.xpose.msra.mxu0 0.0
        %686 = vmatprep.subr.mxu0 0.0
        %687 = vmatpush2.xpose.msra.mxu0 0.0
        %688 = vmatprep.subr.mxu0 0.0
        %689 = vmatpush2.xpose.msra.mxu0 0.0
        %690 = vmatprep.subr.mxu0 0.0
        %691 = vmatpush2.xpose.msra.mxu0 0.0
        %692 = vmatprep.subr.mxu0 0.0
        %693 = vmatpush2.xpose.msra.mxu0 0.0
        %694 = vmatprep.subr.mxu0 0.0
        %695 = vmatpush2.xpose.msra.mxu0 0.0
        %696 = vmatprep.subr.mxu0 0.0
        %697 = vmatpush2.xpose.msra.mxu0 0.0
        %698 = vmatprep.subr.mxu0 0.0
        %699 = vmatpush2.xpose.msra.mxu0 0.0
        %700 = vmatprep.subr.mxu0 0.0
        %701 = vmatpush2.xpose.msra.mxu0 0.0
        %702 = vmatprep.subr.mxu0 0.0
        %703 = vmatpush2.xpose.msra.mxu0 0.0
        %704 = vmatprep.subr.mxu0 0.0
        %705 = vmatpush2.xpose.msra.mxu0 0.0
        %706 = vmatprep.subr.mxu0 0.0
        %707 = vmatpush2.xpose.msra.mxu0 0.0
        %708 = vmatprep.subr.mxu0 0.0
        %709 = vmatpush2.xpose.msra.mxu0 0.0
        %710 = vmatprep.subr.mxu0 0.0
        %711 = vmatpush2.xpose.msra.mxu0 0.0
        %712 = vmatprep.mubr.f32.mxu0 0.0
        %713 = vmatmul.mubr.f32.gmra.mxu0 %v644
        %v714 = vpop.f32.mrf.mxu0
        %v715 = vadd.f32 0.0, %v714
        %v716 = vpop.f32.mrf.mxu0
        %717 = vdwg.mxu0
        %v718 = vsel %vm569, %v546, 0
        %v720 = vsel %vm569, %v554, 0
        %722 = vmatprep.subr.mxu0 0.0
        %723 = vmatpush1.xpose.msra.mxu0 0.0
        %724 = vmatprep.subr.mxu0 0.0
        %725 = vmatpush1.xpose.msra.mxu0 0.0
        %726 = vmatprep.subr.mxu0 0.0
        %727 = vmatpush1.xpose.msra.mxu0 0.0
        %728 = vmatprep.subr.mxu0 0.0
        %729 = vmatpush1.xpose.msra.mxu0 0.0
        %730 = vmatprep.subr.mxu0 0.0
        %731 = vmatpush1.xpose.msra.mxu0 0.0
        %732 = vmatprep.subr.mxu0 0.0
        %733 = vmatpush1.xpose.msra.mxu0 0.0
        %734 = vmatprep.subr.mxu0 0.0
        %735 = vmatpush1.xpose.msra.mxu0 0.0
        %736 = vmatprep.subr.mxu0 0.0
        %737 = vmatpush1.xpose.msra.mxu0 0.0
        %738 = vmatprep.subr.mxu0 0.0
        %739 = vmatpush1.xpose.msra.mxu0 0.0
        %740 = vmatprep.subr.mxu0 0.0
        %741 = vmatpush1.xpose.msra.mxu0 0.0
        %742 = vmatprep.subr.mxu0 0.0
        %743 = vmatpush1.xpose.msra.mxu0 0.0
        %744 = vmatprep.subr.mxu0 0.0
        %745 = vmatpush1.xpose.msra.mxu0 0.0
        %746 = vmatprep.subr.mxu0 0.0
        %747 = vmatpush1.xpose.msra.mxu0 0.0
        %748 = vmatprep.subr.mxu0 0.0
        %749 = vmatpush1.xpose.msra.mxu0 0.0
        %750 = vmatprep.subr.mxu0 0.0
        %751 = vmatpush1.xpose.msra.mxu0 0.0
        %752 = vmatprep.subr.mxu0 0.0
        %753 = vmatpush1.xpose.msra.mxu0 %v720
        %754 = vmatprep.subr.mxu0 0.0
        %755 = vmatpush2.xpose.msra.mxu0 0.0
        %756 = vmatprep.subr.mxu0 0.0
        %757 = vmatpush2.xpose.msra.mxu0 0.0
        %758 = vmatprep.subr.mxu0 0.0
        %759 = vmatpush2.xpose.msra.mxu0 0.0
        %760 = vmatprep.subr.mxu0 0.0
        %761 = vmatpush2.xpose.msra.mxu0 0.0
        %762 = vmatprep.subr.mxu0 0.0
        %763 = vmatpush2.xpose.msra.mxu0 0.0
        %764 = vmatprep.subr.mxu0 0.0
        %765 = vmatpush2.xpose.msra.mxu0 0.0
        %766 = vmatprep.subr.mxu0 0.0
        %767 = vmatpush2.xpose.msra.mxu0 0.0
        %768 = vmatprep.subr.mxu0 0.0
        %769 = vmatpush2.xpose.msra.mxu0 0.0
        %770 = vmatprep.subr.mxu0 0.0
        %771 = vmatpush2.xpose.msra.mxu0 0.0
        %772 = vmatprep.subr.mxu0 0.0
        %773 = vmatpush2.xpose.msra.mxu0 0.0
        %774 = vmatprep.subr.mxu0 0.0
        %775 = vmatpush2.xpose.msra.mxu0 0.0
        %776 = vmatprep.subr.mxu0 0.0
        %777 = vmatpush2.xpose.msra.mxu0 0.0
        %778 = vmatprep.subr.mxu0 0.0
        %779 = vmatpush2.xpose.msra.mxu0 0.0
        %780 = vmatprep.subr.mxu0 0.0
        %781 = vmatpush2.xpose.msra.mxu0 0.0
        %782 = vmatprep.subr.mxu0 0.0
        %783 = vmatpush2.xpose.msra.mxu0 0.0
        %784 = vmatprep.subr.mxu0 0.0
        %785 = vmatpush2.xpose.msra.mxu0 0.0
        %786 = vmatprep.mubr.f32.mxu0 0.0
        %787 = vmatmul.mubr.f32.gmra.mxu0 %v718
        %v788 = vpop.f32.mrf.mxu0
        %v789 = vadd.f32 0.0, %v788
        %v790 = vpop.f32.mrf.mxu0
        %791 = vdwg.mxu0
        %v792 = vsel %vm569, %v548, 0
        %v794 = vsel %vm569, %v556, 0
        %796 = vmatprep.subr.mxu0 0.0
        %797 = vmatpush1.xpose.msra.mxu0 0.0
        %798 = vmatprep.subr.mxu0 0.0
        %799 = vmatpush1.xpose.msra.mxu0 0.0
        %800 = vmatprep.subr.mxu0 0.0
        %801 = vmatpush1.xpose.msra.mxu0 0.0
        %802 = vmatprep.subr.mxu0 0.0
        %803 = vmatpush1.xpose.msra.mxu0 0.0
        %804 = vmatprep.subr.mxu0 0.0
        %805 = vmatpush1.xpose.msra.mxu0 0.0
        %806 = vmatprep.subr.mxu0 0.0
        %807 = vmatpush1.xpose.msra.mxu0 0.0
        %808 = vmatprep.subr.mxu0 0.0
        %809 = vmatpush1.xpose.msra.mxu0 0.0
        %810 = vmatprep.subr.mxu0 0.0
        %811 = vmatpush1.xpose.msra.mxu0 0.0
        %812 = vmatprep.subr.mxu0 0.0
        %813 = vmatpush1.xpose.msra.mxu0 0.0
        %814 = vmatprep.subr.mxu0 0.0
        %815 = vmatpush1.xpose.msra.mxu0 0.0
        %816 = vmatprep.subr.mxu0 0.0
        %817 = vmatpush1.xpose.msra.mxu0 0.0
        %818 = vmatprep.subr.mxu0 0.0
        %819 = vmatpush1.xpose.msra.mxu0 0.0
        %820 = vmatprep.subr.mxu0 0.0
        %821 = vmatpush1.xpose.msra.mxu0 0.0
        %822 = vmatprep.subr.mxu0 0.0
        %823 = vmatpush1.xpose.msra.mxu0 0.0
        %824 = vmatprep.subr.mxu0 0.0
        %825 = vmatpush1.xpose.msra.mxu0 0.0
        %826 = vmatprep.subr.mxu0 0.0
        %827 = vmatpush1.xpose.msra.mxu0 %v794
        %828 = vmatprep.subr.mxu0 0.0
        %829 = vmatpush2.xpose.msra.mxu0 0.0
        %830 = vmatprep.subr.mxu0 0.0
        %831 = vmatpush2.xpose.msra.mxu0 0.0
        %832 = vmatprep.subr.mxu0 0.0
        %833 = vmatpush2.xpose.msra.mxu0 0.0
        %834 = vmatprep.subr.mxu0 0.0
        %835 = vmatpush2.xpose.msra.mxu0 0.0
        %836 = vmatprep.subr.mxu0 0.0
        %837 = vmatpush2.xpose.msra.mxu0 0.0
        %838 = vmatprep.subr.mxu0 0.0
        %839 = vmatpush2.xpose.msra.mxu0 0.0
        %840 = vmatprep.subr.mxu0 0.0
        %841 = vmatpush2.xpose.msra.mxu0 0.0
        %842 = vmatprep.subr.mxu0 0.0
        %843 = vmatpush2.xpose.msra.mxu0 0.0
        %844 = vmatprep.subr.mxu0 0.0
        %845 = vmatpush2.xpose.msra.mxu0 0.0
        %846 = vmatprep.subr.mxu0 0.0
        %847 = vmatpush2.xpose.msra.mxu0 0.0
        %848 = vmatprep.subr.mxu0 0.0
        %849 = vmatpush2.xpose.msra.mxu0 0.0
        %850 = vmatprep.subr.mxu0 0.0
        %851 = vmatpush2.xpose.msra.mxu0 0.0
        %852 = vmatprep.subr.mxu0 0.0
        %853 = vmatpush2.xpose.msra.mxu0 0.0
        %854 = vmatprep.subr.mxu0 0.0
        %855 = vmatpush2.xpose.msra.mxu0 0.0
        %856 = vmatprep.subr.mxu0 0.0
        %857 = vmatpush2.xpose.msra.mxu0 0.0
        %858 = vmatprep.subr.mxu0 0.0
        %859 = vmatpush2.xpose.msra.mxu0 0.0
        %860 = vmatprep.mubr.f32.mxu0 0.0
        %861 = vmatmul.mubr.f32.gmra.mxu0 %v792
        %v862 = vpop.f32.mrf.mxu0
        %v863 = vadd.f32 0.0, %v862
        %v864 = vpop.f32.mrf.mxu0
        %865 = vdwg.mxu0
        %v866 = vmul.f32 %v641, 0.35355338
        %v867 = vmul.f32 %v715, 0.35355338
        %v868 = vmul.f32 %v789, 0.35355338
        %v869 = vmul.f32 %v863, 0.35355338
        %v870 = vsel %vm569, %v866, -inf
        %871 = vmax.xlane.f32.xlu0 %v870
        %v872 = vpop.xlane.xlu0 %871
        %v873 = vsel %vm569, %v867, -inf
        %874 = vmax.xlane.f32.xlu0 %v873
        %v875 = vpop.xlane.xlu0 %874
        %v876 = vsel %vm569, %v868, -inf
        %877 = vmax.xlane.f32.xlu0 %v876
        %v878 = vpop.xlane.xlu0 %877
        %v879 = vsel %vm569, %v869, -inf
        %880 = vmax.xlane.f32.xlu0 %v879
        %v881 = vpop.xlane.xlu0 %880
        %v882 = vsub.f32 %v866, %v872
        %v883 = vsub.f32 %v867, %v875
        %v884 = vsub.f32 %v868, %v878
        %v885 = vsub.f32 %v869, %v881
        %v886 = vmul.f32 %v882, 1.442695
        %v887 = vpow.pop %v886
        %v888 = vmul.f32 %v883, 1.442695
        %v889 = vpow.pop %v888
        %v890 = vmul.f32 %v884, 1.442695
        %v891 = vpow.pop %v890
        %v892 = vmul.f32 %v885, 1.442695
        %v893 = vpow.pop %v892
        %v894 = vsel %vm569, %v887, 0.0
        %895 = vadd.xlane.f32.xlu0 %v894
        %v896 = vpop.xlane.xlu0 %895
        %v897 = vsel %vm569, %v889, 0.0
        %898 = vadd.xlane.f32.xlu0 %v897
        %v899 = vpop.xlane.xlu0 %898
        %v900 = vsel %vm569, %v891, 0.0
        %901 = vadd.xlane.f32.xlu0 %v900
        %v902 = vpop.xlane.xlu0 %901
        %v903 = vsel %vm569, %v893, 0.0
        %904 = vadd.xlane.f32.xlu0 %v903
        %v905 = vpop.xlane.xlu0 %904
        %v906 = vrcp.pop %v896
        %v907 = vrcp.pop %v899
        %v908 = vrcp.pop %v902
        %v909 = vrcp.pop %v905
        %v910 = vmul.f32 %v887, %v906
        %v911 = vmul.f32 %v889, %v907
        %v912 = vmul.f32 %v891, %v908
        %v913 = vmul.f32 %v893, %v909
        %v915 = vsel %vm569, %v910, 0
        %917 = vmatprep.subr.mxu0 0.0
        %918 = vmatpush1.msra.mxu0 0.0
        %919 = vmatprep.subr.mxu0 0.0
        %920 = vmatpush1.msra.mxu0 0.0
        %921 = vmatprep.subr.mxu0 0.0
        %922 = vmatpush1.msra.mxu0 0.0
        %923 = vmatprep.subr.mxu0 0.0
        %924 = vmatpush1.msra.mxu0 0.0
        %925 = vmatprep.subr.mxu0 0.0
        %926 = vmatpush1.msra.mxu0 0.0
        %927 = vmatprep.subr.mxu0 0.0
        %928 = vmatpush1.msra.mxu0 0.0
        %929 = vmatprep.subr.mxu0 0.0
        %930 = vmatpush1.msra.mxu0 0.0
        %931 = vmatprep.subr.mxu0 0.0
        %932 = vmatpush1.msra.mxu0 0.0
        %933 = vmatprep.subr.mxu0 0.0
        %934 = vmatpush1.msra.mxu0 0.0
        %935 = vmatprep.subr.mxu0 0.0
        %936 = vmatpush1.msra.mxu0 0.0
        %937 = vmatprep.subr.mxu0 0.0
        %938 = vmatpush1.msra.mxu0 0.0
        %939 = vmatprep.subr.mxu0 0.0
        %940 = vmatpush1.msra.mxu0 0.0
        %941 = vmatprep.subr.mxu0 0.0
        %942 = vmatpush1.msra.mxu0 0.0
        %943 = vmatprep.subr.mxu0 0.0
        %944 = vmatpush1.msra.mxu0 0.0
        %945 = vmatprep.subr.mxu0 0.0
        %946 = vmatpush1.msra.mxu0 0.0
        %947 = vmatprep.subr.mxu0 0.0
        %948 = vmatpush1.msra.mxu0 %v558
        %949 = vmatprep.subr.mxu0 0.0
        %950 = vmatpush2.msra.mxu0 0.0
        %951 = vmatprep.subr.mxu0 0.0
        %952 = vmatpush2.msra.mxu0 0.0
        %953 = vmatprep.subr.mxu0 0.0
        %954 = vmatpush2.msra.mxu0 0.0
        %955 = vmatprep.subr.mxu0 0.0
        %956 = vmatpush2.msra.mxu0 0.0
        %957 = vmatprep.subr.mxu0 0.0
        %958 = vmatpush2.msra.mxu0 0.0
        %959 = vmatprep.subr.mxu0 0.0
        %960 = vmatpush2.msra.mxu0 0.0
        %961 = vmatprep.subr.mxu0 0.0
        %962 = vmatpush2.msra.mxu0 0.0
        %963 = vmatprep.subr.mxu0 0.0
        %964 = vmatpush2.msra.mxu0 0.0
        %965 = vmatprep.subr.mxu0 0.0
        %966 = vmatpush2.msra.mxu0 0.0
        %967 = vmatprep.subr.mxu0 0.0
        %968 = vmatpush2.msra.mxu0 0.0
        %969 = vmatprep.subr.mxu0 0.0
        %970 = vmatpush2.msra.mxu0 0.0
        %971 = vmatprep.subr.mxu0 0.0
        %972 = vmatpush2.msra.mxu0 0.0
        %973 = vmatprep.subr.mxu0 0.0
        %974 = vmatpush2.msra.mxu0 0.0
        %975 = vmatprep.subr.mxu0 0.0
        %976 = vmatpush2.msra.mxu0 0.0
        %977 = vmatprep.subr.mxu0 0.0
        %978 = vmatpush2.msra.mxu0 0.0
        %979 = vmatprep.subr.mxu0 0.0
        %980 = vmatpush2.msra.mxu0 0.0
        %981 = vmatprep.mubr.f32.mxu0 0.0
        %982 = vmatmul.mubr.f32.gmra.mxu0 %v915
        %v983 = vpop.f32.mrf.mxu0
        %v984 = vadd.f32 0.0, %v983
        %v985 = vpop.f32.mrf.mxu0
        %986 = vdwg.mxu0
        %v988 = vsel %vm569, %v911, 0
        %990 = vmatprep.subr.mxu0 0.0
        %991 = vmatpush1.msra.mxu0 0.0
        %992 = vmatprep.subr.mxu0 0.0
        %993 = vmatpush1.msra.mxu0 0.0
        %994 = vmatprep.subr.mxu0 0.0
        %995 = vmatpush1.msra.mxu0 0.0
        %996 = vmatprep.subr.mxu0 0.0
        %997 = vmatpush1.msra.mxu0 0.0
        %998 = vmatprep.subr.mxu0 0.0
        %999 = vmatpush1.msra.mxu0 0.0
        %1000 = vmatprep.subr.mxu0 0.0
        %1001 = vmatpush1.msra.mxu0 0.0
        %1002 = vmatprep.subr.mxu0 0.0
        %1003 = vmatpush1.msra.mxu0 0.0
        %1004 = vmatprep.subr.mxu0 0.0
        %1005 = vmatpush1.msra.mxu0 0.0
        %1006 = vmatprep.subr.mxu0 0.0
        %1007 = vmatpush1.msra.mxu0 0.0
        %1008 = vmatprep.subr.mxu0 0.0
        %1009 = vmatpush1.msra.mxu0 0.0
        %1010 = vmatprep.subr.mxu0 0.0
        %1011 = vmatpush1.msra.mxu0 0.0
        %1012 = vmatprep.subr.mxu0 0.0
        %1013 = vmatpush1.msra.mxu0 0.0
        %1014 = vmatprep.subr.mxu0 0.0
        %1015 = vmatpush1.msra.mxu0 0.0
        %1016 = vmatprep.subr.mxu0 0.0
        %1017 = vmatpush1.msra.mxu0 0.0
        %1018 = vmatprep.subr.mxu0 0.0
        %1019 = vmatpush1.msra.mxu0 0.0
        %1020 = vmatprep.subr.mxu0 0.0
        %1021 = vmatpush1.msra.mxu0 %v561
        %1022 = vmatprep.subr.mxu0 0.0
        %1023 = vmatpush2.msra.mxu0 0.0
        %1024 = vmatprep.subr.mxu0 0.0
        %1025 = vmatpush2.msra.mxu0 0.0
        %1026 = vmatprep.subr.mxu0 0.0
        %1027 = vmatpush2.msra.mxu0 0.0
        %1028 = vmatprep.subr.mxu0 0.0
        %1029 = vmatpush2.msra.mxu0 0.0
        %1030 = vmatprep.subr.mxu0 0.0
        %1031 = vmatpush2.msra.mxu0 0.0
        %1032 = vmatprep.subr.mxu0 0.0
        %1033 = vmatpush2.msra.mxu0 0.0
        %1034 = vmatprep.subr.mxu0 0.0
        %1035 = vmatpush2.msra.mxu0 0.0
        %1036 = vmatprep.subr.mxu0 0.0
        %1037 = vmatpush2.msra.mxu0 0.0
        %1038 = vmatprep.subr.mxu0 0.0
        %1039 = vmatpush2.msra.mxu0 0.0
        %1040 = vmatprep.subr.mxu0 0.0
        %1041 = vmatpush2.msra.mxu0 0.0
        %1042 = vmatprep.subr.mxu0 0.0
        %1043 = vmatpush2.msra.mxu0 0.0
        %1044 = vmatprep.subr.mxu0 0.0
        %1045 = vmatpush2.msra.mxu0 0.0
        %1046 = vmatprep.subr.mxu0 0.0
        %1047 = vmatpush2.msra.mxu0 0.0
        %1048 = vmatprep.subr.mxu0 0.0
        %1049 = vmatpush2.msra.mxu0 0.0
        %1050 = vmatprep.subr.mxu0 0.0
        %1051 = vmatpush2.msra.mxu0 0.0
        %1052 = vmatprep.subr.mxu0 0.0
        %1053 = vmatpush2.msra.mxu0 0.0
        %1054 = vmatprep.mubr.f32.mxu0 0.0
        %1055 = vmatmul.mubr.f32.gmra.mxu0 %v988
        %v1056 = vpop.f32.mrf.mxu0
        %v1057 = vadd.f32 0.0, %v1056
        %v1058 = vpop.f32.mrf.mxu0
        %1059 = vdwg.mxu0
        %v1061 = vsel %vm569, %v912, 0
        %1063 = vmatprep.subr.mxu0 0.0
        %1064 = vmatpush1.msra.mxu0 0.0
        %1065 = vmatprep.subr.mxu0 0.0
        %1066 = vmatpush1.msra.mxu0 0.0
        %1067 = vmatprep.subr.mxu0 0.0
        %1068 = vmatpush1.msra.mxu0 0.0
        %1069 = vmatprep.subr.mxu0 0.0
        %1070 = vmatpush1.msra.mxu0 0.0
        %1071 = vmatprep.subr.mxu0 0.0
        %1072 = vmatpush1.msra.mxu0 0.0
        %1073 = vmatprep.subr.mxu0 0.0
        %1074 = vmatpush1.msra.mxu0 0.0
        %1075 = vmatprep.subr.mxu0 0.0
        %1076 = vmatpush1.msra.mxu0 0.0
        %1077 = vmatprep.subr.mxu0 0.0
        %1078 = vmatpush1.msra.mxu0 0.0
        %1079 = vmatprep.subr.mxu0 0.0
        %1080 = vmatpush1.msra.mxu0 0.0
        %1081 = vmatprep.subr.mxu0 0.0
        %1082 = vmatpush1.msra.mxu0 0.0
        %1083 = vmatprep.subr.mxu0 0.0
        %1084 = vmatpush1.msra.mxu0 0.0
        %1085 = vmatprep.subr.mxu0 0.0
        %1086 = vmatpush1.msra.mxu0 0.0
        %1087 = vmatprep.subr.mxu0 0.0
        %1088 = vmatpush1.msra.mxu0 0.0
        %1089 = vmatprep.subr.mxu0 0.0
        %1090 = vmatpush1.msra.mxu0 0.0
        %1091 = vmatprep.subr.mxu0 0.0
        %1092 = vmatpush1.msra.mxu0 0.0
        %1093 = vmatprep.subr.mxu0 0.0
        %1094 = vmatpush1.msra.mxu0 %v564
        %1095 = vmatprep.subr.mxu0 0.0
        %1096 = vmatpush2.msra.mxu0 0.0
        %1097 = vmatprep.subr.mxu0 0.0
        %1098 = vmatpush2.msra.mxu0 0.0
        %1099 = vmatprep.subr.mxu0 0.0
        %1100 = vmatpush2.msra.mxu0 0.0
        %1101 = vmatprep.subr.mxu0 0.0
        %1102 = vmatpush2.msra.mxu0 0.0
        %1103 = vmatprep.subr.mxu0 0.0
        %1104 = vmatpush2.msra.mxu0 0.0
        %1105 = vmatprep.subr.mxu0 0.0
        %1106 = vmatpush2.msra.mxu0 0.0
        %1107 = vmatprep.subr.mxu0 0.0
        %1108 = vmatpush2.msra.mxu0 0.0
        %1109 = vmatprep.subr.mxu0 0.0
        %1110 = vmatpush2.msra.mxu0 0.0
        %1111 = vmatprep.subr.mxu0 0.0
        %1112 = vmatpush2.msra.mxu0 0.0
        %1113 = vmatprep.subr.mxu0 0.0
        %1114 = vmatpush2.msra.mxu0 0.0
        %1115 = vmatprep.subr.mxu0 0.0
        %1116 = vmatpush2.msra.mxu0 0.0
        %1117 = vmatprep.subr.mxu0 0.0
        %1118 = vmatpush2.msra.mxu0 0.0
        %1119 = vmatprep.subr.mxu0 0.0
        %1120 = vmatpush2.msra.mxu0 0.0
        %1121 = vmatprep.subr.mxu0 0.0
        %1122 = vmatpush2.msra.mxu0 0.0
        %1123 = vmatprep.subr.mxu0 0.0
        %1124 = vmatpush2.msra.mxu0 0.0
        %1125 = vmatprep.subr.mxu0 0.0
        %1126 = vmatpush2.msra.mxu0 0.0
        %1127 = vmatprep.mubr.f32.mxu0 0.0
        %1128 = vmatmul.mubr.f32.gmra.mxu0 %v1061
        %v1129 = vpop.f32.mrf.mxu0
        %v1130 = vadd.f32 0.0, %v1129
        %v1131 = vpop.f32.mrf.mxu0
        %1132 = vdwg.mxu0
        %v1134 = vsel %vm569, %v913, 0
        %1136 = vmatprep.subr.mxu0 0.0
        %1137 = vmatpush1.msra.mxu0 0.0
        %1138 = vmatprep.subr.mxu0 0.0
        %1139 = vmatpush1.msra.mxu0 0.0
        %1140 = vmatprep.subr.mxu0 0.0
        %1141 = vmatpush1.msra.mxu0 0.0
        %1142 = vmatprep.subr.mxu0 0.0
        %1143 = vmatpush1.msra.mxu0 0.0
        %1144 = vmatprep.subr.mxu0 0.0
        %1145 = vmatpush1.msra.mxu0 0.0
        %1146 = vmatprep.subr.mxu0 0.0
        %1147 = vmatpush1.msra.mxu0 0.0
        %1148 = vmatprep.subr.mxu0 0.0
        %1149 = vmatpush1.msra.mxu0 0.0
        %1150 = vmatprep.subr.mxu0 0.0
        %1151 = vmatpush1.msra.mxu0 0.0
        %1152 = vmatprep.subr.mxu0 0.0
        %1153 = vmatpush1.msra.mxu0 0.0
        %1154 = vmatprep.subr.mxu0 0.0
        %1155 = vmatpush1.msra.mxu0 0.0
        %1156 = vmatprep.subr.mxu0 0.0
        %1157 = vmatpush1.msra.mxu0 0.0
        %1158 = vmatprep.subr.mxu0 0.0
        %1159 = vmatpush1.msra.mxu0 0.0
        %1160 = vmatprep.subr.mxu0 0.0
        %1161 = vmatpush1.msra.mxu0 0.0
        %1162 = vmatprep.subr.mxu0 0.0
        %1163 = vmatpush1.msra.mxu0 0.0
        %1164 = vmatprep.subr.mxu0 0.0
        %1165 = vmatpush1.msra.mxu0 0.0
        %1166 = vmatprep.subr.mxu0 0.0
        %1167 = vmatpush1.msra.mxu0 %v567
        %1168 = vmatprep.subr.mxu0 0.0
        %1169 = vmatpush2.msra.mxu0 0.0
        %1170 = vmatprep.subr.mxu0 0.0
        %1171 = vmatpush2.msra.mxu0 0.0
        %1172 = vmatprep.subr.mxu0 0.0
        %1173 = vmatpush2.msra.mxu0 0.0
        %1174 = vmatprep.subr.mxu0 0.0
        %1175 = vmatpush2.msra.mxu0 0.0
        %1176 = vmatprep.subr.mxu0 0.0
        %1177 = vmatpush2.msra.mxu0 0.0
        %1178 = vmatprep.subr.mxu0 0.0
        %1179 = vmatpush2.msra.mxu0 0.0
        %1180 = vmatprep.subr.mxu0 0.0
        %1181 = vmatpush2.msra.mxu0 0.0
        %1182 = vmatprep.subr.mxu0 0.0
        %1183 = vmatpush2.msra.mxu0 0.0
        %1184 = vmatprep.subr.mxu0 0.0
        %1185 = vmatpush2.msra.mxu0 0.0
        %1186 = vmatprep.subr.mxu0 0.0
        %1187 = vmatpush2.msra.mxu0 0.0
        %1188 = vmatprep.subr.mxu0 0.0
        %1189 = vmatpush2.msra.mxu0 0.0
        %1190 = vmatprep.subr.mxu0 0.0
        %1191 = vmatpush2.msra.mxu0 0.0
        %1192 = vmatprep.subr.mxu0 0.0
        %1193 = vmatpush2.msra.mxu0 0.0
        %1194 = vmatprep.subr.mxu0 0.0
        %1195 = vmatpush2.msra.mxu0 0.0
        %1196 = vmatprep.subr.mxu0 0.0
        %1197 = vmatpush2.msra.mxu0 0.0
        %1198 = vmatprep.subr.mxu0 0.0
        %1199 = vmatpush2.msra.mxu0 0.0
        %1200 = vmatprep.mubr.f32.mxu0 0.0
        %1201 = vmatmul.mubr.f32.gmra.mxu0 %v1134
        %v1202 = vpop.f32.mrf.mxu0
        %v1203 = vadd.f32 0.0, %v1202
        %v1204 = vpop.f32.mrf.mxu0
        %1205 = vdwg.mxu0
        %v1206 = vld [vmem:[%s3] sm:$0xff]
        %v1207 = vld [vmem:[%s3 + $0x8] sm:$0xff]
        %v1208 = vld [vmem:[%s3 + $0x10] sm:$0xff]
        %v1209 = vld [vmem:[%s3 + $0x18] sm:$0xff]
        %v1210 = vld [vmem:[%s4] sm:$0x1]
        %v1212 = vsel %vm569, %v984, 0
        %1214 = vmatprep.subr.mxu0 0.0
        %1215 = vmatpush1.msra.mxu0 0.0
        %1216 = vmatprep.subr.mxu0 0.0
        %1217 = vmatpush1.msra.mxu0 0.0
        %1218 = vmatprep.subr.mxu0 0.0
        %1219 = vmatpush1.msra.mxu0 0.0
        %1220 = vmatprep.subr.mxu0 0.0
        %1221 = vmatpush1.msra.mxu0 0.0
        %1222 = vmatprep.subr.mxu0 0.0
        %1223 = vmatpush1.msra.mxu0 0.0
        %1224 = vmatprep.subr.mxu0 0.0
        %1225 = vmatpush1.msra.mxu0 0.0
        %1226 = vmatprep.subr.mxu0 0.0
        %1227 = vmatpush1.msra.mxu0 0.0
        %1228 = vmatprep.subr.mxu0 0.0
        %1229 = vmatpush1.msra.mxu0 0.0
        %1230 = vmatprep.subr.mxu0 0.0
        %1231 = vmatpush1.msra.mxu0 0.0
        %1232 = vmatprep.subr.mxu0 0.0
        %1233 = vmatpush1.msra.mxu0 0.0
        %1234 = vmatprep.subr.mxu0 0.0
        %1235 = vmatpush1.msra.mxu0 0.0
        %1236 = vmatprep.subr.mxu0 0.0
        %1237 = vmatpush1.msra.mxu0 0.0
        %1238 = vmatprep.subr.mxu0 0.0
        %1239 = vmatpush1.msra.mxu0 0.0
        %1240 = vmatprep.subr.mxu0 0.0
        %1241 = vmatpush1.msra.mxu0 0.0
        %1242 = vmatprep.subr.mxu0 0.0
        %1243 = vmatpush1.msra.mxu0 0.0
        %1244 = vmatprep.subr.mxu0 0.0
        %1245 = vmatpush1.msra.mxu0 %v1206
        %1246 = vmatprep.subr.mxu0 0.0
        %1247 = vmatpush2.msra.mxu0 0.0
        %1248 = vmatprep.subr.mxu0 0.0
        %1249 = vmatpush2.msra.mxu0 0.0
        %1250 = vmatprep.subr.mxu0 0.0
        %1251 = vmatpush2.msra.mxu0 0.0
        %1252 = vmatprep.subr.mxu0 0.0
        %1253 = vmatpush2.msra.mxu0 0.0
        %1254 = vmatprep.subr.mxu0 0.0
        %1255 = vmatpush2.msra.mxu0 0.0
        %1256 = vmatprep.subr.mxu0 0.0
        %1257 = vmatpush2.msra.mxu0 0.0
        %1258 = vmatprep.subr.mxu0 0.0
        %1259 = vmatpush2.msra.mxu0 0.0
        %1260 = vmatprep.subr.mxu0 0.0
        %1261 = vmatpush2.msra.mxu0 0.0
        %1262 = vmatprep.subr.mxu0 0.0
        %1263 = vmatpush2.msra.mxu0 0.0
        %1264 = vmatprep.subr.mxu0 0.0
        %1265 = vmatpush2.msra.mxu0 0.0
        %1266 = vmatprep.subr.mxu0 0.0
        %1267 = vmatpush2.msra.mxu0 0.0
        %1268 = vmatprep.subr.mxu0 0.0
        %1269 = vmatpush2.msra.mxu0 0.0
        %1270 = vmatprep.subr.mxu0 0.0
        %1271 = vmatpush2.msra.mxu0 0.0
        %1272 = vmatprep.subr.mxu0 0.0
        %1273 = vmatpush2.msra.mxu0 0.0
        %1274 = vmatprep.subr.mxu0 0.0
        %1275 = vmatpush2.msra.mxu0 0.0
        %1276 = vmatprep.subr.mxu0 0.0
        %1277 = vmatpush2.msra.mxu0 0.0
        %1278 = vmatprep.mubr.f32.mxu0 0.0
        %1279 = vmatmul.mubr.f32.gmra.mxu0 %v1212
        %v1280 = vpop.f32.mrf.mxu0
        %v1281 = vadd.f32 0.0, %v1280
        %v1282 = vpop.f32.mrf.mxu0
        %1283 = vdwg.mxu0
        %v1285 = vlaneseq
        %v1286 = vshrl.u32 %v1285, 7
        %v1287 = vsub.s32 0, %v1286
        %v1288 = vrot.slane %v1210, %v1287
        %v1290 = vadd.f32 %v1288, %v1281
        %v1292 = vsel %vm569, %v1057, 0
        %1294 = vmatprep.subr.mxu0 0.0
        %1295 = vmatpush1.msra.mxu0 0.0
        %1296 = vmatprep.subr.mxu0 0.0
        %1297 = vmatpush1.msra.mxu0 0.0
        %1298 = vmatprep.subr.mxu0 0.0
        %1299 = vmatpush1.msra.mxu0 0.0
        %1300 = vmatprep.subr.mxu0 0.0
        %1301 = vmatpush1.msra.mxu0 0.0
        %1302 = vmatprep.subr.mxu0 0.0
        %1303 = vmatpush1.msra.mxu0 0.0
        %1304 = vmatprep.subr.mxu0 0.0
        %1305 = vmatpush1.msra.mxu0 0.0
        %1306 = vmatprep.subr.mxu0 0.0
        %1307 = vmatpush1.msra.mxu0 0.0
        %1308 = vmatprep.subr.mxu0 0.0
        %1309 = vmatpush1.msra.mxu0 0.0
        %1310 = vmatprep.subr.mxu0 0.0
        %1311 = vmatpush1.msra.mxu0 0.0
        %1312 = vmatprep.subr.mxu0 0.0
        %1313 = vmatpush1.msra.mxu0 0.0
        %1314 = vmatprep.subr.mxu0 0.0
        %1315 = vmatpush1.msra.mxu0 0.0
        %1316 = vmatprep.subr.mxu0 0.0
        %1317 = vmatpush1.msra.mxu0 0.0
        %1318 = vmatprep.subr.mxu0 0.0
        %1319 = vmatpush1.msra.mxu0 0.0
        %1320 = vmatprep.subr.mxu0 0.0
        %1321 = vmatpush1.msra.mxu0 0.0
        %1322 = vmatprep.subr.mxu0 0.0
        %1323 = vmatpush1.msra.mxu0 0.0
        %1324 = vmatprep.subr.mxu0 0.0
        %1325 = vmatpush1.msra.mxu0 %v1207
        %1326 = vmatprep.subr.mxu0 0.0
        %1327 = vmatpush2.msra.mxu0 0.0
        %1328 = vmatprep.subr.mxu0 0.0
        %1329 = vmatpush2.msra.mxu0 0.0
        %1330 = vmatprep.subr.mxu0 0.0
        %1331 = vmatpush2.msra.mxu0 0.0
        %1332 = vmatprep.subr.mxu0 0.0
        %1333 = vmatpush2.msra.mxu0 0.0
        %1334 = vmatprep.subr.mxu0 0.0
        %1335 = vmatpush2.msra.mxu0 0.0
        %1336 = vmatprep.subr.mxu0 0.0
        %1337 = vmatpush2.msra.mxu0 0.0
        %1338 = vmatprep.subr.mxu0 0.0
        %1339 = vmatpush2.msra.mxu0 0.0
        %1340 = vmatprep.subr.mxu0 0.0
        %1341 = vmatpush2.msra.mxu0 0.0
        %1342 = vmatprep.subr.mxu0 0.0
        %1343 = vmatpush2.msra.mxu0 0.0
        %1344 = vmatprep.subr.mxu0 0.0
        %1345 = vmatpush2.msra.mxu0 0.0
        %1346 = vmatprep.subr.mxu0 0.0
        %1347 = vmatpush2.msra.mxu0 0.0
        %1348 = vmatprep.subr.mxu0 0.0
        %1349 = vmatpush2.msra.mxu0 0.0
        %1350 = vmatprep.subr.mxu0 0.0
        %1351 = vmatpush2.msra.mxu0 0.0
        %1352 = vmatprep.subr.mxu0 0.0
        %1353 = vmatpush2.msra.mxu0 0.0
        %1354 = vmatprep.subr.mxu0 0.0
        %1355 = vmatpush2.msra.mxu0 0.0
        %1356 = vmatprep.subr.mxu0 0.0
        %1357 = vmatpush2.msra.mxu0 0.0
        %1358 = vmatprep.mubr.f32.mxu0 0.0
        %1359 = vmatmul.mubr.f32.gmra.mxu0 %v1292
        %v1360 = vpop.f32.mrf.mxu0
        %v1361 = vadd.f32 0.0, %v1360
        %v1362 = vpop.f32.mrf.mxu0
        %1363 = vdwg.mxu0
        %v1364 = vadd.f32 %v1290, %v1361
        %v1366 = vsel %vm569, %v1130, 0
        %1368 = vmatprep.subr.mxu0 0.0
        %1369 = vmatpush1.msra.mxu0 0.0
        %1370 = vmatprep.subr.mxu0 0.0
        %1371 = vmatpush1.msra.mxu0 0.0
        %1372 = vmatprep.subr.mxu0 0.0
        %1373 = vmatpush1.msra.mxu0 0.0
        %1374 = vmatprep.subr.mxu0 0.0
        %1375 = vmatpush1.msra.mxu0 0.0
        %1376 = vmatprep.subr.mxu0 0.0
        %1377 = vmatpush1.msra.mxu0 0.0
        %1378 = vmatprep.subr.mxu0 0.0
        %1379 = vmatpush1.msra.mxu0 0.0
        %1380 = vmatprep.subr.mxu0 0.0
        %1381 = vmatpush1.msra.mxu0 0.0
        %1382 = vmatprep.subr.mxu0 0.0
        %1383 = vmatpush1.msra.mxu0 0.0
        %1384 = vmatprep.subr.mxu0 0.0
        %1385 = vmatpush1.msra.mxu0 0.0
        %1386 = vmatprep.subr.mxu0 0.0
        %1387 = vmatpush1.msra.mxu0 0.0
        %1388 = vmatprep.subr.mxu0 0.0
        %1389 = vmatpush1.msra.mxu0 0.0
        %1390 = vmatprep.subr.mxu0 0.0
        %1391 = vmatpush1.msra.mxu0 0.0
        %1392 = vmatprep.subr.mxu0 0.0
        %1393 = vmatpush1.msra.mxu0 0.0
        %1394 = vmatprep.subr.mxu0 0.0
        %1395 = vmatpush1.msra.mxu0 0.0
        %1396 = vmatprep.subr.mxu0 0.0
        %1397 = vmatpush1.msra.mxu0 0.0
        %1398 = vmatprep.subr.mxu0 0.0
        %1399 = vmatpush1.msra.mxu0 %v1208
        %1400 = vmatprep.subr.mxu0 0.0
        %1401 = vmatpush2.msra.mxu0 0.0
        %1402 = vmatprep.subr.mxu0 0.0
        %1403 = vmatpush2.msra.mxu0 0.0
        %1404 = vmatprep.subr.mxu0 0.0
        %1405 = vmatpush2.msra.mxu0 0.0
        %1406 = vmatprep.subr.mxu0 0.0
        %1407 = vmatpush2.msra.mxu0 0.0
        %1408 = vmatprep.subr.mxu0 0.0
        %1409 = vmatpush2.msra.mxu0 0.0
        %1410 = vmatprep.subr.mxu0 0.0
        %1411 = vmatpush2.msra.mxu0 0.0
        %1412 = vmatprep.subr.mxu0 0.0
        %1413 = vmatpush2.msra.mxu0 0.0
        %1414 = vmatprep.subr.mxu0 0.0
        %1415 = vmatpush2.msra.mxu0 0.0
        %1416 = vmatprep.subr.mxu0 0.0
        %1417 = vmatpush2.msra.mxu0 0.0
        %1418 = vmatprep.subr.mxu0 0.0
        %1419 = vmatpush2.msra.mxu0 0.0
        %1420 = vmatprep.subr.mxu0 0.0
        %1421 = vmatpush2.msra.mxu0 0.0
        %1422 = vmatprep.subr.mxu0 0.0
        %1423 = vmatpush2.msra.mxu0 0.0
        %1424 = vmatprep.subr.mxu0 0.0
        %1425 = vmatpush2.msra.mxu0 0.0
        %1426 = vmatprep.subr.mxu0 0.0
        %1427 = vmatpush2.msra.mxu0 0.0
        %1428 = vmatprep.subr.mxu0 0.0
        %1429 = vmatpush2.msra.mxu0 0.0
        %1430 = vmatprep.subr.mxu0 0.0
        %1431 = vmatpush2.msra.mxu0 0.0
        %1432 = vmatprep.mubr.f32.mxu0 0.0
        %1433 = vmatmul.mubr.f32.gmra.mxu0 %v1366
        %v1434 = vpop.f32.mrf.mxu0
        %v1435 = vadd.f32 0.0, %v1434
        %v1436 = vpop.f32.mrf.mxu0
        %1437 = vdwg.mxu0
        %v1438 = vadd.f32 %v1364, %v1435
        %v1440 = vsel %vm569, %v1203, 0
        %1442 = vmatprep.subr.mxu0 0.0
        %1443 = vmatpush1.msra.mxu0 0.0
        %1444 = vmatprep.subr.mxu0 0.0
        %1445 = vmatpush1.msra.mxu0 0.0
        %1446 = vmatprep.subr.mxu0 0.0
        %1447 = vmatpush1.msra.mxu0 0.0
        %1448 = vmatprep.subr.mxu0 0.0
        %1449 = vmatpush1.msra.mxu0 0.0
        %1450 = vmatprep.subr.mxu0 0.0
        %1451 = vmatpush1.msra.mxu0 0.0
        %1452 = vmatprep.subr.mxu0 0.0
        %1453 = vmatpush1.msra.mxu0 0.0
        %1454 = vmatprep.subr.mxu0 0.0
        %1455 = vmatpush1.msra.mxu0 0.0
        %1456 = vmatprep.subr.mxu0 0.0
        %1457 = vmatpush1.msra.mxu0 0.0
        %1458 = vmatprep.subr.mxu0 0.0
        %1459 = vmatpush1.msra.mxu0 0.0
        %1460 = vmatprep.subr.mxu0 0.0
        %1461 = vmatpush1.msra.mxu0 0.0
        %1462 = vmatprep.subr.mxu0 0.0
        %1463 = vmatpush1.msra.mxu0 0.0
        %1464 = vmatprep.subr.mxu0 0.0
        %1465 = vmatpush1.msra.mxu0 0.0
        %1466 = vmatprep.subr.mxu0 0.0
        %1467 = vmatpush1.msra.mxu0 0.0
        %1468 = vmatprep.subr.mxu0 0.0
        %1469 = vmatpush1.msra.mxu0 0.0
        %1470 = vmatprep.subr.mxu0 0.0
        %1471 = vmatpush1.msra.mxu0 0.0
        %1472 = vmatprep.subr.mxu0 0.0
        %1473 = vmatpush1.msra.mxu0 %v1209
        %1474 = vmatprep.subr.mxu0 0.0
        %1475 = vmatpush2.msra.mxu0 0.0
        %1476 = vmatprep.subr.mxu0 0.0
        %1477 = vmatpush2.msra.mxu0 0.0
        %1478 = vmatprep.subr.mxu0 0.0
        %1479 = vmatpush2.msra.mxu0 0.0
        %1480 = vmatprep.subr.mxu0 0.0
        %1481 = vmatpush2.msra.mxu0 0.0
        %1482 = vmatprep.subr.mxu0 0.0
        %1483 = vmatpush2.msra.mxu0 0.0
        %1484 = vmatprep.subr.mxu0 0.0
        %1485 = vmatpush2.msra.mxu0 0.0
        %1486 = vmatprep.subr.mxu0 0.0
        %1487 = vmatpush2.msra.mxu0 0.0
        %1488 = vmatprep.subr.mxu0 0.0
        %1489 = vmatpush2.msra.mxu0 0.0
        %1490 = vmatprep.subr.mxu0 0.0
        %1491 = vmatpush2.msra.mxu0 0.0
        %1492 = vmatprep.subr.mxu0 0.0
        %1493 = vmatpush2.msra.mxu0 0.0
        %1494 = vmatprep.subr.mxu0 0.0
        %1495 = vmatpush2.msra.mxu0 0.0
        %1496 = vmatprep.subr.mxu0 0.0
        %1497 = vmatpush2.msra.mxu0 0.0
        %1498 = vmatprep.subr.mxu0 0.0
        %1499 = vmatpush2.msra.mxu0 0.0
        %1500 = vmatprep.subr.mxu0 0.0
        %1501 = vmatpush2.msra.mxu0 0.0
        %1502 = vmatprep.subr.mxu0 0.0
        %1503 = vmatpush2.msra.mxu0 0.0
        %1504 = vmatprep.subr.mxu0 0.0
        %1505 = vmatpush2.msra.mxu0 0.0
        %1506 = vmatprep.mubr.f32.mxu0 0.0
        %1507 = vmatmul.mubr.f32.gmra.mxu0 %v1440
        %v1508 = vpop.f32.mrf.mxu0
        %v1509 = vadd.f32 0.0, %v1508
        %v1510 = vpop.f32.mrf.mxu0
        %1511 = vdwg.mxu0
        %v1512 = vadd.f32 %v1438, %v1509
        %v1513 = vadd.f32 %v456, %v1512
        %v1514 = vld [vmem:[%s5] sm:$0x1]
        %v1515 = vld [vmem:[%s6] sm:$0x1]
        %v1516 = vsel %vm468, %v1513, 0.0
        %1517 = vadd.xlane.f32.xlu0 %v1516
        %v1518 = vpop.xlane.xlu0 %1517
        %v1519 = vrcp.pop 32.0
        %v1520 = vmul.f32 %v1518, %v1519
        %v1521 = vsub.f32 %v1513, %v1520
        %v1522 = vmul.f32 %v1521, %v1521
        %v1523 = vsel %vm468, %v1522, 0.0
        %1524 = vadd.xlane.f32.xlu0 %v1523
        %v1525 = vpop.xlane.xlu0 %1524
        %v1526 = vmul.f32 %v1525, %v1519
        %v1527 = vadd.f32 %v1526, 1e-05
        %v1528 = vrsqrt.pop %v1527
        %v1529 = vmul.f32 %v1521, %v1528
        %v1531 = vlaneseq
        %v1532 = vshrl.u32 %v1531, 7
        %v1533 = vsub.s32 0, %v1532
        %v1534 = vrot.slane %v1514, %v1533
        %v1536 = vmul.f32 %v1529, %v1534
        %v1538 = vlaneseq
        %v1539 = vshrl.u32 %v1538, 7
        %v1540 = vsub.s32 0, %v1539
        %v1541 = vrot.slane %v1515, %v1540
        %v1543 = vadd.f32 %v1536, %v1541
        %v1544 = vld [vmem:[%s7] sm:$0xff]
        %v1545 = vld [vmem:[%s7 + $0x8] sm:$0xff]
        %v1546 = vld [vmem:[%s7 + $0x10] sm:$0xff]
        %v1547 = vld [vmem:[%s7 + $0x18] sm:$0xff]
        %v1548 = vld [vmem:[%s8] sm:$0x1]
        %v1550 = vlaneseq
        %v1551 = vshrl.u32 %v1550, 7
        %v1552 = vsub.s32 0, %v1551
        %v1553 = vrot.slane %v1548, %v1552
        %v1556 = vsel %vm468, %v1543, 0
        %1558 = vmatprep.subr.mxu0 0.0
        %1559 = vmatpush1.msra.mxu0 0.0
        %1560 = vmatprep.subr.mxu0 0.0
        %1561 = vmatpush1.msra.mxu0 0.0
        %1562 = vmatprep.subr.mxu0 0.0
        %1563 = vmatpush1.msra.mxu0 0.0
        %1564 = vmatprep.subr.mxu0 0.0
        %1565 = vmatpush1.msra.mxu0 0.0
        %1566 = vmatprep.subr.mxu0 0.0
        %1567 = vmatpush1.msra.mxu0 0.0
        %1568 = vmatprep.subr.mxu0 0.0
        %1569 = vmatpush1.msra.mxu0 0.0
        %1570 = vmatprep.subr.mxu0 0.0
        %1571 = vmatpush1.msra.mxu0 0.0
        %1572 = vmatprep.subr.mxu0 0.0
        %1573 = vmatpush1.msra.mxu0 0.0
        %1574 = vmatprep.subr.mxu0 0.0
        %1575 = vmatpush1.msra.mxu0 0.0
        %1576 = vmatprep.subr.mxu0 0.0
        %1577 = vmatpush1.msra.mxu0 0.0
        %1578 = vmatprep.subr.mxu0 0.0
        %1579 = vmatpush1.msra.mxu0 0.0
        %1580 = vmatprep.subr.mxu0 0.0
        %1581 = vmatpush1.msra.mxu0 0.0
        %1582 = vmatprep.subr.mxu0 0.0
        %1583 = vmatpush1.msra.mxu0 %v1547
        %1584 = vmatprep.subr.mxu0 0.0
        %1585 = vmatpush1.msra.mxu0 %v1546
        %1586 = vmatprep.subr.mxu0 0.0
        %1587 = vmatpush1.msra.mxu0 %v1545
        %1588 = vmatprep.subr.mxu0 0.0
        %1589 = vmatpush1.msra.mxu0 %v1544
        %1590 = vmatprep.subr.mxu0 0.0
        %1591 = vmatpush2.msra.mxu0 0.0
        %1592 = vmatprep.subr.mxu0 0.0
        %1593 = vmatpush2.msra.mxu0 0.0
        %1594 = vmatprep.subr.mxu0 0.0
        %1595 = vmatpush2.msra.mxu0 0.0
        %1596 = vmatprep.subr.mxu0 0.0
        %1597 = vmatpush2.msra.mxu0 0.0
        %1598 = vmatprep.subr.mxu0 0.0
        %1599 = vmatpush2.msra.mxu0 0.0
        %1600 = vmatprep.subr.mxu0 0.0
        %1601 = vmatpush2.msra.mxu0 0.0
        %1602 = vmatprep.subr.mxu0 0.0
        %1603 = vmatpush2.msra.mxu0 0.0
        %1604 = vmatprep.subr.mxu0 0.0
        %1605 = vmatpush2.msra.mxu0 0.0
        %1606 = vmatprep.subr.mxu0 0.0
        %1607 = vmatpush2.msra.mxu0 0.0
        %1608 = vmatprep.subr.mxu0 0.0
        %1609 = vmatpush2.msra.mxu0 0.0
        %1610 = vmatprep.subr.mxu0 0.0
        %1611 = vmatpush2.msra.mxu0 0.0
        %1612 = vmatprep.subr.mxu0 0.0
        %1613 = vmatpush2.msra.mxu0 0.0
        %1614 = vmatprep.subr.mxu0 0.0
        %1615 = vmatpush2.msra.mxu0 0.0
        %1616 = vmatprep.subr.mxu0 0.0
        %1617 = vmatpush2.msra.mxu0 0.0
        %1618 = vmatprep.subr.mxu0 0.0
        %1619 = vmatpush2.msra.mxu0 0.0
        %1620 = vmatprep.subr.mxu0 0.0
        %1621 = vmatpush2.msra.mxu0 0.0
        %1622 = vmatprep.mubr.f32.mxu0 0.0
        %1623 = vmatmul.mubr.f32.gmra.mxu0 %v1556
        %v1624 = vpop.f32.mrf.mxu0
        %v1625 = vadd.f32 %v1553, %v1624
        %v1626 = vpop.f32.mrf.mxu0
        %1627 = vdwg.mxu0
        %vm1628 = vcmp.ge.f32.partialorder %v1625, 0.0
        %v1629 = vmul.f32 %v1625, 0.01
        %v1630 = vsel %vm1628, %v1625, %v1629
        %v1631 = vld [vmem:[%s9] sm:$0xff]
        %v1632 = vld [vmem:[%s9 + $0x8] sm:$0xff]
        %v1633 = vld [vmem:[%s9 + $0x10] sm:$0xff]
        %v1634 = vld [vmem:[%s9 + $0x18] sm:$0xff]
        %v1635 = vld [vmem:[%s9 + $0x20] sm:$0xff]
        %v1636 = vld [vmem:[%s9 + $0x28] sm:$0xff]
        %v1637 = vld [vmem:[%s9 + $0x30] sm:$0xff]
        %v1638 = vld [vmem:[%s9 + $0x38] sm:$0xff]
        %v1639 = vld [vmem:[%s10] sm:$0x1]
        %v1641 = vlaneseq
        %v1642 = vshrl.u32 %v1641, 7
        %v1643 = vsub.s32 0, %v1642
        %v1644 = vrot.slane %v1639, %v1643
        %vm1646 = vcmask 523264
        %v1648 = vsel %vm1646, %v1630, 0
        %1650 = vmatprep.subr.mxu0 0.0
        %1651 = vmatpush1.msra.mxu0 0.0
        %1652 = vmatprep.subr.mxu0 0.0
        %1653 = vmatpush1.msra.mxu0 0.0
        %1654 = vmatprep.subr.mxu0 0.0
        %1655 = vmatpush1.msra.mxu0 0.0
        %1656 = vmatprep.subr.mxu0 0.0
        %1657 = vmatpush1.msra.mxu0 0.0
        %1658 = vmatprep.subr.mxu0 0.0
        %1659 = vmatpush1.msra.mxu0 0.0
        %1660 = vmatprep.subr.mxu0 0.0
        %1661 = vmatpush1.msra.mxu0 0.0
        %1662 = vmatprep.subr.mxu0 0.0
        %1663 = vmatpush1.msra.mxu0 0.0
        %1664 = vmatprep.subr.mxu0 0.0
        %1665 = vmatpush1.msra.mxu0 0.0
        %1666 = vmatprep.subr.mxu0 0.0
        %1667 = vmatpush1.msra.mxu0 %v1638
        %1668 = vmatprep.subr.mxu0 0.0
        %1669 = vmatpush1.msra.mxu0 %v1637
        %1670 = vmatprep.subr.mxu0 0.0
        %1671 = vmatpush1.msra.mxu0 %v1636
        %1672 = vmatprep.subr.mxu0 0.0
        %1673 = vmatpush1.msra.mxu0 %v1635
        %1674 = vmatprep.subr.mxu0 0.0
        %1675 = vmatpush1.msra.mxu0 %v1634
        %1676 = vmatprep.subr.mxu0 0.0
        %1677 = vmatpush1.msra.mxu0 %v1633
        %1678 = vmatprep.subr.mxu0 0.0
        %1679 = vmatpush1.msra.mxu0 %v1632
        %1680 = vmatprep.subr.mxu0 0.0
        %1681 = vmatpush1.msra.mxu0 %v1631
        %1682 = vmatprep.subr.mxu0 0.0
        %1683 = vmatpush2.msra.mxu0 0.0
        %1684 = vmatprep.subr.mxu0 0.0
        %1685 = vmatpush2.msra.mxu0 0.0
        %1686 = vmatprep.subr.mxu0 0.0
        %1687 = vmatpush2.msra.mxu0 0.0
        %1688 = vmatprep.subr.mxu0 0.0
        %1689 = vmatpush2.msra.mxu0 0.0
        %1690 = vmatprep.subr.mxu0 0.0
        %1691 = vmatpush2.msra.mxu0 0.0
        %1692 = vmatprep.subr.mxu0 0.0
        %1693 = vmatpush2.msra.mxu0 0.0
        %1694 = vmatprep.subr.mxu0 0.0
        %1695 = vmatpush2.msra.mxu0 0.0
        %1696 = vmatprep.subr.mxu0 0.0
        %1697 = vmatpush2.msra.mxu0 0.0
        %1698 = vmatprep.subr.mxu0 0.0
        %1699 = vmatpush2.msra.mxu0 0.0
        %1700 = vmatprep.subr.mxu0 0.0
        %1701 = vmatpush2.msra.mxu0 0.0
        %1702 = vmatprep.subr.mxu0 0.0
        %1703 = vmatpush2.msra.mxu0 0.0
        %1704 = vmatprep.subr.mxu0 0.0
        %1705 = vmatpush2.msra.mxu0 0.0
        %1706 = vmatprep.subr.mxu0 0.0
        %1707 = vmatpush2.msra.mxu0 0.0
        %1708 = vmatprep.subr.mxu0 0.0
        %1709 = vmatpush2.msra.mxu0 0.0
        %1710 = vmatprep.subr.mxu0 0.0
        %1711 = vmatpush2.msra.mxu0 0.0
        %1712 = vmatprep.subr.mxu0 0.0
        %1713 = vmatpush2.msra.mxu0 0.0
        %1714 = vmatprep.mubr.f32.mxu0 0.0
        %1715 = vmatmul.mubr.f32.gmra.mxu0 %v1648
        %v1716 = vpop.f32.mrf.mxu0
        %v1717 = vadd.f32 %v1644, %v1716
        %v1718 = vpop.f32.mrf.mxu0
        %1719 = vdwg.mxu0
        %v1720 = vadd.f32 %v1543, %v1717
        %v1721 = vld [vmem:[%s11] sm:$0x1]
        %v1722 = vld [vmem:[%s12] sm:$0x1]
        %v1723 = vsel %vm468, %v1720, 0.0
        %1724 = vadd.xlane.f32.xlu0 %v1723
        %v1725 = vpop.xlane.xlu0 %1724
        %v1726 = vmul.f32 %v1725, %v1519
        %v1727 = vsub.f32 %v1720, %v1726
        %v1728 = vmul.f32 %v1727, %v1727
        %v1729 = vsel %vm468, %v1728, 0.0
        %1730 = vadd.xlane.f32.xlu0 %v1729
        %v1731 = vpop.xlane.xlu0 %1730
        %v1732 = vmul.f32 %v1731, %v1519
        %v1733 = vadd.f32 %v1732, 1e-05
        %v1734 = vrsqrt.pop %v1733
        %v1735 = vmul.f32 %v1727, %v1734
        %v1737 = vlaneseq
        %v1738 = vshrl.u32 %v1737, 7
        %v1739 = vsub.s32 0, %v1738
        %v1740 = vrot.slane %v1721, %v1739
        %v1742 = vmul.f32 %v1735, %v1740
        %v1744 = vlaneseq
        %v1745 = vshrl.u32 %v1744, 7
        %v1746 = vsub.s32 0, %v1745
        %v1747 = vrot.slane %v1722, %v1746
        %v1749 = vadd.f32 %v1742, %v1747
        %s1750 = scalar_lea.vmem %s1, 32
        %v1751 = vld [vmem:[%s1750] sm:$0xff]
        %v1752 = vld [vmem:[%s1750 + $0x8] sm:$0xff]
        %v1753 = vld [vmem:[%s1750 + $0x10] sm:$0xff]
        %v1754 = vld [vmem:[%s1750 + $0x18] sm:$0xff]
        %s1755 = scalar_lea.vmem %s2, 1
        %v1756 = vld [vmem:[%s1755] sm:$0x1]
        %v1758 = vlaneseq
        %v1759 = vshrl.u32 %v1758, 7
        %v1760 = vsub.s32 0, %v1759
        %v1761 = vrot.slane %v1756, %v1760
        %v1764 = vsel %vm468, %v1749, 0
        %1766 = vmatprep.subr.mxu0 0.0
        %1767 = vmatpush1.msra.mxu0 0.0
        %1768 = vmatprep.subr.mxu0 0.0
        %1769 = vmatpush1.msra.mxu0 0.0
        %1770 = vmatprep.subr.mxu0 0.0
        %1771 = vmatpush1.msra.mxu0 0.0
        %1772 = vmatprep.subr.mxu0 0.0
        %1773 = vmatpush1.msra.mxu0 0.0
        %1774 = vmatprep.subr.mxu0 0.0
        %1775 = vmatpush1.msra.mxu0 0.0
        %1776 = vmatprep.subr.mxu0 0.0
        %1777 = vmatpush1.msra.mxu0 0.0
        %1778 = vmatprep.subr.mxu0 0.0
        %1779 = vmatpush1.msra.mxu0 0.0
        %1780 = vmatprep.subr.mxu0 0.0
        %1781 = vmatpush1.msra.mxu0 0.0
        %1782 = vmatprep.subr.mxu0 0.0
        %1783 = vmatpush1.msra.mxu0 0.0
        %1784 = vmatprep.subr.mxu0 0.0
        %1785 = vmatpush1.msra.mxu0 0.0
        %1786 = vmatprep.subr.mxu0 0.0
        %1787 = vmatpush1.msra.mxu0 0.0
        %1788 = vmatprep.subr.mxu0 0.0
        %1789 = vmatpush1.msra.mxu0 0.0
        %1790 = vmatprep.subr.mxu0 0.0
        %1791 = vmatpush1.msra.mxu0 %v1754
        %1792 = vmatprep.subr.mxu0 0.0
        %1793 = vmatpush1.msra.mxu0 %v1753
        %1794 = vmatprep.subr.mxu0 0.0
        %1795 = vmatpush1.msra.mxu0 %v1752
        %1796 = vmatprep.subr.mxu0 0.0
        %1797 = vmatpush1.msra.mxu0 %v1751
        %1798 = vmatprep.subr.mxu0 0.0
        %1799 = vmatpush2.msra.mxu0 0.0
        %1800 = vmatprep.subr.mxu0 0.0
        %1801 = vmatpush2.msra.mxu0 0.0
        %1802 = vmatprep.subr.mxu0 0.0
        %1803 = vmatpush2.msra.mxu0 0.0
        %1804 = vmatprep.subr.mxu0 0.0
        %1805 = vmatpush2.msra.mxu0 0.0
        %1806 = vmatprep.subr.mxu0 0.0
        %1807 = vmatpush2.msra.mxu0 0.0
        %1808 = vmatprep.subr.mxu0 0.0
        %1809 = vmatpush2.msra.mxu0 0.0
        %1810 = vmatprep.subr.mxu0 0.0
        %1811 = vmatpush2.msra.mxu0 0.0
        %1812 = vmatprep.subr.mxu0 0.0
        %1813 = vmatpush2.msra.mxu0 0.0
        %1814 = vmatprep.subr.mxu0 0.0
        %1815 = vmatpush2.msra.mxu0 0.0
        %1816 = vmatprep.subr.mxu0 0.0
        %1817 = vmatpush2.msra.mxu0 0.0
        %1818 = vmatprep.subr.mxu0 0.0
        %1819 = vmatpush2.msra.mxu0 0.0
        %1820 = vmatprep.subr.mxu0 0.0
        %1821 = vmatpush2.msra.mxu0 0.0
        %1822 = vmatprep.subr.mxu0 0.0
        %1823 = vmatpush2.msra.mxu0 0.0
        %1824 = vmatprep.subr.mxu0 0.0
        %1825 = vmatpush2.msra.mxu0 0.0
        %1826 = vmatprep.subr.mxu0 0.0
        %1827 = vmatpush2.msra.mxu0 0.0
        %1828 = vmatprep.subr.mxu0 0.0
        %1829 = vmatpush2.msra.mxu0 0.0
        %1830 = vmatprep.mubr.f32.mxu0 0.0
        %1831 = vmatmul.mubr.f32.gmra.mxu0 %v1764
        %v1832 = vpop.f32.mrf.mxu0
        %v1833 = vadd.f32 %v1761, %v1832
        %v1834 = vpop.f32.mrf.mxu0
        %1835 = vdwg.mxu0
        %1837 = vrot.lane.b32.xlu0 %v1833, 120
        %v1838 = vpop.permute.xlu0 %1837
        %1839 = vrot.lane.b32.xlu0 %v1833, 112
        %v1840 = vpop.permute.xlu0 %1839
        %1841 = vrot.lane.b32.xlu0 %v1833, 104
        %v1842 = vpop.permute.xlu0 %1841
        %1843 = vrot.lane.b32.xlu0 %v1833, 96
        %v1844 = vpop.permute.xlu0 %1843
        %1845 = vrot.lane.b32.xlu0 %v1833, 88
        %v1846 = vpop.permute.xlu0 %1845
        %1847 = vrot.lane.b32.xlu0 %v1833, 80
        %v1848 = vpop.permute.xlu0 %1847
        %1849 = vrot.lane.b32.xlu0 %v1833, 72
        %v1850 = vpop.permute.xlu0 %1849
        %1851 = vrot.lane.b32.xlu0 %v1833, 64
        %v1852 = vpop.permute.xlu0 %1851
        %1854 = vrot.lane.b32.xlu0 %v1833, 56
        %v1855 = vpop.permute.xlu0 %1854
        %1857 = vrot.lane.b32.xlu0 %v1833, 48
        %v1858 = vpop.permute.xlu0 %1857
        %1860 = vrot.lane.b32.xlu0 %v1833, 40
        %v1861 = vpop.permute.xlu0 %1860
        %v1863 = vsel %vm569, %v1833, 0
        %v1865 = vsel %vm569, %v1844, 0
        %1867 = vmatprep.subr.mxu0 0.0
        %1868 = vmatpush1.xpose.msra.mxu0 0.0
        %1869 = vmatprep.subr.mxu0 0.0
        %1870 = vmatpush1.xpose.msra.mxu0 0.0
        %1871 = vmatprep.subr.mxu0 0.0
        %1872 = vmatpush1.xpose.msra.mxu0 0.0
        %1873 = vmatprep.subr.mxu0 0.0
        %1874 = vmatpush1.xpose.msra.mxu0 0.0
        %1875 = vmatprep.subr.mxu0 0.0
        %1876 = vmatpush1.xpose.msra.mxu0 0.0
        %1877 = vmatprep.subr.mxu0 0.0
        %1878 = vmatpush1.xpose.msra.mxu0 0.0
        %1879 = vmatprep.subr.mxu0 0.0
        %1880 = vmatpush1.xpose.msra.mxu0 0.0
        %1881 = vmatprep.subr.mxu0 0.0
        %1882 = vmatpush1.xpose.msra.mxu0 0.0
        %1883 = vmatprep.subr.mxu0 0.0
        %1884 = vmatpush1.xpose.msra.mxu0 0.0
        %1885 = vmatprep.subr.mxu0 0.0
        %1886 = vmatpush1.xpose.msra.mxu0 0.0
        %1887 = vmatprep.subr.mxu0 0.0
        %1888 = vmatpush1.xpose.msra.mxu0 0.0
        %1889 = vmatprep.subr.mxu0 0.0
        %1890 = vmatpush1.xpose.msra.mxu0 0.0
        %1891 = vmatprep.subr.mxu0 0.0
        %1892 = vmatpush1.xpose.msra.mxu0 0.0
        %1893 = vmatprep.subr.mxu0 0.0
        %1894 = vmatpush1.xpose.msra.mxu0 0.0
        %1895 = vmatprep.subr.mxu0 0.0
        %1896 = vmatpush1.xpose.msra.mxu0 0.0
        %1897 = vmatprep.subr.mxu0 0.0
        %1898 = vmatpush1.xpose.msra.mxu0 %v1865
        %1899 = vmatprep.subr.mxu0 0.0
        %1900 = vmatpush2.xpose.msra.mxu0 0.0
        %1901 = vmatprep.subr.mxu0 0.0
        %1902 = vmatpush2.xpose.msra.mxu0 0.0
        %1903 = vmatprep.subr.mxu0 0.0
        %1904 = vmatpush2.xpose.msra.mxu0 0.0
        %1905 = vmatprep.subr.mxu0 0.0
        %1906 = vmatpush2.xpose.msra.mxu0 0.0
        %1907 = vmatprep.subr.mxu0 0.0
        %1908 = vmatpush2.xpose.msra.mxu0 0.0
        %1909 = vmatprep.subr.mxu0 0.0
        %1910 = vmatpush2.xpose.msra.mxu0 0.0
        %1911 = vmatprep.subr.mxu0 0.0
        %1912 = vmatpush2.xpose.msra.mxu0 0.0
        %1913 = vmatprep.subr.mxu0 0.0
        %1914 = vmatpush2.xpose.msra.mxu0 0.0
        %1915 = vmatprep.subr.mxu0 0.0
        %1916 = vmatpush2.xpose.msra.mxu0 0.0
        %1917 = vmatprep.subr.mxu0 0.0
        %1918 = vmatpush2.xpose.msra.mxu0 0.0
        %1919 = vmatprep.subr.mxu0 0.0
        %1920 = vmatpush2.xpose.msra.mxu0 0.0
        %1921 = vmatprep.subr.mxu0 0.0
        %1922 = vmatpush2.xpose.msra.mxu0 0.0
        %1923 = vmatprep.subr.mxu0 0.0
        %1924 = vmatpush2.xpose.msra.mxu0 0.0
        %1925 = vmatprep.subr.mxu0 0.0
        %1926 = vmatpush2.xpose.msra.mxu0 0.0
        %1927 = vmatprep.subr.mxu0 0.0
        %1928 = vmatpush2.xpose.msra.mxu0 0.0
        %1929 = vmatprep.subr.mxu0 0.0
        %1930 = vmatpush2.xpose.msra.mxu0 0.0
        %1931 = vmatprep.mubr.f32.mxu0 0.0
        %1932 = vmatmul.mubr.f32.gmra.mxu0 %v1863
        %v1933 = vpop.f32.mrf.mxu0
        %v1934 = vadd.f32 0.0, %v1933
        %v1935 = vpop.f32.mrf.mxu0
        %1936 = vdwg.mxu0
        %v1937 = vsel %vm569, %v1838, 0
        %v1939 = vsel %vm569, %v1846, 0
        %1941 = vmatprep.subr.mxu0 0.0
        %1942 = vmatpush1.xpose.msra.mxu0 0.0
        %1943 = vmatprep.subr.mxu0 0.0
        %1944 = vmatpush1.xpose.msra.mxu0 0.0
        %1945 = vmatprep.subr.mxu0 0.0
        %1946 = vmatpush1.xpose.msra.mxu0 0.0
        %1947 = vmatprep.subr.mxu0 0.0
        %1948 = vmatpush1.xpose.msra.mxu0 0.0
        %1949 = vmatprep.subr.mxu0 0.0
        %1950 = vmatpush1.xpose.msra.mxu0 0.0
        %1951 = vmatprep.subr.mxu0 0.0
        %1952 = vmatpush1.xpose.msra.mxu0 0.0
        %1953 = vmatprep.subr.mxu0 0.0
        %1954 = vmatpush1.xpose.msra.mxu0 0.0
        %1955 = vmatprep.subr.mxu0 0.0
        %1956 = vmatpush1.xpose.msra.mxu0 0.0
        %1957 = vmatprep.subr.mxu0 0.0
        %1958 = vmatpush1.xpose.msra.mxu0 0.0
        %1959 = vmatprep.subr.mxu0 0.0
        %1960 = vmatpush1.xpose.msra.mxu0 0.0
        %1961 = vmatprep.subr.mxu0 0.0
        %1962 = vmatpush1.xpose.msra.mxu0 0.0
        %1963 = vmatprep.subr.mxu0 0.0
        %1964 = vmatpush1.xpose.msra.mxu0 0.0
        %1965 = vmatprep.subr.mxu0 0.0
        %1966 = vmatpush1.xpose.msra.mxu0 0.0
        %1967 = vmatprep.subr.mxu0 0.0
        %1968 = vmatpush1.xpose.msra.mxu0 0.0
        %1969 = vmatprep.subr.mxu0 0.0
        %1970 = vmatpush1.xpose.msra.mxu0 0.0
        %1971 = vmatprep.subr.mxu0 0.0
        %1972 = vmatpush1.xpose.msra.mxu0 %v1939
        %1973 = vmatprep.subr.mxu0 0.0
        %1974 = vmatpush2.xpose.msra.mxu0 0.0
        %1975 = vmatprep.subr.mxu0 0.0
        %1976 = vmatpush2.xpose.msra.mxu0 0.0
        %1977 = vmatprep.subr.mxu0 0.0
        %1978 = vmatpush2.xpose.msra.mxu0 0.0
        %1979 = vmatprep.subr.mxu0 0.0
        %1980 = vmatpush2.xpose.msra.mxu0 0.0
        %1981 = vmatprep.subr.mxu0 0.0
        %1982 = vmatpush2.xpose.msra.mxu0 0.0
        %1983 = vmatprep.subr.mxu0 0.0
        %1984 = vmatpush2.xpose.msra.mxu0 0.0
        %1985 = vmatprep.subr.mxu0 0.0
        %1986 = vmatpush2.xpose.msra.mxu0 0.0
        %1987 = vmatprep.subr.mxu0 0.0
        %1988 = vmatpush2.xpose.msra.mxu0 0.0
        %1989 = vmatprep.subr.mxu0 0.0
        %1990 = vmatpush2.xpose.msra.mxu0 0.0
        %1991 = vmatprep.subr.mxu0 0.0
        %1992 = vmatpush2.xpose.msra.mxu0 0.0
        %1993 = vmatprep.subr.mxu0 0.0
        %1994 = vmatpush2.xpose.msra.mxu0 0.0
        %1995 = vmatprep.subr.mxu0 0.0
        %1996 = vmatpush2.xpose.msra.mxu0 0.0
        %1997 = vmatprep.subr.mxu0 0.0
        %1998 = vmatpush2.xpose.msra.mxu0 0.0
        %1999 = vmatprep.subr.mxu0 0.0
        %2000 = vmatpush2.xpose.msra.mxu0 0.0
        %2001 = vmatprep.subr.mxu0 0.0
        %2002 = vmatpush2.xpose.msra.mxu0 0.0
        %2003 = vmatprep.subr.mxu0 0.0
        %2004 = vmatpush2.xpose.msra.mxu0 0.0
        %2005 = vmatprep.mubr.f32.mxu0 0.0
        %2006 = vmatmul.mubr.f32.gmra.mxu0 %v1937
        %v2007 = vpop.f32.mrf.mxu0
        %v2008 = vadd.f32 0.0, %v2007
        %v2009 = vpop.f32.mrf.mxu0
        %2010 = vdwg.mxu0
        %v2011 = vsel %vm569, %v1840, 0
        %v2013 = vsel %vm569, %v1848, 0
        %2015 = vmatprep.subr.mxu0 0.0
        %2016 = vmatpush1.xpose.msra.mxu0 0.0
        %2017 = vmatprep.subr.mxu0 0.0
        %2018 = vmatpush1.xpose.msra.mxu0 0.0
        %2019 = vmatprep.subr.mxu0 0.0
        %2020 = vmatpush1.xpose.msra.mxu0 0.0
        %2021 = vmatprep.subr.mxu0 0.0
        %2022 = vmatpush1.xpose.msra.mxu0 0.0
        %2023 = vmatprep.subr.mxu0 0.0
        %2024 = vmatpush1.xpose.msra.mxu0 0.0
        %2025 = vmatprep.subr.mxu0 0.0
        %2026 = vmatpush1.xpose.msra.mxu0 0.0
        %2027 = vmatprep.subr.mxu0 0.0
        %2028 = vmatpush1.xpose.msra.mxu0 0.0
        %2029 = vmatprep.subr.mxu0 0.0
        %2030 = vmatpush1.xpose.msra.mxu0 0.0
        %2031 = vmatprep.subr.mxu0 0.0
        %2032 = vmatpush1.xpose.msra.mxu0 0.0
        %2033 = vmatprep.subr.mxu0 0.0
        %2034 = vmatpush1.xpose.msra.mxu0 0.0
        %2035 = vmatprep.subr.mxu0 0.0
        %2036 = vmatpush1.xpose.msra.mxu0 0.0
        %2037 = vmatprep.subr.mxu0 0.0
        %2038 = vmatpush1.xpose.msra.mxu0 0.0
        %2039 = vmatprep.subr.mxu0 0.0
        %2040 = vmatpush1.xpose.msra.mxu0 0.0
        %2041 = vmatprep.subr.mxu0 0.0
        %2042 = vmatpush1.xpose.msra.mxu0 0.0
        %2043 = vmatprep.subr.mxu0 0.0
        %2044 = vmatpush1.xpose.msra.mxu0 0.0
        %2045 = vmatprep.subr.mxu0 0.0
        %2046 = vmatpush1.xpose.msra.mxu0 %v2013
        %2047 = vmatprep.subr.mxu0 0.0
        %2048 = vmatpush2.xpose.msra.mxu0 0.0
        %2049 = vmatprep.subr.mxu0 0.0
        %2050 = vmatpush2.xpose.msra.mxu0 0.0
        %2051 = vmatprep.subr.mxu0 0.0
        %2052 = vmatpush2.xpose.msra.mxu0 0.0
        %2053 = vmatprep.subr.mxu0 0.0
        %2054 = vmatpush2.xpose.msra.mxu0 0.0
        %2055 = vmatprep.subr.mxu0 0.0
        %2056 = vmatpush2.xpose.msra.mxu0 0.0
        %2057 = vmatprep.subr.mxu0 0.0
        %2058 = vmatpush2.xpose.msra.mxu0 0.0
        %2059 = vmatprep.subr.mxu0 0.0
        %2060 = vmatpush2.xpose.msra.mxu0 0.0
        %2061 = vmatprep.subr.mxu0 0.0
        %2062 = vmatpush2.xpose.msra.mxu0 0.0
        %2063 = vmatprep.subr.mxu0 0.0
        %2064 = vmatpush2.xpose.msra.mxu0 0.0
        %2065 = vmatprep.subr.mxu0 0.0
        %2066 = vmatpush2.xpose.msra.mxu0 0.0
        %2067 = vmatprep.subr.mxu0 0.0
        %2068 = vmatpush2.xpose.msra.mxu0 0.0
        %2069 = vmatprep.subr.mxu0 0.0
        %2070 = vmatpush2.xpose.msra.mxu0 0.0
        %2071 = vmatprep.subr.mxu0 0.0
        %2072 = vmatpush2.xpose.msra.mxu0 0.0
        %2073 = vmatprep.subr.mxu0 0.0
        %2074 = vmatpush2.xpose.msra.mxu0 0.0
        %2075 = vmatprep.subr.mxu0 0.0
        %2076 = vmatpush2.xpose.msra.mxu0 0.0
        %2077 = vmatprep.subr.mxu0 0.0
        %2078 = vmatpush2.xpose.msra.mxu0 0.0
        %2079 = vmatprep.mubr.f32.mxu0 0.0
        %2080 = vmatmul.mubr.f32.gmra.mxu0 %v2011
        %v2081 = vpop.f32.mrf.mxu0
        %v2082 = vadd.f32 0.0, %v2081
        %v2083 = vpop.f32.mrf.mxu0
        %2084 = vdwg.mxu0
        %v2085 = vsel %vm569, %v1842, 0
        %v2087 = vsel %vm569, %v1850, 0
        %2089 = vmatprep.subr.mxu0 0.0
        %2090 = vmatpush1.xpose.msra.mxu0 0.0
        %2091 = vmatprep.subr.mxu0 0.0
        %2092 = vmatpush1.xpose.msra.mxu0 0.0
        %2093 = vmatprep.subr.mxu0 0.0
        %2094 = vmatpush1.xpose.msra.mxu0 0.0
        %2095 = vmatprep.subr.mxu0 0.0
        %2096 = vmatpush1.xpose.msra.mxu0 0.0
        %2097 = vmatprep.subr.mxu0 0.0
        %2098 = vmatpush1.xpose.msra.mxu0 0.0
        %2099 = vmatprep.subr.mxu0 0.0
        %2100 = vmatpush1.xpose.msra.mxu0 0.0
        %2101 = vmatprep.subr.mxu0 0.0
        %2102 = vmatpush1.xpose.msra.mxu0 0.0
        %2103 = vmatprep.subr.mxu0 0.0
        %2104 = vmatpush1.xpose.msra.mxu0 0.0
        %2105 = vmatprep.subr.mxu0 0.0
        %2106 = vmatpush1.xpose.msra.mxu0 0.0
        %2107 = vmatprep.subr.mxu0 0.0
        %2108 = vmatpush1.xpose.msra.mxu0 0.0
        %2109 = vmatprep.subr.mxu0 0.0
        %2110 = vmatpush1.xpose.msra.mxu0 0.0
        %2111 = vmatprep.subr.mxu0 0.0
        %2112 = vmatpush1.xpose.msra.mxu0 0.0
        %2113 = vmatprep.subr.mxu0 0.0
        %2114 = vmatpush1.xpose.msra.mxu0 0.0
        %2115 = vmatprep.subr.mxu0 0.0
        %2116 = vmatpush1.xpose.msra.mxu0 0.0
        %2117 = vmatprep.subr.mxu0 0.0
        %2118 = vmatpush1.xpose.msra.mxu0 0.0
        %2119 = vmatprep.subr.mxu0 0.0
        %2120 = vmatpush1.xpose.msra.mxu0 %v2087
        %2121 = vmatprep.subr.mxu0 0.0
        %2122 = vmatpush2.xpose.msra.mxu0 0.0
        %2123 = vmatprep.subr.mxu0 0.0
        %2124 = vmatpush2.xpose.msra.mxu0 0.0
        %2125 = vmatprep.subr.mxu0 0.0
        %2126 = vmatpush2.xpose.msra.mxu0 0.0
        %2127 = vmatprep.subr.mxu0 0.0
        %2128 = vmatpush2.xpose.msra.mxu0 0.0
        %2129 = vmatprep.subr.mxu0 0.0
        %2130 = vmatpush2.xpose.msra.mxu0 0.0
        %2131 = vmatprep.subr.mxu0 0.0
        %2132 = vmatpush2.xpose.msra.mxu0 0.0
        %2133 = vmatprep.subr.mxu0 0.0
        %2134 = vmatpush2.xpose.msra.mxu0 0.0
        %2135 = vmatprep.subr.mxu0 0.0
        %2136 = vmatpush2.xpose.msra.mxu0 0.0
        %2137 = vmatprep.subr.mxu0 0.0
        %2138 = vmatpush2.xpose.msra.mxu0 0.0
        %2139 = vmatprep.subr.mxu0 0.0
        %2140 = vmatpush2.xpose.msra.mxu0 0.0
        %2141 = vmatprep.subr.mxu0 0.0
        %2142 = vmatpush2.xpose.msra.mxu0 0.0
        %2143 = vmatprep.subr.mxu0 0.0
        %2144 = vmatpush2.xpose.msra.mxu0 0.0
        %2145 = vmatprep.subr.mxu0 0.0
        %2146 = vmatpush2.xpose.msra.mxu0 0.0
        %2147 = vmatprep.subr.mxu0 0.0
        %2148 = vmatpush2.xpose.msra.mxu0 0.0
        %2149 = vmatprep.subr.mxu0 0.0
        %2150 = vmatpush2.xpose.msra.mxu0 0.0
        %2151 = vmatprep.subr.mxu0 0.0
        %2152 = vmatpush2.xpose.msra.mxu0 0.0
        %2153 = vmatprep.mubr.f32.mxu0 0.0
        %2154 = vmatmul.mubr.f32.gmra.mxu0 %v2085
        %v2155 = vpop.f32.mrf.mxu0
        %v2156 = vadd.f32 0.0, %v2155
        %v2157 = vpop.f32.mrf.mxu0
        %2158 = vdwg.mxu0
        %v2159 = vmul.f32 %v1934, 0.35355338
        %v2160 = vmul.f32 %v2008, 0.35355338
        %v2161 = vmul.f32 %v2082, 0.35355338
        %v2162 = vmul.f32 %v2156, 0.35355338
        %v2163 = vsel %vm569, %v2159, -inf
        %2164 = vmax.xlane.f32.xlu0 %v2163
        %v2165 = vpop.xlane.xlu0 %2164
        %v2166 = vsel %vm569, %v2160, -inf
        %2167 = vmax.xlane.f32.xlu0 %v2166
        %v2168 = vpop.xlane.xlu0 %2167
        %v2169 = vsel %vm569, %v2161, -inf
        %2170 = vmax.xlane.f32.xlu0 %v2169
        %v2171 = vpop.xlane.xlu0 %2170
        %v2172 = vsel %vm569, %v2162, -inf
        %2173 = vmax.xlane.f32.xlu0 %v2172
        %v2174 = vpop.xlane.xlu0 %2173
        %v2175 = vsub.f32 %v2159, %v2165
        %v2176 = vsub.f32 %v2160, %v2168
        %v2177 = vsub.f32 %v2161, %v2171
        %v2178 = vsub.f32 %v2162, %v2174
        %v2179 = vmul.f32 %v2175, 1.442695
        %v2180 = vpow.pop %v2179
        %v2181 = vmul.f32 %v2176, 1.442695
        %v2182 = vpow.pop %v2181
        %v2183 = vmul.f32 %v2177, 1.442695
        %v2184 = vpow.pop %v2183
        %v2185 = vmul.f32 %v2178, 1.442695
        %v2186 = vpow.pop %v2185
        %v2187 = vsel %vm569, %v2180, 0.0
        %2188 = vadd.xlane.f32.xlu0 %v2187
        %v2189 = vpop.xlane.xlu0 %2188
        %v2190 = vsel %vm569, %v2182, 0.0
        %2191 = vadd.xlane.f32.xlu0 %v2190
        %v2192 = vpop.xlane.xlu0 %2191
        %v2193 = vsel %vm569, %v2184, 0.0
        %2194 = vadd.xlane.f32.xlu0 %v2193
        %v2195 = vpop.xlane.xlu0 %2194
        %v2196 = vsel %vm569, %v2186, 0.0
        %2197 = vadd.xlane.f32.xlu0 %v2196
        %v2198 = vpop.xlane.xlu0 %2197
        %v2199 = vrcp.pop %v2189
        %v2200 = vrcp.pop %v2192
        %v2201 = vrcp.pop %v2195
        %v2202 = vrcp.pop %v2198
        %v2203 = vmul.f32 %v2180, %v2199
        %v2204 = vmul.f32 %v2182, %v2200
        %v2205 = vmul.f32 %v2184, %v2201
        %v2206 = vmul.f32 %v2186, %v2202
        %v2208 = vsel %vm569, %v2203, 0
        %2210 = vmatprep.subr.mxu0 0.0
        %2211 = vmatpush1.msra.mxu0 0.0
        %2212 = vmatprep.subr.mxu0 0.0
        %2213 = vmatpush1.msra.mxu0 0.0
        %2214 = vmatprep.subr.mxu0 0.0
        %2215 = vmatpush1.msra.mxu0 0.0
        %2216 = vmatprep.subr.mxu0 0.0
        %2217 = vmatpush1.msra.mxu0 0.0
        %2218 = vmatprep.subr.mxu0 0.0
        %2219 = vmatpush1.msra.mxu0 0.0
        %2220 = vmatprep.subr.mxu0 0.0
        %2221 = vmatpush1.msra.mxu0 0.0
        %2222 = vmatprep.subr.mxu0 0.0
        %2223 = vmatpush1.msra.mxu0 0.0
        %2224 = vmatprep.subr.mxu0 0.0
        %2225 = vmatpush1.msra.mxu0 0.0
        %2226 = vmatprep.subr.mxu0 0.0
        %2227 = vmatpush1.msra.mxu0 0.0
        %2228 = vmatprep.subr.mxu0 0.0
        %2229 = vmatpush1.msra.mxu0 0.0
        %2230 = vmatprep.subr.mxu0 0.0
        %2231 = vmatpush1.msra.mxu0 0.0
        %2232 = vmatprep.subr.mxu0 0.0
        %2233 = vmatpush1.msra.mxu0 0.0
        %2234 = vmatprep.subr.mxu0 0.0
        %2235 = vmatpush1.msra.mxu0 0.0
        %2236 = vmatprep.subr.mxu0 0.0
        %2237 = vmatpush1.msra.mxu0 0.0
        %2238 = vmatprep.subr.mxu0 0.0
        %2239 = vmatpush1.msra.mxu0 0.0
        %2240 = vmatprep.subr.mxu0 0.0
        %2241 = vmatpush1.msra.mxu0 %v1852
        %2242 = vmatprep.subr.mxu0 0.0
        %2243 = vmatpush2.msra.mxu0 0.0
        %2244 = vmatprep.subr.mxu0 0.0
        %2245 = vmatpush2.msra.mxu0 0.0
        %2246 = vmatprep.subr.mxu0 0.0
        %2247 = vmatpush2.msra.mxu0 0.0
        %2248 = vmatprep.subr.mxu0 0.0
        %2249 = vmatpush2.msra.mxu0 0.0
        %2250 = vmatprep.subr.mxu0 0.0
        %2251 = vmatpush2.msra.mxu0 0.0
        %2252 = vmatprep.subr.mxu0 0.0
        %2253 = vmatpush2.msra.mxu0 0.0
        %2254 = vmatprep.subr.mxu0 0.0
        %2255 = vmatpush2.msra.mxu0 0.0
        %2256 = vmatprep.subr.mxu0 0.0
        %2257 = vmatpush2.msra.mxu0 0.0
        %2258 = vmatprep.subr.mxu0 0.0
        %2259 = vmatpush2.msra.mxu0 0.0
        %2260 = vmatprep.subr.mxu0 0.0
        %2261 = vmatpush2.msra.mxu0 0.0
        %2262 = vmatprep.subr.mxu0 0.0
        %2263 = vmatpush2.msra.mxu0 0.0
        %2264 = vmatprep.subr.mxu0 0.0
        %2265 = vmatpush2.msra.mxu0 0.0
        %2266 = vmatprep.subr.mxu0 0.0
        %2267 = vmatpush2.msra.mxu0 0.0
        %2268 = vmatprep.subr.mxu0 0.0
        %2269 = vmatpush2.msra.mxu0 0.0
        %2270 = vmatprep.subr.mxu0 0.0
        %2271 = vmatpush2.msra.mxu0 0.0
        %2272 = vmatprep.subr.mxu0 0.0
        %2273 = vmatpush2.msra.mxu0 0.0
        %2274 = vmatprep.mubr.f32.mxu0 0.0
        %2275 = vmatmul.mubr.f32.gmra.mxu0 %v2208
        %v2276 = vpop.f32.mrf.mxu0
        %v2277 = vadd.f32 0.0, %v2276
        %v2278 = vpop.f32.mrf.mxu0
        %2279 = vdwg.mxu0
        %v2281 = vsel %vm569, %v2204, 0
        %2283 = vmatprep.subr.mxu0 0.0
        %2284 = vmatpush1.msra.mxu0 0.0
        %2285 = vmatprep.subr.mxu0 0.0
        %2286 = vmatpush1.msra.mxu0 0.0
        %2287 = vmatprep.subr.mxu0 0.0
        %2288 = vmatpush1.msra.mxu0 0.0
        %2289 = vmatprep.subr.mxu0 0.0
        %2290 = vmatpush1.msra.mxu0 0.0
        %2291 = vmatprep.subr.mxu0 0.0
        %2292 = vmatpush1.msra.mxu0 0.0
        %2293 = vmatprep.subr.mxu0 0.0
        %2294 = vmatpush1.msra.mxu0 0.0
        %2295 = vmatprep.subr.mxu0 0.0
        %2296 = vmatpush1.msra.mxu0 0.0
        %2297 = vmatprep.subr.mxu0 0.0
        %2298 = vmatpush1.msra.mxu0 0.0
        %2299 = vmatprep.subr.mxu0 0.0
        %2300 = vmatpush1.msra.mxu0 0.0
        %2301 = vmatprep.subr.mxu0 0.0
        %2302 = vmatpush1.msra.mxu0 0.0
        %2303 = vmatprep.subr.mxu0 0.0
        %2304 = vmatpush1.msra.mxu0 0.0
        %2305 = vmatprep.subr.mxu0 0.0
        %2306 = vmatpush1.msra.mxu0 0.0
        %2307 = vmatprep.subr.mxu0 0.0
        %2308 = vmatpush1.msra.mxu0 0.0
        %2309 = vmatprep.subr.mxu0 0.0
        %2310 = vmatpush1.msra.mxu0 0.0
        %2311 = vmatprep.subr.mxu0 0.0
        %2312 = vmatpush1.msra.mxu0 0.0
        %2313 = vmatprep.subr.mxu0 0.0
        %2314 = vmatpush1.msra.mxu0 %v1855
        %2315 = vmatprep.subr.mxu0 0.0
        %2316 = vmatpush2.msra.mxu0 0.0
        %2317 = vmatprep.subr.mxu0 0.0
        %2318 = vmatpush2.msra.mxu0 0.0
        %2319 = vmatprep.subr.mxu0 0.0
        %2320 = vmatpush2.msra.mxu0 0.0
        %2321 = vmatprep.subr.mxu0 0.0
        %2322 = vmatpush2.msra.mxu0 0.0
        %2323 = vmatprep.subr.mxu0 0.0
        %2324 = vmatpush2.msra.mxu0 0.0
        %2325 = vmatprep.subr.mxu0 0.0
        %2326 = vmatpush2.msra.mxu0 0.0
        %2327 = vmatprep.subr.mxu0 0.0
        %2328 = vmatpush2.msra.mxu0 0.0
        %2329 = vmatprep.subr.mxu0 0.0
        %2330 = vmatpush2.msra.mxu0 0.0
        %2331 = vmatprep.subr.mxu0 0.0
        %2332 = vmatpush2.msra.mxu0 0.0
        %2333 = vmatprep.subr.mxu0 0.0
        %2334 = vmatpush2.msra.mxu0 0.0
        %2335 = vmatprep.subr.mxu0 0.0
        %2336 = vmatpush2.msra.mxu0 0.0
        %2337 = vmatprep.subr.mxu0 0.0
        %2338 = vmatpush2.msra.mxu0 0.0
        %2339 = vmatprep.subr.mxu0 0.0
        %2340 = vmatpush2.msra.mxu0 0.0
        %2341 = vmatprep.subr.mxu0 0.0
        %2342 = vmatpush2.msra.mxu0 0.0
        %2343 = vmatprep.subr.mxu0 0.0
        %2344 = vmatpush2.msra.mxu0 0.0
        %2345 = vmatprep.subr.mxu0 0.0
        %2346 = vmatpush2.msra.mxu0 0.0
        %2347 = vmatprep.mubr.f32.mxu0 0.0
        %2348 = vmatmul.mubr.f32.gmra.mxu0 %v2281
        %v2349 = vpop.f32.mrf.mxu0
        %v2350 = vadd.f32 0.0, %v2349
        %v2351 = vpop.f32.mrf.mxu0
        %2352 = vdwg.mxu0
        %v2354 = vsel %vm569, %v2205, 0
        %2356 = vmatprep.subr.mxu0 0.0
        %2357 = vmatpush1.msra.mxu0 0.0
        %2358 = vmatprep.subr.mxu0 0.0
        %2359 = vmatpush1.msra.mxu0 0.0
        %2360 = vmatprep.subr.mxu0 0.0
        %2361 = vmatpush1.msra.mxu0 0.0
        %2362 = vmatprep.subr.mxu0 0.0
        %2363 = vmatpush1.msra.mxu0 0.0
        %2364 = vmatprep.subr.mxu0 0.0
        %2365 = vmatpush1.msra.mxu0 0.0
        %2366 = vmatprep.subr.mxu0 0.0
        %2367 = vmatpush1.msra.mxu0 0.0
        %2368 = vmatprep.subr.mxu0 0.0
        %2369 = vmatpush1.msra.mxu0 0.0
        %2370 = vmatprep.subr.mxu0 0.0
        %2371 = vmatpush1.msra.mxu0 0.0
        %2372 = vmatprep.subr.mxu0 0.0
        %2373 = vmatpush1.msra.mxu0 0.0
        %2374 = vmatprep.subr.mxu0 0.0
        %2375 = vmatpush1.msra.mxu0 0.0
        %2376 = vmatprep.subr.mxu0 0.0
        %2377 = vmatpush1.msra.mxu0 0.0
        %2378 = vmatprep.subr.mxu0 0.0
        %2379 = vmatpush1.msra.mxu0 0.0
        %2380 = vmatprep.subr.mxu0 0.0
        %2381 = vmatpush1.msra.mxu0 0.0
        %2382 = vmatprep.subr.mxu0 0.0
        %2383 = vmatpush1.msra.mxu0 0.0
        %2384 = vmatprep.subr.mxu0 0.0
        %2385 = vmatpush1.msra.mxu0 0.0
        %2386 = vmatprep.subr.mxu0 0.0
        %2387 = vmatpush1.msra.mxu0 %v1858
        %2388 = vmatprep.subr.mxu0 0.0
        %2389 = vmatpush2.msra.mxu0 0.0
        %2390 = vmatprep.subr.mxu0 0.0
        %2391 = vmatpush2.msra.mxu0 0.0
        %2392 = vmatprep.subr.mxu0 0.0
        %2393 = vmatpush2.msra.mxu0 0.0
        %2394 = vmatprep.subr.mxu0 0.0
        %2395 = vmatpush2.msra.mxu0 0.0
        %2396 = vmatprep.subr.mxu0 0.0
        %2397 = vmatpush2.msra.mxu0 0.0
        %2398 = vmatprep.subr.mxu0 0.0
        %2399 = vmatpush2.msra.mxu0 0.0
        %2400 = vmatprep.subr.mxu0 0.0
        %2401 = vmatpush2.msra.mxu0 0.0
        %2402 = vmatprep.subr.mxu0 0.0
        %2403 = vmatpush2.msra.mxu0 0.0
        %2404 = vmatprep.subr.mxu0 0.0
        %2405 = vmatpush2.msra.mxu0 0.0
        %2406 = vmatprep.subr.mxu0 0.0
        %2407 = vmatpush2.msra.mxu0 0.0
        %2408 = vmatprep.subr.mxu0 0.0
        %2409 = vmatpush2.msra.mxu0 0.0
        %2410 = vmatprep.subr.mxu0 0.0
        %2411 = vmatpush2.msra.mxu0 0.0
        %2412 = vmatprep.subr.mxu0 0.0
        %2413 = vmatpush2.msra.mxu0 0.0
        %2414 = vmatprep.subr.mxu0 0.0
        %2415 = vmatpush2.msra.mxu0 0.0
        %2416 = vmatprep.subr.mxu0 0.0
        %2417 = vmatpush2.msra.mxu0 0.0
        %2418 = vmatprep.subr.mxu0 0.0
        %2419 = vmatpush2.msra.mxu0 0.0
        %2420 = vmatprep.mubr.f32.mxu0 0.0
        %2421 = vmatmul.mubr.f32.gmra.mxu0 %v2354
        %v2422 = vpop.f32.mrf.mxu0
        %v2423 = vadd.f32 0.0, %v2422
        %v2424 = vpop.f32.mrf.mxu0
        %2425 = vdwg.mxu0
        %v2427 = vsel %vm569, %v2206, 0
        %2429 = vmatprep.subr.mxu0 0.0
        %2430 = vmatpush1.msra.mxu0 0.0
        %2431 = vmatprep.subr.mxu0 0.0
        %2432 = vmatpush1.msra.mxu0 0.0
        %2433 = vmatprep.subr.mxu0 0.0
        %2434 = vmatpush1.msra.mxu0 0.0
        %2435 = vmatprep.subr.mxu0 0.0
        %2436 = vmatpush1.msra.mxu0 0.0
        %2437 = vmatprep.subr.mxu0 0.0
        %2438 = vmatpush1.msra.mxu0 0.0
        %2439 = vmatprep.subr.mxu0 0.0
        %2440 = vmatpush1.msra.mxu0 0.0
        %2441 = vmatprep.subr.mxu0 0.0
        %2442 = vmatpush1.msra.mxu0 0.0
        %2443 = vmatprep.subr.mxu0 0.0
        %2444 = vmatpush1.msra.mxu0 0.0
        %2445 = vmatprep.subr.mxu0 0.0
        %2446 = vmatpush1.msra.mxu0 0.0
        %2447 = vmatprep.subr.mxu0 0.0
        %2448 = vmatpush1.msra.mxu0 0.0
        %2449 = vmatprep.subr.mxu0 0.0
        %2450 = vmatpush1.msra.mxu0 0.0
        %2451 = vmatprep.subr.mxu0 0.0
        %2452 = vmatpush1.msra.mxu0 0.0
        %2453 = vmatprep.subr.mxu0 0.0
        %2454 = vmatpush1.msra.mxu0 0.0
        %2455 = vmatprep.subr.mxu0 0.0
        %2456 = vmatpush1.msra.mxu0 0.0
        %2457 = vmatprep.subr.mxu0 0.0
        %2458 = vmatpush1.msra.mxu0 0.0
        %2459 = vmatprep.subr.mxu0 0.0
        %2460 = vmatpush1.msra.mxu0 %v1861
        %2461 = vmatprep.subr.mxu0 0.0
        %2462 = vmatpush2.msra.mxu0 0.0
        %2463 = vmatprep.subr.mxu0 0.0
        %2464 = vmatpush2.msra.mxu0 0.0
        %2465 = vmatprep.subr.mxu0 0.0
        %2466 = vmatpush2.msra.mxu0 0.0
        %2467 = vmatprep.subr.mxu0 0.0
        %2468 = vmatpush2.msra.mxu0 0.0
        %2469 = vmatprep.subr.mxu0 0.0
        %2470 = vmatpush2.msra.mxu0 0.0
        %2471 = vmatprep.subr.mxu0 0.0
        %2472 = vmatpush2.msra.mxu0 0.0
        %2473 = vmatprep.subr.mxu0 0.0
        %2474 = vmatpush2.msra.mxu0 0.0
        %2475 = vmatprep.subr.mxu0 0.0
        %2476 = vmatpush2.msra.mxu0 0.0
        %2477 = vmatprep.subr.mxu0 0.0
        %2478 = vmatpush2.msra.mxu0 0.0
        %2479 = vmatprep.subr.mxu0 0.0
        %2480 = vmatpush2.msra.mxu0 0.0
        %2481 = vmatprep.subr.mxu0 0.0
        %2482 = vmatpush2.msra.mxu0 0.0
        %2483 = vmatprep.subr.mxu0 0.0
        %2484 = vmatpush2.msra.mxu0 0.0
        %2485 = vmatprep.subr.mxu0 0.0
        %2486 = vmatpush2.msra.mxu0 0.0
        %2487 = vmatprep.subr.mxu0 0.0
        %2488 = vmatpush2.msra.mxu0 0.0
        %2489 = vmatprep.subr.mxu0 0.0
        %2490 = vmatpush2.msra.mxu0 0.0
        %2491 = vmatprep.subr.mxu0 0.0
        %2492 = vmatpush2.msra.mxu0 0.0
        %2493 = vmatprep.mubr.f32.mxu0 0.0
        %2494 = vmatmul.mubr.f32.gmra.mxu0 %v2427
        %v2495 = vpop.f32.mrf.mxu0
        %v2496 = vadd.f32 0.0, %v2495
        %v2497 = vpop.f32.mrf.mxu0
        %2498 = vdwg.mxu0
        %s2499 = scalar_lea.vmem %s3, 32
        %v2500 = vld [vmem:[%s2499] sm:$0xff]
        %v2501 = vld [vmem:[%s2499 + $0x8] sm:$0xff]
        %v2502 = vld [vmem:[%s2499 + $0x10] sm:$0xff]
        %v2503 = vld [vmem:[%s2499 + $0x18] sm:$0xff]
        %s2504 = scalar_lea.vmem %s4, 1
        %v2505 = vld [vmem:[%s2504] sm:$0x1]
        %v2507 = vsel %vm569, %v2277, 0
        %2509 = vmatprep.subr.mxu0 0.0
        %2510 = vmatpush1.msra.mxu0 0.0
        %2511 = vmatprep.subr.mxu0 0.0
        %2512 = vmatpush1.msra.mxu0 0.0
        %2513 = vmatprep.subr.mxu0 0.0
        %2514 = vmatpush1.msra.mxu0 0.0
        %2515 = vmatprep.subr.mxu0 0.0
        %2516 = vmatpush1.msra.mxu0 0.0
        %2517 = vmatprep.subr.mxu0 0.0
        %2518 = vmatpush1.msra.mxu0 0.0
        %2519 = vmatprep.subr.mxu0 0.0
        %2520 = vmatpush1.msra.mxu0 0.0
        %2521 = vmatprep.subr.mxu0 0.0
        %2522 = vmatpush1.msra.mxu0 0.0
        %2523 = vmatprep.subr.mxu0 0.0
        %2524 = vmatpush1.msra.mxu0 0.0
        %2525 = vmatprep.subr.mxu0 0.0
        %2526 = vmatpush1.msra.mxu0 0.0
        %2527 = vmatprep.subr.mxu0 0.0
        %2528 = vmatpush1.msra.mxu0 0.0
        %2529 = vmatprep.subr.mxu0 0.0
        %2530 = vmatpush1.msra.mxu0 0.0
        %2531 = vmatprep.subr.mxu0 0.0
        %2532 = vmatpush1.msra.mxu0 0.0
        %2533 = vmatprep.subr.mxu0 0.0
        %2534 = vmatpush1.msra.mxu0 0.0
        %2535 = vmatprep.subr.mxu0 0.0
        %2536 = vmatpush1.msra.mxu0 0.0
        %2537 = vmatprep.subr.mxu0 0.0
        %2538 = vmatpush1.msra.mxu0 0.0
        %2539 = vmatprep.subr.mxu0 0.0
        %2540 = vmatpush1.msra.mxu0 %v2500
        %2541 = vmatprep.subr.mxu0 0.0
        %2542 = vmatpush2.msra.mxu0 0.0
        %2543 = vmatprep.subr.mxu0 0.0
        %2544 = vmatpush2.msra.mxu0 0.0
        %2545 = vmatprep.subr.mxu0 0.0
        %2546 = vmatpush2.msra.mxu0 0.0
        %2547 = vmatprep.subr.mxu0 0.0
        %2548 = vmatpush2.msra.mxu0 0.0
        %2549 = vmatprep.subr.mxu0 0.0
        %2550 = vmatpush2.msra.mxu0 0.0
        %2551 = vmatprep.subr.mxu0 0.0
        %2552 = vmatpush2.msra.mxu0 0.0
        %2553 = vmatprep.subr.mxu0 0.0
        %2554 = vmatpush2.msra.mxu0 0.0
        %2555 = vmatprep.subr.mxu0 0.0
        %2556 = vmatpush2.msra.mxu0 0.0
        %2557 = vmatprep.subr.mxu0 0.0
        %2558 = vmatpush2.msra.mxu0 0.0
        %2559 = vmatprep.subr.mxu0 0.0
        %2560 = vmatpush2.msra.mxu0 0.0
        %2561 = vmatprep.subr.mxu0 0.0
        %2562 = vmatpush2.msra.mxu0 0.0
        %2563 = vmatprep.subr.mxu0 0.0
        %2564 = vmatpush2.msra.mxu0 0.0
        %2565 = vmatprep.subr.mxu0 0.0
        %2566 = vmatpush2.msra.mxu0 0.0
        %2567 = vmatprep.subr.mxu0 0.0
        %2568 = vmatpush2.msra.mxu0 0.0
        %2569 = vmatprep.subr.mxu0 0.0
        %2570 = vmatpush2.msra.mxu0 0.0
        %2571 = vmatprep.subr.mxu0 0.0
        %2572 = vmatpush2.msra.mxu0 0.0
        %2573 = vmatprep.mubr.f32.mxu0 0.0
        %2574 = vmatmul.mubr.f32.gmra.mxu0 %v2507
        %v2575 = vpop.f32.mrf.mxu0
        %v2576 = vadd.f32 0.0, %v2575
        %v2577 = vpop.f32.mrf.mxu0
        %2578 = vdwg.mxu0
        %v2580 = vlaneseq
        %v2581 = vshrl.u32 %v2580, 7
        %v2582 = vsub.s32 0, %v2581
        %v2583 = vrot.slane %v2505, %v2582
        %v2585 = vadd.f32 %v2583, %v2576
        %v2587 = vsel %vm569, %v2350, 0
        %2589 = vmatprep.subr.mxu0 0.0
        %2590 = vmatpush1.msra.mxu0 0.0
        %2591 = vmatprep.subr.mxu0 0.0
        %2592 = vmatpush1.msra.mxu0 0.0
        %2593 = vmatprep.subr.mxu0 0.0
        %2594 = vmatpush1.msra.mxu0 0.0
        %2595 = vmatprep.subr.mxu0 0.0
        %2596 = vmatpush1.msra.mxu0 0.0
        %2597 = vmatprep.subr.mxu0 0.0
        %2598 = vmatpush1.msra.mxu0 0.0
        %2599 = vmatprep.subr.mxu0 0.0
        %2600 = vmatpush1.msra.mxu0 0.0
        %2601 = vmatprep.subr.mxu0 0.0
        %2602 = vmatpush1.msra.mxu0 0.0
        %2603 = vmatprep.subr.mxu0 0.0
        %2604 = vmatpush1.msra.mxu0 0.0
        %2605 = vmatprep.subr.mxu0 0.0
        %2606 = vmatpush1.msra.mxu0 0.0
        %2607 = vmatprep.subr.mxu0 0.0
        %2608 = vmatpush1.msra.mxu0 0.0
        %2609 = vmatprep.subr.mxu0 0.0
        %2610 = vmatpush1.msra.mxu0 0.0
        %2611 = vmatprep.subr.mxu0 0.0
        %2612 = vmatpush1.msra.mxu0 0.0
        %2613 = vmatprep.subr.mxu0 0.0
        %2614 = vmatpush1.msra.mxu0 0.0
        %2615 = vmatprep.subr.mxu0 0.0
        %2616 = vmatpush1.msra.mxu0 0.0
        %2617 = vmatprep.subr.mxu0 0.0
        %2618 = vmatpush1.msra.mxu0 0.0
        %2619 = vmatprep.subr.mxu0 0.0
        %2620 = vmatpush1.msra.mxu0 %v2501
        %2621 = vmatprep.subr.mxu0 0.0
        %2622 = vmatpush2.msra.mxu0 0.0
        %2623 = vmatprep.subr.mxu0 0.0
        %2624 = vmatpush2.msra.mxu0 0.0
        %2625 = vmatprep.subr.mxu0 0.0
        %2626 = vmatpush2.msra.mxu0 0.0
        %2627 = vmatprep.subr.mxu0 0.0
        %2628 = vmatpush2.msra.mxu0 0.0
        %2629 = vmatprep.subr.mxu0 0.0
        %2630 = vmatpush2.msra.mxu0 0.0
        %2631 = vmatprep.subr.mxu0 0.0
        %2632 = vmatpush2.msra.mxu0 0.0
        %2633 = vmatprep.subr.mxu0 0.0
        %2634 = vmatpush2.msra.mxu0 0.0
        %2635 = vmatprep.subr.mxu0 0.0
        %2636 = vmatpush2.msra.mxu0 0.0
        %2637 = vmatprep.subr.mxu0 0.0
        %2638 = vmatpush2.msra.mxu0 0.0
        %2639 = vmatprep.subr.mxu0 0.0
        %2640 = vmatpush2.msra.mxu0 0.0
        %2641 = vmatprep.subr.mxu0 0.0
        %2642 = vmatpush2.msra.mxu0 0.0
        %2643 = vmatprep.subr.mxu0 0.0
        %2644 = vmatpush2.msra.mxu0 0.0
        %2645 = vmatprep.subr.mxu0 0.0
        %2646 = vmatpush2.msra.mxu0 0.0
        %2647 = vmatprep.subr.mxu0 0.0
        %2648 = vmatpush2.msra.mxu0 0.0
        %2649 = vmatprep.subr.mxu0 0.0
        %2650 = vmatpush2.msra.mxu0 0.0
        %2651 = vmatprep.subr.mxu0 0.0
        %2652 = vmatpush2.msra.mxu0 0.0
        %2653 = vmatprep.mubr.f32.mxu0 0.0
        %2654 = vmatmul.mubr.f32.gmra.mxu0 %v2587
        %v2655 = vpop.f32.mrf.mxu0
        %v2656 = vadd.f32 0.0, %v2655
        %v2657 = vpop.f32.mrf.mxu0
        %2658 = vdwg.mxu0
        %v2659 = vadd.f32 %v2585, %v2656
        %v2661 = vsel %vm569, %v2423, 0
        %2663 = vmatprep.subr.mxu0 0.0
        %2664 = vmatpush1.msra.mxu0 0.0
        %2665 = vmatprep.subr.mxu0 0.0
        %2666 = vmatpush1.msra.mxu0 0.0
        %2667 = vmatprep.subr.mxu0 0.0
        %2668 = vmatpush1.msra.mxu0 0.0
        %2669 = vmatprep.subr.mxu0 0.0
        %2670 = vmatpush1.msra.mxu0 0.0
        %2671 = vmatprep.subr.mxu0 0.0
        %2672 = vmatpush1.msra.mxu0 0.0
        %2673 = vmatprep.subr.mxu0 0.0
        %2674 = vmatpush1.msra.mxu0 0.0
        %2675 = vmatprep.subr.mxu0 0.0
        %2676 = vmatpush1.msra.mxu0 0.0
        %2677 = vmatprep.subr.mxu0 0.0
        %2678 = vmatpush1.msra.mxu0 0.0
        %2679 = vmatprep.subr.mxu0 0.0
        %2680 = vmatpush1.msra.mxu0 0.0
        %2681 = vmatprep.subr.mxu0 0.0
        %2682 = vmatpush1.msra.mxu0 0.0
        %2683 = vmatprep.subr.mxu0 0.0
        %2684 = vmatpush1.msra.mxu0 0.0
        %2685 = vmatprep.subr.mxu0 0.0
        %2686 = vmatpush1.msra.mxu0 0.0
        %2687 = vmatprep.subr.mxu0 0.0
        %2688 = vmatpush1.msra.mxu0 0.0
        %2689 = vmatprep.subr.mxu0 0.0
        %2690 = vmatpush1.msra.mxu0 0.0
        %2691 = vmatprep.subr.mxu0 0.0
        %2692 = vmatpush1.msra.mxu0 0.0
        %2693 = vmatprep.subr.mxu0 0.0
        %2694 = vmatpush1.msra.mxu0 %v2502
        %2695 = vmatprep.subr.mxu0 0.0
        %2696 = vmatpush2.msra.mxu0 0.0
        %2697 = vmatprep.subr.mxu0 0.0
        %2698 = vmatpush2.msra.mxu0 0.0
        %2699 = vmatprep.subr.mxu0 0.0
        %2700 = vmatpush2.msra.mxu0 0.0
        %2701 = vmatprep.subr.mxu0 0.0
        %2702 = vmatpush2.msra.mxu0 0.0
        %2703 = vmatprep.subr.mxu0 0.0
        %2704 = vmatpush2.msra.mxu0 0.0
        %2705 = vmatprep.subr.mxu0 0.0
        %2706 = vmatpush2.msra.mxu0 0.0
        %2707 = vmatprep.subr.mxu0 0.0
        %2708 = vmatpush2.msra.mxu0 0.0
        %2709 = vmatprep.subr.mxu0 0.0
        %2710 = vmatpush2.msra.mxu0 0.0
        %2711 = vmatprep.subr.mxu0 0.0
        %2712 = vmatpush2.msra.mxu0 0.0
        %2713 = vmatprep.subr.mxu0 0.0
        %2714 = vmatpush2.msra.mxu0 0.0
        %2715 = vmatprep.subr.mxu0 0.0
        %2716 = vmatpush2.msra.mxu0 0.0
        %2717 = vmatprep.subr.mxu0 0.0
        %2718 = vmatpush2.msra.mxu0 0.0
        %2719 = vmatprep.subr.mxu0 0.0
        %2720 = vmatpush2.msra.mxu0 0.0
        %2721 = vmatprep.subr.mxu0 0.0
        %2722 = vmatpush2.msra.mxu0 0.0
        %2723 = vmatprep.subr.mxu0 0.0
        %2724 = vmatpush2.msra.mxu0 0.0
        %2725 = vmatprep.subr.mxu0 0.0
        %2726 = vmatpush2.msra.mxu0 0.0
        %2727 = vmatprep.mubr.f32.mxu0 0.0
        %2728 = vmatmul.mubr.f32.gmra.mxu0 %v2661
        %v2729 = vpop.f32.mrf.mxu0
        %v2730 = vadd.f32 0.0, %v2729
        %v2731 = vpop.f32.mrf.mxu0
        %2732 = vdwg.mxu0
        %v2733 = vadd.f32 %v2659, %v2730
        %v2735 = vsel %vm569, %v2496, 0
        %2737 = vmatprep.subr.mxu0 0.0
        %2738 = vmatpush1.msra.mxu0 0.0
        %2739 = vmatprep.subr.mxu0 0.0
        %2740 = vmatpush1.msra.mxu0 0.0
        %2741 = vmatprep.subr.mxu0 0.0
        %2742 = vmatpush1.msra.mxu0 0.0
        %2743 = vmatprep.subr.mxu0 0.0
        %2744 = vmatpush1.msra.mxu0 0.0
        %2745 = vmatprep.subr.mxu0 0.0
        %2746 = vmatpush1.msra.mxu0 0.0
        %2747 = vmatprep.subr.mxu0 0.0
        %2748 = vmatpush1.msra.mxu0 0.0
        %2749 = vmatprep.subr.mxu0 0.0
        %2750 = vmatpush1.msra.mxu0 0.0
        %2751 = vmatprep.subr.mxu0 0.0
        %2752 = vmatpush1.msra.mxu0 0.0
        %2753 = vmatprep.subr.mxu0 0.0
        %2754 = vmatpush1.msra.mxu0 0.0
        %2755 = vmatprep.subr.mxu0 0.0
        %2756 = vmatpush1.msra.mxu0 0.0
        %2757 = vmatprep.subr.mxu0 0.0
        %2758 = vmatpush1.msra.mxu0 0.0
        %2759 = vmatprep.subr.mxu0 0.0
        %2760 = vmatpush1.msra.mxu0 0.0
        %2761 = vmatprep.subr.mxu0 0.0
        %2762 = vmatpush1.msra.mxu0 0.0
        %2763 = vmatprep.subr.mxu0 0.0
        %2764 = vmatpush1.msra.mxu0 0.0
        %2765 = vmatprep.subr.mxu0 0.0
        %2766 = vmatpush1.msra.mxu0 0.0
        %2767 = vmatprep.subr.mxu0 0.0
        %2768 = vmatpush1.msra.mxu0 %v2503
        %2769 = vmatprep.subr.mxu0 0.0
        %2770 = vmatpush2.msra.mxu0 0.0
        %2771 = vmatprep.subr.mxu0 0.0
        %2772 = vmatpush2.msra.mxu0 0.0
        %2773 = vmatprep.subr.mxu0 0.0
        %2774 = vmatpush2.msra.mxu0 0.0
        %2775 = vmatprep.subr.mxu0 0.0
        %2776 = vmatpush2.msra.mxu0 0.0
        %2777 = vmatprep.subr.mxu0 0.0
        %2778 = vmatpush2.msra.mxu0 0.0
        %2779 = vmatprep.subr.mxu0 0.0
        %2780 = vmatpush2.msra.mxu0 0.0
        %2781 = vmatprep.subr.mxu0 0.0
        %2782 = vmatpush2.msra.mxu0 0.0
        %2783 = vmatprep.subr.mxu0 0.0
        %2784 = vmatpush2.msra.mxu0 0.0
        %2785 = vmatprep.subr.mxu0 0.0
        %2786 = vmatpush2.msra.mxu0 0.0
        %2787 = vmatprep.subr.mxu0 0.0
        %2788 = vmatpush2.msra.mxu0 0.0
        %2789 = vmatprep.subr.mxu0 0.0
        %2790 = vmatpush2.msra.mxu0 0.0
        %2791 = vmatprep.subr.mxu0 0.0
        %2792 = vmatpush2.msra.mxu0 0.0
        %2793 = vmatprep.subr.mxu0 0.0
        %2794 = vmatpush2.msra.mxu0 0.0
        %2795 = vmatprep.subr.mxu0 0.0
        %2796 = vmatpush2.msra.mxu0 0.0
        %2797 = vmatprep.subr.mxu0 0.0
        %2798 = vmatpush2.msra.mxu0 0.0
        %2799 = vmatprep.subr.mxu0 0.0
        %2800 = vmatpush2.msra.mxu0 0.0
        %2801 = vmatprep.mubr.f32.mxu0 0.0
        %2802 = vmatmul.mubr.f32.gmra.mxu0 %v2735
        %v2803 = vpop.f32.mrf.mxu0
        %v2804 = vadd.f32 0.0, %v2803
        %v2805 = vpop.f32.mrf.mxu0
        %2806 = vdwg.mxu0
        %v2807 = vadd.f32 %v2733, %v2804
        %v2808 = vadd.f32 %v1749, %v2807
        %s2809 = scalar_lea.vmem %s5, 1
        %v2810 = vld [vmem:[%s2809] sm:$0x1]
        %s2811 = scalar_lea.vmem %s6, 1
        %v2812 = vld [vmem:[%s2811] sm:$0x1]
        %v2813 = vsel %vm468, %v2808, 0.0
        %2814 = vadd.xlane.f32.xlu0 %v2813
        %v2815 = vpop.xlane.xlu0 %2814
        %v2816 = vmul.f32 %v2815, %v1519
        %v2817 = vsub.f32 %v2808, %v2816
        %v2818 = vmul.f32 %v2817, %v2817
        %v2819 = vsel %vm468, %v2818, 0.0
        %2820 = vadd.xlane.f32.xlu0 %v2819
        %v2821 = vpop.xlane.xlu0 %2820
        %v2822 = vmul.f32 %v2821, %v1519
        %v2823 = vadd.f32 %v2822, 1e-05
        %v2824 = vrsqrt.pop %v2823
        %v2825 = vmul.f32 %v2817, %v2824
        %v2827 = vlaneseq
        %v2828 = vshrl.u32 %v2827, 7
        %v2829 = vsub.s32 0, %v2828
        %v2830 = vrot.slane %v2810, %v2829
        %v2832 = vmul.f32 %v2825, %v2830
        %v2834 = vlaneseq
        %v2835 = vshrl.u32 %v2834, 7
        %v2836 = vsub.s32 0, %v2835
        %v2837 = vrot.slane %v2812, %v2836
        %v2839 = vadd.f32 %v2832, %v2837
        %s2840 = scalar_lea.vmem %s7, 32
        %v2841 = vld [vmem:[%s2840] sm:$0xff]
        %v2842 = vld [vmem:[%s2840 + $0x8] sm:$0xff]
        %v2843 = vld [vmem:[%s2840 + $0x10] sm:$0xff]
        %v2844 = vld [vmem:[%s2840 + $0x18] sm:$0xff]
        %s2845 = scalar_lea.vmem %s8, 1
        %v2846 = vld [vmem:[%s2845] sm:$0x1]
        %v2848 = vlaneseq
        %v2849 = vshrl.u32 %v2848, 7
        %v2850 = vsub.s32 0, %v2849
        %v2851 = vrot.slane %v2846, %v2850
        %v2854 = vsel %vm468, %v2839, 0
        %2856 = vmatprep.subr.mxu0 0.0
        %2857 = vmatpush1.msra.mxu0 0.0
        %2858 = vmatprep.subr.mxu0 0.0
        %2859 = vmatpush1.msra.mxu0 0.0
        %2860 = vmatprep.subr.mxu0 0.0
        %2861 = vmatpush1.msra.mxu0 0.0
        %2862 = vmatprep.subr.mxu0 0.0
        %2863 = vmatpush1.msra.mxu0 0.0
        %2864 = vmatprep.subr.mxu0 0.0
        %2865 = vmatpush1.msra.mxu0 0.0
        %2866 = vmatprep.subr.mxu0 0.0
        %2867 = vmatpush1.msra.mxu0 0.0
        %2868 = vmatprep.subr.mxu0 0.0
        %2869 = vmatpush1.msra.mxu0 0.0
        %2870 = vmatprep.subr.mxu0 0.0
        %2871 = vmatpush1.msra.mxu0 0.0
        %2872 = vmatprep.subr.mxu0 0.0
        %2873 = vmatpush1.msra.mxu0 0.0
        %2874 = vmatprep.subr.mxu0 0.0
        %2875 = vmatpush1.msra.mxu0 0.0
        %2876 = vmatprep.subr.mxu0 0.0
        %2877 = vmatpush1.msra.mxu0 0.0
        %2878 = vmatprep.subr.mxu0 0.0
        %2879 = vmatpush1.msra.mxu0 0.0
        %2880 = vmatprep.subr.mxu0 0.0
        %2881 = vmatpush1.msra.mxu0 %v2844
        %2882 = vmatprep.subr.mxu0 0.0
        %2883 = vmatpush1.msra.mxu0 %v2843
        %2884 = vmatprep.subr.mxu0 0.0
        %2885 = vmatpush1.msra.mxu0 %v2842
        %2886 = vmatprep.subr.mxu0 0.0
        %2887 = vmatpush1.msra.mxu0 %v2841
        %2888 = vmatprep.subr.mxu0 0.0
        %2889 = vmatpush2.msra.mxu0 0.0
        %2890 = vmatprep.subr.mxu0 0.0
        %2891 = vmatpush2.msra.mxu0 0.0
        %2892 = vmatprep.subr.mxu0 0.0
        %2893 = vmatpush2.msra.mxu0 0.0
        %2894 = vmatprep.subr.mxu0 0.0
        %2895 = vmatpush2.msra.mxu0 0.0
        %2896 = vmatprep.subr.mxu0 0.0
        %2897 = vmatpush2.msra.mxu0 0.0
        %2898 = vmatprep.subr.mxu0 0.0
        %2899 = vmatpush2.msra.mxu0 0.0
        %2900 = vmatprep.subr.mxu0 0.0
        %2901 = vmatpush2.msra.mxu0 0.0
        %2902 = vmatprep.subr.mxu0 0.0
        %2903 = vmatpush2.msra.mxu0 0.0
        %2904 = vmatprep.subr.mxu0 0.0
        %2905 = vmatpush2.msra.mxu0 0.0
        %2906 = vmatprep.subr.mxu0 0.0
        %2907 = vmatpush2.msra.mxu0 0.0
        %2908 = vmatprep.subr.mxu0 0.0
        %2909 = vmatpush2.msra.mxu0 0.0
        %2910 = vmatprep.subr.mxu0 0.0
        %2911 = vmatpush2.msra.mxu0 0.0
        %2912 = vmatprep.subr.mxu0 0.0
        %2913 = vmatpush2.msra.mxu0 0.0
        %2914 = vmatprep.subr.mxu0 0.0
        %2915 = vmatpush2.msra.mxu0 0.0
        %2916 = vmatprep.subr.mxu0 0.0
        %2917 = vmatpush2.msra.mxu0 0.0
        %2918 = vmatprep.subr.mxu0 0.0
        %2919 = vmatpush2.msra.mxu0 0.0
        %2920 = vmatprep.mubr.f32.mxu0 0.0
        %2921 = vmatmul.mubr.f32.gmra.mxu0 %v2854
        %v2922 = vpop.f32.mrf.mxu0
        %v2923 = vadd.f32 %v2851, %v2922
        %v2924 = vpop.f32.mrf.mxu0
        %2925 = vdwg.mxu0
        %vm2926 = vcmp.ge.f32.partialorder %v2923, 0.0
        %v2927 = vmul.f32 %v2923, 0.01
        %v2928 = vsel %vm2926, %v2923, %v2927
        %s2929 = scalar_lea.vmem %s9, 64
        %v2930 = vld [vmem:[%s2929] sm:$0xff]
        %v2931 = vld [vmem:[%s2929 + $0x8] sm:$0xff]
        %v2932 = vld [vmem:[%s2929 + $0x10] sm:$0xff]
        %v2933 = vld [vmem:[%s2929 + $0x18] sm:$0xff]
        %v2934 = vld [vmem:[%s2929 + $0x20] sm:$0xff]
        %v2935 = vld [vmem:[%s2929 + $0x28] sm:$0xff]
        %v2936 = vld [vmem:[%s2929 + $0x30] sm:$0xff]
        %v2937 = vld [vmem:[%s2929 + $0x38] sm:$0xff]
        %s2938 = scalar_lea.vmem %s10, 1
        %v2939 = vld [vmem:[%s2938] sm:$0x1]
        %v2941 = vlaneseq
        %v2942 = vshrl.u32 %v2941, 7
        %v2943 = vsub.s32 0, %v2942
        %v2944 = vrot.slane %v2939, %v2943
        %v2947 = vsel %vm1646, %v2928, 0
        %2949 = vmatprep.subr.mxu0 0.0
        %2950 = vmatpush1.msra.mxu0 0.0
        %2951 = vmatprep.subr.mxu0 0.0
        %2952 = vmatpush1.msra.mxu0 0.0
        %2953 = vmatprep.subr.mxu0 0.0
        %2954 = vmatpush1.msra.mxu0 0.0
        %2955 = vmatprep.subr.mxu0 0.0
        %2956 = vmatpush1.msra.mxu0 0.0
        %2957 = vmatprep.subr.mxu0 0.0
        %2958 = vmatpush1.msra.mxu0 0.0
        %2959 = vmatprep.subr.mxu0 0.0
        %2960 = vmatpush1.msra.mxu0 0.0
        %2961 = vmatprep.subr.mxu0 0.0
        %2962 = vmatpush1.msra.mxu0 0.0
        %2963 = vmatprep.subr.mxu0 0.0
        %2964 = vmatpush1.msra.mxu0 0.0
        %2965 = vmatprep.subr.mxu0 0.0
        %2966 = vmatpush1.msra.mxu0 %v2937
        %2967 = vmatprep.subr.mxu0 0.0
        %2968 = vmatpush1.msra.mxu0 %v2936
        %2969 = vmatprep.subr.mxu0 0.0
        %2970 = vmatpush1.msra.mxu0 %v2935
        %2971 = vmatprep.subr.mxu0 0.0
        %2972 = vmatpush1.msra.mxu0 %v2934
        %2973 = vmatprep.subr.mxu0 0.0
        %2974 = vmatpush1.msra.mxu0 %v2933
        %2975 = vmatprep.subr.mxu0 0.0
        %2976 = vmatpush1.msra.mxu0 %v2932
        %2977 = vmatprep.subr.mxu0 0.0
        %2978 = vmatpush1.msra.mxu0 %v2931
        %2979 = vmatprep.subr.mxu0 0.0
        %2980 = vmatpush1.msra.mxu0 %v2930
        %2981 = vmatprep.subr.mxu0 0.0
        %2982 = vmatpush2.msra.mxu0 0.0
        %2983 = vmatprep.subr.mxu0 0.0
        %2984 = vmatpush2.msra.mxu0 0.0
        %2985 = vmatprep.subr.mxu0 0.0
        %2986 = vmatpush2.msra.mxu0 0.0
        %2987 = vmatprep.subr.mxu0 0.0
        %2988 = vmatpush2.msra.mxu0 0.0
        %2989 = vmatprep.subr.mxu0 0.0
        %2990 = vmatpush2.msra.mxu0 0.0
        %2991 = vmatprep.subr.mxu0 0.0
        %2992 = vmatpush2.msra.mxu0 0.0
        %2993 = vmatprep.subr.mxu0 0.0
        %2994 = vmatpush2.msra.mxu0 0.0
        %2995 = vmatprep.subr.mxu0 0.0
        %2996 = vmatpush2.msra.mxu0 0.0
        %2997 = vmatprep.subr.mxu0 0.0
        %2998 = vmatpush2.msra.mxu0 0.0
        %2999 = vmatprep.subr.mxu0 0.0
        %3000 = vmatpush2.msra.mxu0 0.0
        %3001 = vmatprep.subr.mxu0 0.0
        %3002 = vmatpush2.msra.mxu0 0.0
        %3003 = vmatprep.subr.mxu0 0.0
        %3004 = vmatpush2.msra.mxu0 0.0
        %3005 = vmatprep.subr.mxu0 0.0
        %3006 = vmatpush2.msra.mxu0 0.0
        %3007 = vmatprep.subr.mxu0 0.0
        %3008 = vmatpush2.msra.mxu0 0.0
        %3009 = vmatprep.subr.mxu0 0.0
        %3010 = vmatpush2.msra.mxu0 0.0
        %3011 = vmatprep.subr.mxu0 0.0
        %3012 = vmatpush2.msra.mxu0 0.0
        %3013 = vmatprep.mubr.f32.mxu0 0.0
        %3014 = vmatmul.mubr.f32.gmra.mxu0 %v2947
        %v3015 = vpop.f32.mrf.mxu0
        %v3016 = vadd.f32 %v2944, %v3015
        %v3017 = vpop.f32.mrf.mxu0
        %3018 = vdwg.mxu0
        %v3019 = vadd.f32 %v2839, %v3016
        %s3020 = scalar_lea.vmem %s11, 1
        %v3021 = vld [vmem:[%s3020] sm:$0x1]
        %s3022 = scalar_lea.vmem %s12, 1
        %v3023 = vld [vmem:[%s3022] sm:$0x1]
        %v3024 = vsel %vm468, %v3019, 0.0
        %3025 = vadd.xlane.f32.xlu0 %v3024
        %v3026 = vpop.xlane.xlu0 %3025
        %v3027 = vmul.f32 %v3026, %v1519
        %v3028 = vsub.f32 %v3019, %v3027
        %v3029 = vmul.f32 %v3028, %v3028
        %v3030 = vsel %vm468, %v3029, 0.0
        %3031 = vadd.xlane.f32.xlu0 %v3030
        %v3032 = vpop.xlane.xlu0 %3031
        %v3033 = vmul.f32 %v3032, %v1519
        %v3034 = vadd.f32 %v3033, 1e-05
        %v3035 = vrsqrt.pop %v3034
        %v3036 = vmul.f32 %v3028, %v3035
        %v3038 = vlaneseq
        %v3039 = vshrl.u32 %v3038, 7
        %v3040 = vsub.s32 0, %v3039
        %v3041 = vrot.slane %v3021, %v3040
        %v3043 = vmul.f32 %v3036, %v3041
        %v3045 = vlaneseq
        %v3046 = vshrl.u32 %v3045, 7
        %v3047 = vsub.s32 0, %v3046
        %v3048 = vrot.slane %v3023, %v3047
        %v3050 = vadd.f32 %v3043, %v3048
        %3051 = vst.msk [vmem:[%s455] sm:$0xff] %vm468, %v3050
        %s3052 = sand.u32 %s316, 1
        %s3053 = scalar_lea.sflag [#allocation4], %s3052
        %s3054 = sand.u32 %s316, 1
        %s3055 = smul.addr %s3054, 8
        %s3056 = scalar_lea.vmem [#allocation5], %s3055
        // Predicated region
        $region77: #{tpu_custom_call.1} parent=71 // pred_check
          %p3057 = pneg %p326
        $region78: #{tpu_custom_call.1} parent=71 // pred_check_branch
          %3059 = sbr.rel (%p3057) target = $region80
        $region79: #{tpu_custom_call.1} parent=71 // pred_region
          %s3061 = ssub.s32 128, 128
          %3062 = vsyncadd %s3053, %s3061
          %s3063 = smul.addr %s30, 128
          %s3064 = scalar_lea.hbm %s13, %s3063
          %s3066 = sshll.u32 %s3056, 4
          %s3067 = int_to_ptr.vmem [resolvable:$true] %s3066
          %3069 = dma.vmem_to_hbm [thread:$0]  %s3067, 128, %s3064, %s3053
        $region80: #{tpu_custom_call.1} parent=71 // pred_fallthru
          _
      $region72: #{tpu_custom_call.1} parent=5 // pred_fallthru
        _
      %p3070 = scmp.le.s32.totalorder 2, %s25
      // Predicated region
      $region81: #{tpu_custom_call.1} parent=5 // pred_check
        %p3071 = pneg %p3070
      $region82: #{tpu_custom_call.1} parent=5 // pred_check_branch
        %3073 = sbr.rel (%p3071) target = $region84
      $region83: #{tpu_custom_call.1} parent=5 // pred_region
        %s3074 = ssub.s32 %s25, 2
        // Predicated region
        $region85: #{tpu_custom_call.1} parent=83 // pred_check
          %p3075 = pneg %p332
        $region86: #{tpu_custom_call.1} parent=83 // pred_check_branch
          %3077 = sbr.rel (%p3075) target = $region88
        $region87: #{tpu_custom_call.1} parent=83 // pred_region
          %s3078 = sand.u32 %s317, 1
          %s3079 = scalar_lea.sflag [#allocation4], %s3078
          %s3080 = sand.u32 %s317, 1
          %s3081 = smul.addr %s3080, 8
          %s3082 = scalar_lea.vmem [#allocation5], %s3081
          %3083 = dma.done %s3079, 128
        $region88: #{tpu_custom_call.1} parent=83 // pred_fallthru
          _
      $region84: #{tpu_custom_call.1} parent=5 // pred_fallthru
        _
    $region6: #{tpu_custom_call.1} parent=1 // loop_footer
      %s29 = sadd.s32 1, %s25
    $region7: #{tpu_custom_call.1} parent=1 // loop_footer_branch
      %24 = sbr.rel target = $region3
    $region8: #{tpu_custom_call.1} parent=1 // loop_exit
      _
    %3084 = vsyncpa [#allocation3], 1
    %s3085 = scalar_lea.sflag [#allocation3], 1
    %3086 = vsyncpa %s3085, 1
    %3087 = vsyncpa [#allocation4], 1
    %s3088 = scalar_lea.sflag [#allocation4], 1
    %3089 = vsyncpa %s3088, 1

</llo_original>
